<compile_context>
chip_gen: v6e
topology: v6e:2x2x1
jax: 0.10.0
libtpu: 0.0.40
codegen_flags: <defaults>
</compile_context>

<pallas_src>
import functools
import math

import jax
import jax.numpy as jnp
from jax.experimental import pallas as pl
from jax.experimental.pallas import tpu as pltpu

NEG_SLOPE = 0.01  # PyTorch nn.LeakyReLU default


# ----------------------------------------------------------------------------
# In-kernel helpers
# ----------------------------------------------------------------------------
def _activate(v, act, slope):
    if act == "relu":
        return jnp.maximum(v, 0.0)
    if act == "leaky":
        return jnp.maximum(v, slope * v)  # single VALU select
    return v


def _pad1(x3):
    """Zero halo (pad=1) around a (H, W, C) tile, built as a value in VMEM."""
    H, W, C = x3.shape
    z_w = jnp.zeros((H, 1, C), x3.dtype)
    row = jnp.concatenate([z_w, x3, z_w], axis=1)      # (H, W+2, C)
    z_h = jnp.zeros((1, W + 2, C), x3.dtype)
    return jnp.concatenate([z_h, row, z_h], axis=0)    # (H+2, W+2, C)


def _unfold3x3(xp, H, W):
    """(H+2, W+2, C) halo tile -> (H*W, 9*C) patch matrix (im2col in VMEM)."""
    cols = []
    for dy in range(3):
        for dx in range(3):
            cols.append(xp[dy:dy + H, dx:dx + W, :])
    patch = jnp.concatenate(cols, axis=-1)             # (H, W, 9*C)
    return patch.reshape(H * W, patch.shape[-1])       # single reshape


# ----------------------------------------------------------------------------
# Fused ResBasicBlock kernel: conv1 + act + conv2 + shortcut + residual + act
# ----------------------------------------------------------------------------
def _resblock_kernel(x_ref, w1_ref, b1_ref, w2_ref, b2_ref, *rest,
                     H, W, act, slope, has_sc):
    if has_sc:
        wsc_ref, bsc_ref, o_ref = rest
    else:
        (o_ref,) = rest

    Cin = x_ref.shape[-1]
    Cout = o_ref.shape[-1]

    x_flat = x_ref[0]                                   # (H*W, Cin) bf16

    # ---- conv1 (3x3) + bias + act : one matmul, K = 9*Cin ------------------
    xp = _pad1(x_flat.reshape(H, W, Cin))               # in-VMEM zero halo
    h = jnp.dot(_unfold3x3(xp, H, W), w1_ref[...],
                preferred_element_type=jnp.float32)     # (H*W, Cout) f32
    h = _activate(h + b1_ref[...], act, slope)

    # ---- conv2 (3x3) + bias : one matmul, K = 9*Cout ------------------------
    hp = _pad1(h.reshape(H, W, Cout).astype(jnp.bfloat16))
    y = jnp.dot(_unfold3x3(hp, H, W), w2_ref[...],
                preferred_element_type=jnp.float32) + b2_ref[...]

    # ---- shortcut (1x1 conv / identity) + residual + act, all in f32 --------
    if has_sc:
        sc = jnp.dot(x_flat, wsc_ref[...],
                     preferred_element_type=jnp.float32) + bsc_ref[...]
    else:
        sc = x_flat.astype(jnp.float32)

    o_ref[0] = _activate(y + sc, act, slope).astype(o_ref.dtype)


def resblock_apply(x_flat, p, H, W, out_dtype=jnp.bfloat16):
    """x_flat: (N, H*W, Cin) bf16  ->  (N, H*W, Cout) out_dtype."""
    N, HW, Cin = x_flat.shape
    Cout = p["conv1"]["w"].shape[-1]
    has_sc = p["shortcut"] is not None

    w1 = p["conv1"]["w"].reshape(9 * Cin, Cout).astype(jnp.bfloat16)
    b1 = p["conv1"]["b"].astype(jnp.float32).reshape(1, Cout)
    w2 = p["conv2"]["w"].reshape(9 * Cout, Cout).astype(jnp.bfloat16)
    b2 = p["conv2"]["b"].astype(jnp.float32).reshape(1, Cout)

    args = [x_flat, w1, b1, w2, b2]
    in_specs = [
        pl.BlockSpec((1, HW, Cin), lambda n: (n, 0, 0)),
        # constant block index -> weights stay resident across the batch grid
        pl.BlockSpec((9 * Cin, Cout), lambda n: (0, 0)),
        pl.BlockSpec((1, Cout), lambda n: (0, 0)),
        pl.BlockSpec((9 * Cout, Cout), lambda n: (0, 0)),
        pl.BlockSpec((1, Cout), lambda n: (0, 0)),
    ]
    if has_sc:
        wsc = p["shortcut"]["w"].reshape(Cin, Cout).astype(jnp.bfloat16)
        bsc = p["shortcut"]["b"].astype(jnp.float32).reshape(1, Cout)
        args += [wsc, bsc]
        in_specs += [pl.BlockSpec((Cin, Cout), lambda n: (0, 0)),
                     pl.BlockSpec((1, Cout), lambda n: (0, 0))]

    out_bytes = jnp.dtype(out_dtype).itemsize
    # Right-sized VMEM request: double-buffered i/o tiles + resident weights
    # + in-kernel halo/patch/epilogue intermediates, 2x headroom, 32 MiB cap.
    need = (2 * HW * Cin * 2 + 2 * HW * Cout * out_bytes
            + 2 * (9 * Cin + 9 * Cout + Cin) * Cout * 2 + 6 * Cout * 4
            + ((H + 2) * (W + 2) * (Cin + Cout) + HW * 9 * (Cin + Cout)) * 2
            + 3 * HW * Cout * 4)
    vmem_limit = int(min(32 * 1024 * 1024, max(2 * need, 4 * 1024 * 1024)))

    kern = functools.partial(_resblock_kernel, H=H, W=W, act=p["act"],
                             slope=NEG_SLOPE, has_sc=has_sc)
    return pl.pallas_call(
        kern,
        out_shape=jax.ShapeDtypeStruct((N, HW, Cout), out_dtype),
        grid=(N,),
        in_specs=in_specs,
        out_specs=pl.BlockSpec((1, HW, Cout), lambda n: (n, 0, 0)),
        compiler_params=pltpu.CompilerParams(
            dimension_semantics=("parallel",),
            vmem_limit_bytes=vmem_limit),
    )(*args)


# ----------------------------------------------------------------------------
# Parameter construction (deterministic)
# ----------------------------------------------------------------------------
class KeyGen:
    def __init__(self, seed=0):
        self._key = jax.random.PRNGKey(seed)

    def __call__(self):
        self._key, sub = jax.random.split(self._key)
        return sub


def _fold_bn(w, b, gamma, beta, mean, var, eps=1e-5):
    """General eval-mode BN fold: w' = w*g/sqrt(v+eps), b' = beta+(b-m)*scale."""
    scale = gamma / jnp.sqrt(var + eps)                 # (Cout,)
    return w * scale, beta + (b - mean) * scale


def make_convbr(kg, cin, cout, k, bn):
    fan_in = k * k * cin
    w = jax.random.normal(kg(), (k, k, cin, cout), jnp.float32) * math.sqrt(
        2.0 / fan_in)
    b = jnp.zeros((cout,), jnp.float32)
    if bn:  # freshly-initialized BN stats; the fold handles trained stats too
        gamma = jnp.ones((cout,), jnp.float32)
        beta = jnp.zeros((cout,), jnp.float32)
        mean = jnp.zeros((cout,), jnp.float32)
        var = jnp.ones((cout,), jnp.float32)
        w, b = _fold_bn(w, b, gamma, beta, mean, var)
    return dict(w=w, b=b)


def make_resblock(kg, cin, cout, activation, bn):
    p = dict(conv1=make_convbr(kg, cin, cout, 3, bn),
             conv2=make_convbr(kg, cout, cout, 3, bn),
             act=activation)
    p["shortcut"] = make_convbr(kg, cin, cout, 1, bn) if cin != cout else None
    return p


def make_feature_part(c_in, c_out, mode="advanced", activation="relu",
                      bn=False, seed=0):
    kg = KeyGen(seed)
    if mode == "advanced":
        return dict(mode=mode,
                    resblock1=make_resblock(kg, c_in, c_out, activation, bn),
                    resblock2=make_resblock(kg, c_out, c_out, activation, bn))
    return dict(mode=mode,
                resblock1=make_resblock(kg, c_in + 1, c_out, activation, bn),
                resblock2=make_resblock(kg, c_out, c_out // 2, activation, bn),
                resblock3=make_resblock(kg, c_out // 2, c_out, activation, bn))


# ----------------------------------------------------------------------------
# Forward
# ----------------------------------------------------------------------------
def feature_part_forward(params, x, z=None):
    """x (and z in non-advanced mode) are NCHW; output is NCHW float32."""
    N, _, H, W = x.shape

    def to_flat(a):  # cast to bf16 BEFORE the layout transpose (half the bytes)
        return (a.astype(jnp.bfloat16).transpose(0, 2, 3, 1)
                .reshape(a.shape[0], H * W, a.shape[1]))

    if params["mode"] == "advanced":
        out = resblock_apply(to_flat(x), params["resblock1"], H, W)
        out = resblock_apply(out, params["resblock2"], H, W,
                             out_dtype=jnp.float32)
    else:
        xz = jnp.concatenate([to_flat(x), to_flat(z)], axis=-1)
        out = resblock_apply(xz, params["resblock1"], H, W)
        out = resblock_apply(out, params["resblock2"], H, W)
        out = resblock_apply(out, params["resblock3"], H, W,
                             out_dtype=jnp.float32)

    Cout = out.shape[-1]
    return out.reshape(N, H, W, Cout).transpose(0, 3, 1, 2)


# ----------------------------------------------------------------------------
if __name__ == "__main__":
    B, C_IN, C_OUT, H, W = 2, 32, 64, 16, 16

    key = jax.random.PRNGKey(0)
    x = jax.random.normal(key, (B, C_IN, H, W), jnp.float32)

    params = make_feature_part(C_IN, C_OUT, mode="advanced",
                               activation="relu", bn=False, seed=0)
    fwd = jax.jit(lambda a: feature_part_forward(params, a))

    out = jax.block_until_ready(fwd(x))

    assert out.shape == (B, C_OUT, H, W), out.shape
    assert bool(jnp.all(jnp.isfinite(out)))
    print("KERNEL_OK")
</pallas_src>

<mosaic_0001>
module attributes {stable_mosaic.version = 11 : i64} {
  func.func @_resblock_kernel(%arg0: i32, %arg1: memref<1x256x64xbf16, #tpu.memory_space<vmem>>, %arg2: memref<576x64xbf16, #tpu.memory_space<vmem>>, %arg3: memref<1x64xf32, #tpu.memory_space<vmem>>, %arg4: memref<576x64xbf16, #tpu.memory_space<vmem>>, %arg5: memref<1x64xf32, #tpu.memory_space<vmem>>, %arg6: memref<1x256x64xf32, #tpu.memory_space<vmem>>) attributes {dimension_semantics = [#tpu.dimension_semantics<parallel>], iteration_bounds = array<i64: 2>, scalar_prefetch = 0 : i64, scratch_operands = 0 : i64, tpu.core_type = #tpu.core_type<tc>, window_params = [{transform_indices = @transform_0, window_bounds = array<i64: 1, 256, 64>}, {pipeline_mode = #tpu.pipeline_mode<synchronous>, transform_indices = @transform_1, window_bounds = array<i64: 576, 64>}, {pipeline_mode = #tpu.pipeline_mode<synchronous>, transform_indices = @transform_2, window_bounds = array<i64: 1, 64>}, {pipeline_mode = #tpu.pipeline_mode<synchronous>, transform_indices = @transform_3, window_bounds = array<i64: 576, 64>}, {pipeline_mode = #tpu.pipeline_mode<synchronous>, transform_indices = @transform_4, window_bounds = array<i64: 1, 64>}, {transform_indices = @transform_5, window_bounds = array<i64: 1, 256, 64>}]} {
    %c0 = arith.constant 0 : index
    %c0_0 = arith.constant 0 : index
    %c0_1 = arith.constant 0 : index
    %0 = vector.load %arg1[%c0, %c0_0, %c0_1] : memref<1x256x64xbf16, #tpu.memory_space<vmem>>, vector<1x256x64xbf16>
    %1 = vector.shape_cast %0 : vector<1x256x64xbf16> to vector<256x64xbf16>
    %2 = vector.shape_cast %1 : vector<256x64xbf16> to vector<16x16x64xbf16>
    %cst = arith.constant 0.000000e+00 : bf16
    %3 = vector.broadcast %cst : bf16 to vector<16x1x64xbf16>
    %4 = tpu.concatenate %3, %2, %3 in 1 : vector<16x1x64xbf16>, vector<16x16x64xbf16>, vector<16x1x64xbf16> -> vector<16x18x64xbf16>
    %cst_2 = arith.constant 0.000000e+00 : bf16
    %5 = vector.broadcast %cst_2 : bf16 to vector<1x18x64xbf16>
    %6 = tpu.concatenate %5, %4, %5 in 0 : vector<1x18x64xbf16>, vector<16x18x64xbf16>, vector<1x18x64xbf16> -> vector<18x18x64xbf16>
    %7 = vector.extract_strided_slice %6 {offsets = [0, 0, 0], sizes = [16, 16, 64], strides = [1, 1, 1]} : vector<18x18x64xbf16> to vector<16x16x64xbf16>
    %8 = vector.extract_strided_slice %6 {offsets = [0, 1, 0], sizes = [16, 16, 64], strides = [1, 1, 1]} : vector<18x18x64xbf16> to vector<16x16x64xbf16>
    %9 = vector.extract_strided_slice %6 {offsets = [0, 2, 0], sizes = [16, 16, 64], strides = [1, 1, 1]} : vector<18x18x64xbf16> to vector<16x16x64xbf16>
    %10 = vector.extract_strided_slice %6 {offsets = [1, 0, 0], sizes = [16, 16, 64], strides = [1, 1, 1]} : vector<18x18x64xbf16> to vector<16x16x64xbf16>
    %11 = vector.extract_strided_slice %6 {offsets = [1, 1, 0], sizes = [16, 16, 64], strides = [1, 1, 1]} : vector<18x18x64xbf16> to vector<16x16x64xbf16>
    %12 = vector.extract_strided_slice %6 {offsets = [1, 2, 0], sizes = [16, 16, 64], strides = [1, 1, 1]} : vector<18x18x64xbf16> to vector<16x16x64xbf16>
    %13 = vector.extract_strided_slice %6 {offsets = [2, 0, 0], sizes = [16, 16, 64], strides = [1, 1, 1]} : vector<18x18x64xbf16> to vector<16x16x64xbf16>
    %14 = vector.extract_strided_slice %6 {offsets = [2, 1, 0], sizes = [16, 16, 64], strides = [1, 1, 1]} : vector<18x18x64xbf16> to vector<16x16x64xbf16>
    %15 = vector.extract_strided_slice %6 {offsets = [2, 2, 0], sizes = [16, 16, 64], strides = [1, 1, 1]} : vector<18x18x64xbf16> to vector<16x16x64xbf16>
    %16 = tpu.concatenate %7, %8, %9, %10, %11, %12, %13, %14, %15 in 2 : vector<16x16x64xbf16>, vector<16x16x64xbf16>, vector<16x16x64xbf16>, vector<16x16x64xbf16>, vector<16x16x64xbf16>, vector<16x16x64xbf16>, vector<16x16x64xbf16>, vector<16x16x64xbf16>, vector<16x16x64xbf16> -> vector<16x16x576xbf16>
    %17 = vector.shape_cast %16 : vector<16x16x576xbf16> to vector<256x576xbf16>
    %c0_3 = arith.constant 0 : index
    %c0_4 = arith.constant 0 : index
    %18 = vector.load %arg2[%c0_3, %c0_4] : memref<576x64xbf16, #tpu.memory_space<vmem>>, vector<576x64xbf16>
    %cst_5 = arith.constant dense<0.000000e+00> : vector<256x64xf32>
    %19 = tpu.matmul %17, %18, %cst_5 {dimension_numbers = #tpu.dot_dimension_numbers<[1], [0], [0], [1], [0, 0, 1, 1], [], []>} : vector<256x576xbf16>, vector<576x64xbf16>, vector<256x64xf32> -> vector<256x64xf32>
    %c0_6 = arith.constant 0 : index
    %c0_7 = arith.constant 0 : index
    %20 = vector.load %arg3[%c0_6, %c0_7] : memref<1x64xf32, #tpu.memory_space<vmem>>, vector<1x64xf32>
    %21 = vector.broadcast %20 : vector<1x64xf32> to vector<256x64xf32>
    %22 = arith.addf %19, %21 : vector<256x64xf32>
    %cst_8 = arith.constant 0.000000e+00 : f32
    %23 = vector.broadcast %cst_8 : f32 to vector<256x64xf32>
    %24 = arith.maximumf %22, %23 : vector<256x64xf32>
    %25 = vector.shape_cast %24 : vector<256x64xf32> to vector<16x16x64xf32>
    %26 = arith.truncf %25 : vector<16x16x64xf32> to vector<16x16x64xbf16>
    %cst_9 = arith.constant 0.000000e+00 : bf16
    %27 = vector.broadcast %cst_9 : bf16 to vector<16x1x64xbf16>
    %28 = tpu.concatenate %27, %26, %27 in 1 : vector<16x1x64xbf16>, vector<16x16x64xbf16>, vector<16x1x64xbf16> -> vector<16x18x64xbf16>
    %cst_10 = arith.constant 0.000000e+00 : bf16
    %29 = vector.broadcast %cst_10 : bf16 to vector<1x18x64xbf16>
    %30 = tpu.concatenate %29, %28, %29 in 0 : vector<1x18x64xbf16>, vector<16x18x64xbf16>, vector<1x18x64xbf16> -> vector<18x18x64xbf16>
    %31 = vector.extract_strided_slice %30 {offsets = [0, 0, 0], sizes = [16, 16, 64], strides = [1, 1, 1]} : vector<18x18x64xbf16> to vector<16x16x64xbf16>
    %32 = vector.extract_strided_slice %30 {offsets = [0, 1, 0], sizes = [16, 16, 64], strides = [1, 1, 1]} : vector<18x18x64xbf16> to vector<16x16x64xbf16>
    %33 = vector.extract_strided_slice %30 {offsets = [0, 2, 0], sizes = [16, 16, 64], strides = [1, 1, 1]} : vector<18x18x64xbf16> to vector<16x16x64xbf16>
    %34 = vector.extract_strided_slice %30 {offsets = [1, 0, 0], sizes = [16, 16, 64], strides = [1, 1, 1]} : vector<18x18x64xbf16> to vector<16x16x64xbf16>
    %35 = vector.extract_strided_slice %30 {offsets = [1, 1, 0], sizes = [16, 16, 64], strides = [1, 1, 1]} : vector<18x18x64xbf16> to vector<16x16x64xbf16>
    %36 = vector.extract_strided_slice %30 {offsets = [1, 2, 0], sizes = [16, 16, 64], strides = [1, 1, 1]} : vector<18x18x64xbf16> to vector<16x16x64xbf16>
    %37 = vector.extract_strided_slice %30 {offsets = [2, 0, 0], sizes = [16, 16, 64], strides = [1, 1, 1]} : vector<18x18x64xbf16> to vector<16x16x64xbf16>
    %38 = vector.extract_strided_slice %30 {offsets = [2, 1, 0], sizes = [16, 16, 64], strides = [1, 1, 1]} : vector<18x18x64xbf16> to vector<16x16x64xbf16>
    %39 = vector.extract_strided_slice %30 {offsets = [2, 2, 0], sizes = [16, 16, 64], strides = [1, 1, 1]} : vector<18x18x64xbf16> to vector<16x16x64xbf16>
    %40 = tpu.concatenate %31, %32, %33, %34, %35, %36, %37, %38, %39 in 2 : vector<16x16x64xbf16>, vector<16x16x64xbf16>, vector<16x16x64xbf16>, vector<16x16x64xbf16>, vector<16x16x64xbf16>, vector<16x16x64xbf16>, vector<16x16x64xbf16>, vector<16x16x64xbf16>, vector<16x16x64xbf16> -> vector<16x16x576xbf16>
    %41 = vector.shape_cast %40 : vector<16x16x576xbf16> to vector<256x576xbf16>
    %c0_11 = arith.constant 0 : index
    %c0_12 = arith.constant 0 : index
    %42 = vector.load %arg4[%c0_11, %c0_12] : memref<576x64xbf16, #tpu.memory_space<vmem>>, vector<576x64xbf16>
    %cst_13 = arith.constant dense<0.000000e+00> : vector<256x64xf32>
    %43 = tpu.matmul %41, %42, %cst_13 {dimension_numbers = #tpu.dot_dimension_numbers<[1], [0], [0], [1], [0, 0, 1, 1], [], []>} : vector<256x576xbf16>, vector<576x64xbf16>, vector<256x64xf32> -> vector<256x64xf32>
    %c0_14 = arith.constant 0 : index
    %c0_15 = arith.constant 0 : index
    %44 = vector.load %arg5[%c0_14, %c0_15] : memref<1x64xf32, #tpu.memory_space<vmem>>, vector<1x64xf32>
    %45 = vector.broadcast %44 : vector<1x64xf32> to vector<256x64xf32>
    %46 = arith.addf %43, %45 : vector<256x64xf32>
    %47 = arith.extf %1 : vector<256x64xbf16> to vector<256x64xf32>
    %48 = arith.addf %46, %47 : vector<256x64xf32>
    %cst_16 = arith.constant 0.000000e+00 : f32
    %49 = vector.broadcast %cst_16 : f32 to vector<256x64xf32>
    %50 = arith.maximumf %48, %49 : vector<256x64xf32>
    %c0_17 = arith.constant 0 : index
    %c0_18 = arith.constant 0 : index
    %c0_19 = arith.constant 0 : index
    %51 = vector.load %arg6[%c0_17, %c0_18, %c0_19] : memref<1x256x64xf32, #tpu.memory_space<vmem>>, vector<1x256x64xf32>
    %52 = vector.shape_cast %51 : vector<1x256x64xf32> to vector<256x64xf32>
    %53 = vector.shape_cast %50 : vector<256x64xf32> to vector<1x256x64xf32>
    tpu.vector_store %arg6[%c0_17, %c0_18, %c0_19], %53 {strides = array<i32>} : memref<1x256x64xf32, #tpu.memory_space<vmem>>, vector<1x256x64xf32>,
    return
  }
  func.func @transform_0(%arg0: i32) -> (i32, i32, i32) {
    %c0_i32 = arith.constant 0 : i32
    %c0_i32_0 = arith.constant 0 : i32
    %c0_i32_1 = arith.constant 0 : i32
    return %arg0, %c0_i32, %c0_i32_0 : i32, i32, i32
  }
  func.func @transform_1(%arg0: i32) -> (i32, i32) {
    %c0_i32 = arith.constant 0 : i32
    %c0_i32_0 = arith.constant 0 : i32
    %c0_i32_1 = arith.constant 0 : i32
    return %c0_i32, %c0_i32_0 : i32, i32
  }
  func.func @transform_2(%arg0: i32) -> (i32, i32) {
    %c0_i32 = arith.constant 0 : i32
    %c0_i32_0 = arith.constant 0 : i32
    %c0_i32_1 = arith.constant 0 : i32
    return %c0_i32, %c0_i32_0 : i32, i32
  }
  func.func @transform_3(%arg0: i32) -> (i32, i32) {
    %c0_i32 = arith.constant 0 : i32
    %c0_i32_0 = arith.constant 0 : i32
    %c0_i32_1 = arith.constant 0 : i32
    return %c0_i32, %c0_i32_0 : i32, i32
  }
  func.func @transform_4(%arg0: i32) -> (i32, i32) {
    %c0_i32 = arith.constant 0 : i32
    %c0_i32_0 = arith.constant 0 : i32
    %c0_i32_1 = arith.constant 0 : i32
    return %c0_i32, %c0_i32_0 : i32, i32
  }
  func.func @transform_5(%arg0: i32) -> (i32, i32, i32) {
    %c0_i32 = arith.constant 0 : i32
    %c0_i32_0 = arith.constant 0 : i32
    %c0_i32_1 = arith.constant 0 : i32
    return %arg0, %c0_i32, %c0_i32_0 : i32, i32, i32
  }
}

module attributes {stable_mosaic.version = 11 : i64} {
  func.func @_resblock_kernel(%arg0: i32, %arg1: memref<1x256x32xbf16, #tpu.memory_space<vmem>>, %arg2: memref<288x64xbf16, #tpu.memory_space<vmem>>, %arg3: memref<1x64xf32, #tpu.memory_space<vmem>>, %arg4: memref<576x64xbf16, #tpu.memory_space<vmem>>, %arg5: memref<1x64xf32, #tpu.memory_space<vmem>>, %arg6: memref<32x64xbf16, #tpu.memory_space<vmem>>, %arg7: memref<1x64xf32, #tpu.memory_space<vmem>>, %arg8: memref<1x256x64xbf16, #tpu.memory_space<vmem>>) attributes {dimension_semantics = [#tpu.dimension_semantics<parallel>], iteration_bounds = array<i64: 2>, scalar_prefetch = 0 : i64, scratch_operands = 0 : i64, tpu.core_type = #tpu.core_type<tc>, window_params = [{transform_indices = @transform_0, window_bounds = array<i64: 1, 256, 32>}, {pipeline_mode = #tpu.pipeline_mode<synchronous>, transform_indices = @transform_1, window_bounds = array<i64: 288, 64>}, {pipeline_mode = #tpu.pipeline_mode<synchronous>, transform_indices = @transform_2, window_bounds = array<i64: 1, 64>}, {pipeline_mode = #tpu.pipeline_mode<synchronous>, transform_indices = @transform_3, window_bounds = array<i64: 576, 64>}, {pipeline_mode = #tpu.pipeline_mode<synchronous>, transform_indices = @transform_4, window_bounds = array<i64: 1, 64>}, {pipeline_mode = #tpu.pipeline_mode<synchronous>, transform_indices = @transform_5, window_bounds = array<i64: 32, 64>}, {pipeline_mode = #tpu.pipeline_mode<synchronous>, transform_indices = @transform_6, window_bounds = array<i64: 1, 64>}, {transform_indices = @transform_7, window_bounds = array<i64: 1, 256, 64>}]} {
    %c0 = arith.constant 0 : index
    %c0_0 = arith.constant 0 : index
    %c0_1 = arith.constant 0 : index
    %0 = vector.load %arg1[%c0, %c0_0, %c0_1] : memref<1x256x32xbf16, #tpu.memory_space<vmem>>, vector<1x256x32xbf16>
    %1 = vector.shape_cast %0 : vector<1x256x32xbf16> to vector<256x32xbf16>
    %2 = vector.shape_cast %1 : vector<256x32xbf16> to vector<16x16x32xbf16>
    %cst = arith.constant 0.000000e+00 : bf16
    %3 = vector.broadcast %cst : bf16 to vector<16x1x32xbf16>
    %4 = tpu.concatenate %3, %2, %3 in 1 : vector<16x1x32xbf16>, vector<16x16x32xbf16>, vector<16x1x32xbf16> -> vector<16x18x32xbf16>
    %cst_2 = arith.constant 0.000000e+00 : bf16
    %5 = vector.broadcast %cst_2 : bf16 to vector<1x18x32xbf16>
    %6 = tpu.concatenate %5, %4, %5 in 0 : vector<1x18x32xbf16>, vector<16x18x32xbf16>, vector<1x18x32xbf16> -> vector<18x18x32xbf16>
    %7 = vector.extract_strided_slice %6 {offsets = [0, 0, 0], sizes = [16, 16, 32], strides = [1, 1, 1]} : vector<18x18x32xbf16> to vector<16x16x32xbf16>
    %8 = vector.extract_strided_slice %6 {offsets = [0, 1, 0], sizes = [16, 16, 32], strides = [1, 1, 1]} : vector<18x18x32xbf16> to vector<16x16x32xbf16>
    %9 = vector.extract_strided_slice %6 {offsets = [0, 2, 0], sizes = [16, 16, 32], strides = [1, 1, 1]} : vector<18x18x32xbf16> to vector<16x16x32xbf16>
    %10 = vector.extract_strided_slice %6 {offsets = [1, 0, 0], sizes = [16, 16, 32], strides = [1, 1, 1]} : vector<18x18x32xbf16> to vector<16x16x32xbf16>
    %11 = vector.extract_strided_slice %6 {offsets = [1, 1, 0], sizes = [16, 16, 32], strides = [1, 1, 1]} : vector<18x18x32xbf16> to vector<16x16x32xbf16>
    %12 = vector.extract_strided_slice %6 {offsets = [1, 2, 0], sizes = [16, 16, 32], strides = [1, 1, 1]} : vector<18x18x32xbf16> to vector<16x16x32xbf16>
    %13 = vector.extract_strided_slice %6 {offsets = [2, 0, 0], sizes = [16, 16, 32], strides = [1, 1, 1]} : vector<18x18x32xbf16> to vector<16x16x32xbf16>
    %14 = vector.extract_strided_slice %6 {offsets = [2, 1, 0], sizes = [16, 16, 32], strides = [1, 1, 1]} : vector<18x18x32xbf16> to vector<16x16x32xbf16>
    %15 = vector.extract_strided_slice %6 {offsets = [2, 2, 0], sizes = [16, 16, 32], strides = [1, 1, 1]} : vector<18x18x32xbf16> to vector<16x16x32xbf16>
    %16 = tpu.concatenate %7, %8, %9, %10, %11, %12, %13, %14, %15 in 2 : vector<16x16x32xbf16>, vector<16x16x32xbf16>, vector<16x16x32xbf16>, vector<16x16x32xbf16>, vector<16x16x32xbf16>, vector<16x16x32xbf16>, vector<16x16x32xbf16>, vector<16x16x32xbf16>, vector<16x16x32xbf16> -> vector<16x16x288xbf16>
    %17 = vector.shape_cast %16 : vector<16x16x288xbf16> to vector<256x288xbf16>
    %c0_3 = arith.constant 0 : index
    %c0_4 = arith.constant 0 : index
    %18 = vector.load %arg2[%c0_3, %c0_4] : memref<288x64xbf16, #tpu.memory_space<vmem>>, vector<288x64xbf16>
    %cst_5 = arith.constant dense<0.000000e+00> : vector<256x64xf32>
    %19 = tpu.matmul %17, %18, %cst_5 {dimension_numbers = #tpu.dot_dimension_numbers<[1], [0], [0], [1], [0, 0, 1, 1], [], []>} : vector<256x288xbf16>, vector<288x64xbf16>, vector<256x64xf32> -> vector<256x64xf32>
    %c0_6 = arith.constant 0 : index
    %c0_7 = arith.constant 0 : index
    %20 = vector.load %arg3[%c0_6, %c0_7] : memref<1x64xf32, #tpu.memory_space<vmem>>, vector<1x64xf32>
    %21 = vector.broadcast %20 : vector<1x64xf32> to vector<256x64xf32>
    %22 = arith.addf %19, %21 : vector<256x64xf32>
    %cst_8 = arith.constant 0.000000e+00 : f32
    %23 = vector.broadcast %cst_8 : f32 to vector<256x64xf32>
    %24 = arith.maximumf %22, %23 : vector<256x64xf32>
    %25 = vector.shape_cast %24 : vector<256x64xf32> to vector<16x16x64xf32>
    %26 = arith.truncf %25 : vector<16x16x64xf32> to vector<16x16x64xbf16>
    %cst_9 = arith.constant 0.000000e+00 : bf16
    %27 = vector.broadcast %cst_9 : bf16 to vector<16x1x64xbf16>
    %28 = tpu.concatenate %27, %26, %27 in 1 : vector<16x1x64xbf16>, vector<16x16x64xbf16>, vector<16x1x64xbf16> -> vector<16x18x64xbf16>
    %cst_10 = arith.constant 0.000000e+00 : bf16
    %29 = vector.broadcast %cst_10 : bf16 to vector<1x18x64xbf16>
    %30 = tpu.concatenate %29, %28, %29 in 0 : vector<1x18x64xbf16>, vector<16x18x64xbf16>, vector<1x18x64xbf16> -> vector<18x18x64xbf16>
    %31 = vector.extract_strided_slice %30 {offsets = [0, 0, 0], sizes = [16, 16, 64], strides = [1, 1, 1]} : vector<18x18x64xbf16> to vector<16x16x64xbf16>
    %32 = vector.extract_strided_slice %30 {offsets = [0, 1, 0], sizes = [16, 16, 64], strides = [1, 1, 1]} : vector<18x18x64xbf16> to vector<16x16x64xbf16>
    %33 = vector.extract_strided_slice %30 {offsets = [0, 2, 0], sizes = [16, 16, 64], strides = [1, 1, 1]} : vector<18x18x64xbf16> to vector<16x16x64xbf16>
    %34 = vector.extract_strided_slice %30 {offsets = [1, 0, 0], sizes = [16, 16, 64], strides = [1, 1, 1]} : vector<18x18x64xbf16> to vector<16x16x64xbf16>
    %35 = vector.extract_strided_slice %30 {offsets = [1, 1, 0], sizes = [16, 16, 64], strides = [1, 1, 1]} : vector<18x18x64xbf16> to vector<16x16x64xbf16>
    %36 = vector.extract_strided_slice %30 {offsets = [1, 2, 0], sizes = [16, 16, 64], strides = [1, 1, 1]} : vector<18x18x64xbf16> to vector<16x16x64xbf16>
    %37 = vector.extract_strided_slice %30 {offsets = [2, 0, 0], sizes = [16, 16, 64], strides = [1, 1, 1]} : vector<18x18x64xbf16> to vector<16x16x64xbf16>
    %38 = vector.extract_strided_slice %30 {offsets = [2, 1, 0], sizes = [16, 16, 64], strides = [1, 1, 1]} : vector<18x18x64xbf16> to vector<16x16x64xbf16>
    %39 = vector.extract_strided_slice %30 {offsets = [2, 2, 0], sizes = [16, 16, 64], strides = [1, 1, 1]} : vector<18x18x64xbf16> to vector<16x16x64xbf16>
    %40 = tpu.concatenate %31, %32, %33, %34, %35, %36, %37, %38, %39 in 2 : vector<16x16x64xbf16>, vector<16x16x64xbf16>, vector<16x16x64xbf16>, vector<16x16x64xbf16>, vector<16x16x64xbf16>, vector<16x16x64xbf16>, vector<16x16x64xbf16>, vector<16x16x64xbf16>, vector<16x16x64xbf16> -> vector<16x16x576xbf16>
    %41 = vector.shape_cast %40 : vector<16x16x576xbf16> to vector<256x576xbf16>
    %c0_11 = arith.constant 0 : index
    %c0_12 = arith.constant 0 : index
    %42 = vector.load %arg4[%c0_11, %c0_12] : memref<576x64xbf16, #tpu.memory_space<vmem>>, vector<576x64xbf16>
    %cst_13 = arith.constant dense<0.000000e+00> : vector<256x64xf32>
    %43 = tpu.matmul %41, %42, %cst_13 {dimension_numbers = #tpu.dot_dimension_numbers<[1], [0], [0], [1], [0, 0, 1, 1], [], []>} : vector<256x576xbf16>, vector<576x64xbf16>, vector<256x64xf32> -> vector<256x64xf32>
    %c0_14 = arith.constant 0 : index
    %c0_15 = arith.constant 0 : index
    %44 = vector.load %arg5[%c0_14, %c0_15] : memref<1x64xf32, #tpu.memory_space<vmem>>, vector<1x64xf32>
    %45 = vector.broadcast %44 : vector<1x64xf32> to vector<256x64xf32>
    %46 = arith.addf %43, %45 : vector<256x64xf32>
    %c0_16 = arith.constant 0 : index
    %c0_17 = arith.constant 0 : index
    %47 = vector.load %arg6[%c0_16, %c0_17] : memref<32x64xbf16, #tpu.memory_space<vmem>>, vector<32x64xbf16>
    %cst_18 = arith.constant dense<0.000000e+00> : vector<256x64xf32>
    %48 = tpu.matmul %1, %47, %cst_18 {dimension_numbers = #tpu.dot_dimension_numbers<[1], [0], [0], [1], [0, 0, 1, 1], [], []>} : vector<256x32xbf16>, vector<32x64xbf16>, vector<256x64xf32> -> vector<256x64xf32>
    %c0_19 = arith.constant 0 : index
    %c0_20 = arith.constant 0 : index
    %49 = vector.load %arg7[%c0_19, %c0_20] : memref<1x64xf32, #tpu.memory_space<vmem>>, vector<1x64xf32>
    %50 = vector.broadcast %49 : vector<1x64xf32> to vector<256x64xf32>
    %51 = arith.addf %48, %50 : vector<256x64xf32>
    %52 = arith.addf %46, %51 : vector<256x64xf32>
    %cst_21 = arith.constant 0.000000e+00 : f32
    %53 = vector.broadcast %cst_21 : f32 to vector<256x64xf32>
    %54 = arith.maximumf %52, %53 : vector<256x64xf32>
    %55 = arith.truncf %54 : vector<256x64xf32> to vector<256x64xbf16>
    %c0_22 = arith.constant 0 : index
    %c0_23 = arith.constant 0 : index
    %c0_24 = arith.constant 0 : index
    %56 = vector.load %arg8[%c0_22, %c0_23, %c0_24] : memref<1x256x64xbf16, #tpu.memory_space<vmem>>, vector<1x256x64xbf16>
    %57 = vector.shape_cast %56 : vector<1x256x64xbf16> to vector<256x64xbf16>
    %58 = vector.shape_cast %55 : vector<256x64xbf16> to vector<1x256x64xbf16>
    tpu.vector_store %arg8[%c0_22, %c0_23, %c0_24], %58 {strides = array<i32>} : memref<1x256x64xbf16, #tpu.memory_space<vmem>>, vector<1x256x64xbf16>,
    return
  }
  func.func @transform_0(%arg0: i32) -> (i32, i32, i32) {
    %c0_i32 = arith.constant 0 : i32
    %c0_i32_0 = arith.constant 0 : i32
    %c0_i32_1 = arith.constant 0 : i32
    return %arg0, %c0_i32, %c0_i32_0 : i32, i32, i32
  }
  func.func @transform_1(%arg0: i32) -> (i32, i32) {
    %c0_i32 = arith.constant 0 : i32
    %c0_i32_0 = arith.constant 0 : i32
    %c0_i32_1 = arith.constant 0 : i32
    return %c0_i32, %c0_i32_0 : i32, i32
  }
  func.func @transform_2(%arg0: i32) -> (i32, i32) {
    %c0_i32 = arith.constant 0 : i32
    %c0_i32_0 = arith.constant 0 : i32
    %c0_i32_1 = arith.constant 0 : i32
    return %c0_i32, %c0_i32_0 : i32, i32
  }
  func.func @transform_3(%arg0: i32) -> (i32, i32) {
    %c0_i32 = arith.constant 0 : i32
    %c0_i32_0 = arith.constant 0 : i32
    %c0_i32_1 = arith.constant 0 : i32
    return %c0_i32, %c0_i32_0 : i32, i32
  }
  func.func @transform_4(%arg0: i32) -> (i32, i32) {
    %c0_i32 = arith.constant 0 : i32
    %c0_i32_0 = arith.constant 0 : i32
    %c0_i32_1 = arith.constant 0 : i32
    return %c0_i32, %c0_i32_0 : i32, i32
  }
  func.func @transform_5(%arg0: i32) -> (i32, i32) {
    %c0_i32 = arith.constant 0 : i32
    %c0_i32_0 = arith.constant 0 : i32
    %c0_i32_1 = arith.constant 0 : i32
    return %c0_i32, %c0_i32_0 : i32, i32
  }
  func.func @transform_6(%arg0: i32) -> (i32, i32) {
    %c0_i32 = arith.constant 0 : i32
    %c0_i32_0 = arith.constant 0 : i32
    %c0_i32_1 = arith.constant 0 : i32
    return %c0_i32, %c0_i32_0 : i32, i32
  }
  func.func @transform_7(%arg0: i32) -> (i32, i32, i32) {
    %c0_i32 = arith.constant 0 : i32
    %c0_i32_0 = arith.constant 0 : i32
    %c0_i32_1 = arith.constant 0 : i32
    return %arg0, %c0_i32, %c0_i32_0 : i32, i32, i32
  }
}

</mosaic_0001>

<llo_original>
// kernel: _lambda_.3
$region0: #{_lambda_.3}
  #allocation0 [shape = 'u32[]', space=smem, size = 0x4, offset = 0x4, fixed_abs, tag = 'smem constant byte address 0x4 - core index']
  #allocation1 [shape = 'u32[144,128]{1,0:T(1,128)}', space=vmem, size = 0x12000, scoped, tag = 'internal scratch']
  %s0 = inlined_call_operand.vmem [shape: bf16[2,256,64], index: 0, kind: input, shape index: {}]
  %s1 = inlined_call_operand.vmem [shape: bf16[576,64], index: 1, kind: input, shape index: {}]
  %s2 = inlined_call_operand.vmem [shape: f32[1,64], index: 2, kind: input, shape index: {}, may-alias: {2,4}]
  %s3 = inlined_call_operand.vmem [shape: bf16[576,64], index: 3, kind: input, shape index: {}]
  %s4 = inlined_call_operand.vmem [shape: f32[1,64], index: 4, kind: input, shape index: {}, may-alias: {2,4}]
  %s5 = inlined_call_operand.hbm [shape: f32[2,256,64], index: 5, kind: output, shape index: {}]
  %s6 = sld [smem:[#allocation0]]
  $region53: #{_lambda_.3} parent=0
    _
  %s8 = ssub.s32 1, %s6
  %s9 = scalar_select 0, %s8, %s6
  $region1: #{_lambda_.3} parent=0
    #allocation2 [shape = 'u8[262144]{0}', space=vmem, size = 0x40000, scoped, tag = 'output window, operand 0']
    #allocation3 [shape = 's32[2]{0}', space=sflag, size = 0x8, scoped, tag = 'scoped memory for _lambda_.3']
    %10 = vsyncpa [#allocation3], 0
    %s11 = scalar_lea.sflag [#allocation3], 1
    %12 = vsyncpa %s11, 0
    loop: start=0, step=1, limit=4
    $region2: #{_lambda_.3} parent=1 // loop_pre_header
      _
    $region3: #{_lambda_.3} parent=1 // loop_header
      %s14 = sphi 0, %s18
      %p15 = scmp.ge.s32.totalorder %s14, 4
      %s24 = sphi 0, %s26
      %s27 = sphi 0, %s24
      %s28 = sphi 0, %s27
      %s44 = sphi 0, %s28
      %s48 = sphi 0, %s48
      %s50 = sphi 0, %s48
      %s51 = sphi 0, %s50
      %s65 = sphi 0, %s51
      %s69 = sphi 0, %s69
      %s71 = sphi 0, %s69
      %s72 = sphi 0, %s71
      %s86 = sphi 0, %s72
      %s90 = sphi 0, %s90
      %s92 = sphi 0, %s90
      %s93 = sphi 0, %s92
      %s107 = sphi 0, %s93
      %s111 = sphi 0, %s111
      %s113 = sphi 0, %s111
      %s114 = sphi 0, %s113
      %s128 = sphi 0, %s114
      %s134 = sphi 0, %s136
      %s137 = sphi 0, %s134
      %s138 = sphi 0, %s137
      %s154 = sphi 0, %s138
    $region4: #{_lambda_.3} parent=1 // loop_header_branch
      %17 = sbr.rel (%p15) target = $region8
    $region5: #{_lambda_.3} parent=1 // loop_body
      %s19 = ssub.s32 %s14, 1
      %s20 = ssub.s32 %s14, 2
      %s21 = sadd.s32 %s14, 1
      %s22 = ssub.s32 %s14, %s21
      %p23 = scmp.eq.s32.totalorder %s22, 0
      %s25 = sadd.s32 %s24, 1
      %s26 = scalar_select %p23, %s24, %s25
      %p29 = pneg %p23
      %p30 = scmp.eq.s32.totalorder %s14, 1
      %p31 = por %p29, %p30
      %p32 = scmp.ne.s32.totalorder %s24, %s27
      %p33 = scmp.eq.s32.totalorder %s14, 0
      %p34 = por %p32, %p33
      %p35 = scmp.ne.s32.totalorder %s24, %s27
      %p36 = scmp.eq.s32.totalorder %s19, 1
      %p37 = por %p35, %p36
      %p38 = scmp.ne.s32.totalorder %s27, %s28
      %p39 = scmp.eq.s32.totalorder %s19, 0
      %p40 = por %p38, %p39
      %p41 = scmp.ne.s32.totalorder %s27, %s28
      %p42 = scmp.eq.s32.totalorder %s20, 1
      %p43 = por %p41, %p42
      %p45 = scmp.ne.s32.totalorder %s28, %s44
      %p46 = scmp.eq.s32.totalorder %s20, 0
      %p47 = por %p45, %p46
      %s49 = sadd.s32 %s48, 1
      %p52 = scmp.eq.s32.totalorder %s14, 1
      %p53 = scmp.ne.s32.totalorder %s48, %s50
      %p54 = scmp.eq.s32.totalorder %s14, 0
      %p55 = por %p53, %p54
      %p56 = scmp.ne.s32.totalorder %s48, %s50
      %p57 = scmp.eq.s32.totalorder %s19, 1
      %p58 = por %p56, %p57
      %p59 = scmp.ne.s32.totalorder %s50, %s51
      %p60 = scmp.eq.s32.totalorder %s19, 0
      %p61 = por %p59, %p60
      %p62 = scmp.ne.s32.totalorder %s50, %s51
      %p63 = scmp.eq.s32.totalorder %s20, 1
      %p64 = por %p62, %p63
      %p66 = scmp.ne.s32.totalorder %s51, %s65
      %p67 = scmp.eq.s32.totalorder %s20, 0
      %p68 = por %p66, %p67
      %s70 = sadd.s32 %s69, 1
      %p73 = scmp.eq.s32.totalorder %s14, 1
      %p74 = scmp.ne.s32.totalorder %s69, %s71
      %p75 = scmp.eq.s32.totalorder %s14, 0
      %p76 = por %p74, %p75
      %p77 = scmp.ne.s32.totalorder %s69, %s71
      %p78 = scmp.eq.s32.totalorder %s19, 1
      %p79 = por %p77, %p78
      %p80 = scmp.ne.s32.totalorder %s71, %s72
      %p81 = scmp.eq.s32.totalorder %s19, 0
      %p82 = por %p80, %p81
      %p83 = scmp.ne.s32.totalorder %s71, %s72
      %p84 = scmp.eq.s32.totalorder %s20, 1
      %p85 = por %p83, %p84
      %p87 = scmp.ne.s32.totalorder %s72, %s86
      %p88 = scmp.eq.s32.totalorder %s20, 0
      %p89 = por %p87, %p88
      %s91 = sadd.s32 %s90, 1
      %p94 = scmp.eq.s32.totalorder %s14, 1
      %p95 = scmp.ne.s32.totalorder %s90, %s92
      %p96 = scmp.eq.s32.totalorder %s14, 0
      %p97 = por %p95, %p96
      %p98 = scmp.ne.s32.totalorder %s90, %s92
      %p99 = scmp.eq.s32.totalorder %s19, 1
      %p100 = por %p98, %p99
      %p101 = scmp.ne.s32.totalorder %s92, %s93
      %p102 = scmp.eq.s32.totalorder %s19, 0
      %p103 = por %p101, %p102
      %p104 = scmp.ne.s32.totalorder %s92, %s93
      %p105 = scmp.eq.s32.totalorder %s20, 1
      %p106 = por %p104, %p105
      %p108 = scmp.ne.s32.totalorder %s93, %s107
      %p109 = scmp.eq.s32.totalorder %s20, 0
      %p110 = por %p108, %p109
      %s112 = sadd.s32 %s111, 1
      %p115 = scmp.eq.s32.totalorder %s14, 1
      %p116 = scmp.ne.s32.totalorder %s111, %s113
      %p117 = scmp.eq.s32.totalorder %s14, 0
      %p118 = por %p116, %p117
      %p119 = scmp.ne.s32.totalorder %s111, %s113
      %p120 = scmp.eq.s32.totalorder %s19, 1
      %p121 = por %p119, %p120
      %p122 = scmp.ne.s32.totalorder %s113, %s114
      %p123 = scmp.eq.s32.totalorder %s19, 0
      %p124 = por %p122, %p123
      %p125 = scmp.ne.s32.totalorder %s113, %s114
      %p126 = scmp.eq.s32.totalorder %s20, 1
      %p127 = por %p125, %p126
      %p129 = scmp.ne.s32.totalorder %s114, %s128
      %p130 = scmp.eq.s32.totalorder %s20, 0
      %p131 = por %p129, %p130
      %s132 = ssub.s32 %s14, %s21
      %p133 = scmp.eq.s32.totalorder %s132, 0
      %s135 = sadd.s32 %s134, 1
      %s136 = scalar_select %p133, %s134, %s135
      %p139 = pneg %p133
      %p140 = scmp.eq.s32.totalorder %s14, 1
      %p141 = por %p139, %p140
      %p142 = scmp.ne.s32.totalorder %s134, %s137
      %p143 = scmp.eq.s32.totalorder %s14, 0
      %p144 = por %p142, %p143
      %p145 = scmp.ne.s32.totalorder %s134, %s137
      %p146 = scmp.eq.s32.totalorder %s19, 1
      %p147 = por %p145, %p146
      %p148 = scmp.ne.s32.totalorder %s137, %s138
      %p149 = scmp.eq.s32.totalorder %s19, 0
      %p150 = por %p148, %p149
      %p151 = scmp.ne.s32.totalorder %s137, %s138
      %p152 = scmp.eq.s32.totalorder %s20, 1
      %p153 = por %p151, %p152
      %p155 = scmp.ne.s32.totalorder %s138, %s154
      %p156 = scmp.eq.s32.totalorder %s20, 0
      %p157 = por %p155, %p156
      %p158 = scmp.le.s32.totalorder 1, %s14
      %p159 = scmp.lt.s32.totalorder %s14, 3
      %p160 = pnand %p158, %p159
      %p161 = pneg %p160
      // Predicated region
      $region9: #{_lambda_.3} parent=5 // pred_check
        _
      $region10: #{_lambda_.3} parent=5 // pred_check_branch
        %163 = sbr.rel (%p160) target = $region12
      $region11: #{_lambda_.3} parent=5 // pred_region
        %s164 = ssub.s32 %s14, 1
        // Predicated region
        $region13: #{_lambda_.3} parent=11 // pred_check
          %p165 = pneg %p61
        $region14: #{_lambda_.3} parent=11 // pred_check_branch
          %167 = sbr.rel (%p165) target = $region16
        $region15: #{_lambda_.3} parent=11 // pred_region
          _
        $region16: #{_lambda_.3} parent=11 // pred_fallthru
          _
        // Predicated region
        $region17: #{_lambda_.3} parent=11 // pred_check
          %p168 = pneg %p82
        $region18: #{_lambda_.3} parent=11 // pred_check_branch
          %170 = sbr.rel (%p168) target = $region20
        $region19: #{_lambda_.3} parent=11 // pred_region
          _
        $region20: #{_lambda_.3} parent=11 // pred_fallthru
          _
        // Predicated region
        $region21: #{_lambda_.3} parent=11 // pred_check
          %p171 = pneg %p103
        $region22: #{_lambda_.3} parent=11 // pred_check_branch
          %173 = sbr.rel (%p171) target = $region24
        $region23: #{_lambda_.3} parent=11 // pred_region
          _
        $region24: #{_lambda_.3} parent=11 // pred_fallthru
          _
        // Predicated region
        $region25: #{_lambda_.3} parent=11 // pred_check
          %p174 = pneg %p124
        $region26: #{_lambda_.3} parent=11 // pred_check_branch
          %176 = sbr.rel (%p174) target = $region28
        $region27: #{_lambda_.3} parent=11 // pred_region
          _
        $region28: #{_lambda_.3} parent=11 // pred_fallthru
          _
      $region12: #{_lambda_.3} parent=5 // pred_fallthru
        _
      %p177 = scmp.lt.s32.totalorder %s14, 2
      // Predicated region
      $region29: #{_lambda_.3} parent=5 // pred_check
        %p178 = pneg %p177
      $region30: #{_lambda_.3} parent=5 // pred_check_branch
        %180 = sbr.rel (%p178) target = $region32
      $region31: #{_lambda_.3} parent=5 // pred_region
        // Predicated region
        $region33: #{_lambda_.3} parent=31 // pred_check
          %p181 = pneg %p34
        $region34: #{_lambda_.3} parent=31 // pred_check_branch
          %183 = sbr.rel (%p181) target = $region36
        $region35: #{_lambda_.3} parent=31 // pred_region
          %p184 = scmp.lt.s32.totalorder %s14, 1
          %s185 = scalar_select %p184, %s14, 1
          %s186 = smul.addr %s185, 32
          %s187 = smul.addr %s186, 4
          %s188 = scalar_lea.vmem %s0, %s187
        $region36: #{_lambda_.3} parent=31 // pred_fallthru
          _
      $region32: #{_lambda_.3} parent=5 // pred_fallthru
        _
      %p189 = scmp.le.s32.totalorder 1, %s14
      %p190 = scmp.lt.s32.totalorder %s14, 3
      %p191 = pnand %p189, %p190
      %p192 = pneg %p191
      // Predicated region
      $region37: #{_lambda_.3} parent=5 // pred_check
        _
      $region38: #{_lambda_.3} parent=5 // pred_check_branch
        %194 = sbr.rel (%p191) target = $region40
      $region39: #{_lambda_.3} parent=5 // pred_region
        %s195 = ssub.s32 %s14, 1
        %p196 = scmp.lt.s32.totalorder %s19, 1
        %s197 = scalar_select %p196, %s19, 1
        %s198 = smul.addr %s197, 32
        %s199 = smul.addr %s198, 4
        %s200 = scalar_lea.vmem %s0, %s199
        %p201 = pneg %p40
        %p202 = pneg %p37
        %p203 = pneg %p61
        %p204 = pneg %p58
        %p205 = pneg %p82
        %p206 = pneg %p79
        %p207 = pneg %p103
        %p208 = pneg %p100
        %p209 = pneg %p124
        %p210 = pneg %p121
        %p211 = pneg %p150
        %p212 = pneg %p147
        %s213 = sand.u32 %s137, 1
        %s214 = scalar_lea.sflag [#allocation3], %s213
        %s215 = sand.u32 %s137, 1
        %s216 = smul.addr %s215, 256
        %s217 = scalar_lea.vmem [#allocation2], %s216
        %p218 = scmp.lt.s32.totalorder %s19, 1
        %s219 = scalar_select %p218, %s19, 1
        %s220 = smul.addr %s219, 32
        %s221 = smul.addr %s220, 4
        %s222 = scalar_lea.vmem %s0, %s221
        %v224 = vld [vmem:[%s222] sm:$0xf]
        %v225 = vld [vmem:[%s222 + $0x4] sm:$0xf]
        %v226 = vld [vmem:[%s222 + $0x8] sm:$0xf]
        %v227 = vld [vmem:[%s222 + $0xc] sm:$0xf]
        %v228 = vld [vmem:[%s222 + $0x10] sm:$0xf]
        %v229 = vld [vmem:[%s222 + $0x14] sm:$0xf]
        %v230 = vld [vmem:[%s222 + $0x18] sm:$0xf]
        %v231 = vld [vmem:[%s222 + $0x1c] sm:$0xf]
        %v232 = vld [vmem:[%s222 + $0x20] sm:$0xf]
        %v233 = vld [vmem:[%s222 + $0x24] sm:$0xf]
        %v234 = vld [vmem:[%s222 + $0x28] sm:$0xf]
        %v235 = vld [vmem:[%s222 + $0x2c] sm:$0xf]
        %v236 = vld [vmem:[%s222 + $0x30] sm:$0xf]
        %v237 = vld [vmem:[%s222 + $0x34] sm:$0xf]
        %v238 = vld [vmem:[%s222 + $0x38] sm:$0xf]
        %v239 = vld [vmem:[%s222 + $0x3c] sm:$0xf]
        %v240 = vld [vmem:[%s222 + $0x40] sm:$0xf]
        %v241 = vld [vmem:[%s222 + $0x44] sm:$0xf]
        %v242 = vld [vmem:[%s222 + $0x48] sm:$0xf]
        %v243 = vld [vmem:[%s222 + $0x4c] sm:$0xf]
        %v244 = vld [vmem:[%s222 + $0x50] sm:$0xf]
        %v245 = vld [vmem:[%s222 + $0x54] sm:$0xf]
        %v246 = vld [vmem:[%s222 + $0x58] sm:$0xf]
        %v247 = vld [vmem:[%s222 + $0x5c] sm:$0xf]
        %v248 = vld [vmem:[%s222 + $0x60] sm:$0xf]
        %v249 = vld [vmem:[%s222 + $0x64] sm:$0xf]
        %v250 = vld [vmem:[%s222 + $0x68] sm:$0xf]
        %v251 = vld [vmem:[%s222 + $0x6c] sm:$0xf]
        %v252 = vld [vmem:[%s222 + $0x70] sm:$0xf]
        %v253 = vld [vmem:[%s222 + $0x74] sm:$0xf]
        %v254 = vld [vmem:[%s222 + $0x78] sm:$0xf]
        %v255 = vld [vmem:[%s222 + $0x7c] sm:$0xf]
        %v288 = vunpack.c.l.b16 %v224
        %v289 = vunpack.c.l.b16 %v225
        %v290 = vunpack.c.l.b16 %v226
        %v291 = vunpack.c.l.b16 %v227
        %v292 = vunpack.c.l.b16 %v228
        %v293 = vunpack.c.l.b16 %v229
        %v294 = vunpack.c.l.b16 %v230
        %v295 = vunpack.c.l.b16 %v231
        %v296 = vunpack.c.l.b16 %v232
        %v297 = vunpack.c.l.b16 %v233
        %v298 = vunpack.c.l.b16 %v234
        %v299 = vunpack.c.l.b16 %v235
        %v300 = vunpack.c.l.b16 %v236
        %v301 = vunpack.c.l.b16 %v237
        %v302 = vunpack.c.l.b16 %v238
        %v303 = vunpack.c.l.b16 %v239
        %v304 = vunpack.c.l.b16 %v240
        %v305 = vunpack.c.l.b16 %v241
        %v306 = vunpack.c.l.b16 %v242
        %v307 = vunpack.c.l.b16 %v243
        %v308 = vunpack.c.l.b16 %v244
        %v309 = vunpack.c.l.b16 %v245
        %v310 = vunpack.c.l.b16 %v246
        %v311 = vunpack.c.l.b16 %v247
        %v312 = vunpack.c.l.b16 %v248
        %v313 = vunpack.c.l.b16 %v249
        %v314 = vunpack.c.l.b16 %v250
        %v315 = vunpack.c.l.b16 %v251
        %v316 = vunpack.c.l.b16 %v252
        %v317 = vunpack.c.l.b16 %v253
        %v318 = vunpack.c.l.b16 %v254
        %v319 = vunpack.c.l.b16 %v255
        %v320 = vpack.c.b16 %v289, %v288
        %v321 = vpack.c.b16 %v291, %v290
        %v322 = vpack.c.b16 %v293, %v292
        %v323 = vpack.c.b16 %v295, %v294
        %v324 = vpack.c.b16 %v297, %v296
        %v325 = vpack.c.b16 %v299, %v298
        %v326 = vpack.c.b16 %v301, %v300
        %v327 = vpack.c.b16 %v303, %v302
        %v328 = vpack.c.b16 %v305, %v304
        %v329 = vpack.c.b16 %v307, %v306
        %v330 = vpack.c.b16 %v309, %v308
        %v331 = vpack.c.b16 %v311, %v310
        %v332 = vpack.c.b16 %v313, %v312
        %v333 = vpack.c.b16 %v315, %v314
        %v334 = vpack.c.b16 %v317, %v316
        %v335 = vpack.c.b16 %v319, %v318
        %v337 = vshrl.u32 %v320, 16
        %v339 = vrot.slane %v337, 7
        %v340 = vshll.u32 %v320, 16
        %v342 = vor.u32 %v339, %v340
        %v344 = vshrl.u32 %v321, 16
        %v346 = vrot.slane %v344, 7
        %v347 = vshll.u32 %v321, 16
        %v349 = vor.u32 %v346, %v347
        %v351 = vshrl.u32 %v322, 16
        %v353 = vrot.slane %v351, 7
        %v354 = vshll.u32 %v322, 16
        %v356 = vor.u32 %v353, %v354
        %v358 = vshrl.u32 %v323, 16
        %v360 = vrot.slane %v358, 7
        %v361 = vshll.u32 %v323, 16
        %v363 = vor.u32 %v360, %v361
        %v365 = vshrl.u32 %v324, 16
        %v367 = vrot.slane %v365, 7
        %v368 = vshll.u32 %v324, 16
        %v370 = vor.u32 %v367, %v368
        %v372 = vshrl.u32 %v325, 16
        %v374 = vrot.slane %v372, 7
        %v375 = vshll.u32 %v325, 16
        %v377 = vor.u32 %v374, %v375
        %v379 = vshrl.u32 %v326, 16
        %v381 = vrot.slane %v379, 7
        %v382 = vshll.u32 %v326, 16
        %v384 = vor.u32 %v381, %v382
        %v386 = vshrl.u32 %v327, 16
        %v388 = vrot.slane %v386, 7
        %v389 = vshll.u32 %v327, 16
        %v391 = vor.u32 %v388, %v389
        %v393 = vshrl.u32 %v328, 16
        %v395 = vrot.slane %v393, 7
        %v396 = vshll.u32 %v328, 16
        %v398 = vor.u32 %v395, %v396
        %v400 = vshrl.u32 %v329, 16
        %v402 = vrot.slane %v400, 7
        %v403 = vshll.u32 %v329, 16
        %v405 = vor.u32 %v402, %v403
        %v407 = vshrl.u32 %v330, 16
        %v409 = vrot.slane %v407, 7
        %v410 = vshll.u32 %v330, 16
        %v412 = vor.u32 %v409, %v410
        %v414 = vshrl.u32 %v331, 16
        %v416 = vrot.slane %v414, 7
        %v417 = vshll.u32 %v331, 16
        %v419 = vor.u32 %v416, %v417
        %v421 = vshrl.u32 %v332, 16
        %v423 = vrot.slane %v421, 7
        %v424 = vshll.u32 %v332, 16
        %v426 = vor.u32 %v423, %v424
        %v428 = vshrl.u32 %v333, 16
        %v430 = vrot.slane %v428, 7
        %v431 = vshll.u32 %v333, 16
        %v433 = vor.u32 %v430, %v431
        %v435 = vshrl.u32 %v334, 16
        %v437 = vrot.slane %v435, 7
        %v438 = vshll.u32 %v334, 16
        %v440 = vor.u32 %v437, %v438
        %v442 = vshrl.u32 %v335, 16
        %v444 = vrot.slane %v442, 7
        %v445 = vshll.u32 %v335, 16
        %v447 = vor.u32 %v444, %v445
        %vm480 = vcmask 1040384
        %vm481 = vsmask.f32 256
        %vm482 = vmand %vm480, %vm481
        %v483 = vsel %vm482, 0, %v342
        %v484 = vsel %vm482, 0, %v349
        %v485 = vsel %vm482, 0, %v356
        %v486 = vsel %vm482, 0, %v363
        %v487 = vsel %vm482, 0, %v370
        %v488 = vsel %vm482, 0, %v377
        %v489 = vsel %vm482, 0, %v384
        %v490 = vsel %vm482, 0, %v391
        %v491 = vsel %vm482, 0, %v398
        %v492 = vsel %vm482, 0, %v405
        %v493 = vsel %vm482, 0, %v412
        %v494 = vsel %vm482, 0, %v419
        %v495 = vsel %vm482, 0, %v426
        %v496 = vsel %vm482, 0, %v433
        %v497 = vsel %vm482, 0, %v440
        %v498 = vsel %vm482, 0, %v447
        %v499 = vsel %vm482, %v339, 0
        %v500 = vsel %vm482, %v346, 0
        %v501 = vsel %vm482, %v353, 0
        %v502 = vsel %vm482, %v360, 0
        %v503 = vsel %vm482, %v367, 0
        %v504 = vsel %vm482, %v374, 0
        %v505 = vsel %vm482, %v381, 0
        %v506 = vsel %vm482, %v388, 0
        %v507 = vsel %vm482, %v395, 0
        %v508 = vsel %vm482, %v402, 0
        %v509 = vsel %vm482, %v409, 0
        %v510 = vsel %vm482, %v416, 0
        %v511 = vsel %vm482, %v423, 0
        %v512 = vsel %vm482, %v430, 0
        %v513 = vsel %vm482, %v437, 0
        %v514 = vsel %vm482, %v444, 0
        %vm515 = vsmask.f32 7424
        %v517 = vshrl.u32 0, 16
        %v519 = vshll.u32 0, 16
        %v521 = vrot.slane %v519, 1
        %v522 = vor.u32 %v517, %v521
        %v523 = vsel %vm515, %v522, %v521
        %v525 = vshrl.u32 %v483, 16
        %v527 = vshll.u32 %v483, 16
        %v529 = vrot.slane %v527, 1
        %v530 = vor.u32 %v525, %v529
        %v532 = vshll.u32 %v499, 16
        %v534 = vrot.slane %v532, 1
        %v535 = vsel %vm515, %v530, %v534
        %v537 = vshrl.u32 %v484, 16
        %v539 = vshll.u32 %v484, 16
        %v541 = vrot.slane %v539, 1
        %v542 = vor.u32 %v537, %v541
        %v544 = vshll.u32 %v500, 16
        %v546 = vrot.slane %v544, 1
        %v547 = vsel %vm515, %v542, %v546
        %v549 = vshrl.u32 %v485, 16
        %v551 = vshll.u32 %v485, 16
        %v553 = vrot.slane %v551, 1
        %v554 = vor.u32 %v549, %v553
        %v556 = vshll.u32 %v501, 16
        %v558 = vrot.slane %v556, 1
        %v559 = vsel %vm515, %v554, %v558
        %v561 = vshrl.u32 %v486, 16
        %v563 = vshll.u32 %v486, 16
        %v565 = vrot.slane %v563, 1
        %v566 = vor.u32 %v561, %v565
        %v568 = vshll.u32 %v502, 16
        %v570 = vrot.slane %v568, 1
        %v571 = vsel %vm515, %v566, %v570
        %v573 = vshrl.u32 %v487, 16
        %v575 = vshll.u32 %v487, 16
        %v577 = vrot.slane %v575, 1
        %v578 = vor.u32 %v573, %v577
        %v580 = vshll.u32 %v503, 16
        %v582 = vrot.slane %v580, 1
        %v583 = vsel %vm515, %v578, %v582
        %v585 = vshrl.u32 %v488, 16
        %v587 = vshll.u32 %v488, 16
        %v589 = vrot.slane %v587, 1
        %v590 = vor.u32 %v585, %v589
        %v592 = vshll.u32 %v504, 16
        %v594 = vrot.slane %v592, 1
        %v595 = vsel %vm515, %v590, %v594
        %v597 = vshrl.u32 %v489, 16
        %v599 = vshll.u32 %v489, 16
        %v601 = vrot.slane %v599, 1
        %v602 = vor.u32 %v597, %v601
        %v604 = vshll.u32 %v505, 16
        %v606 = vrot.slane %v604, 1
        %v607 = vsel %vm515, %v602, %v606
        %v609 = vshrl.u32 %v490, 16
        %v611 = vshll.u32 %v490, 16
        %v613 = vrot.slane %v611, 1
        %v614 = vor.u32 %v609, %v613
        %v616 = vshll.u32 %v506, 16
        %v618 = vrot.slane %v616, 1
        %v619 = vsel %vm515, %v614, %v618
        %v621 = vshrl.u32 %v491, 16
        %v623 = vshll.u32 %v491, 16
        %v625 = vrot.slane %v623, 1
        %v626 = vor.u32 %v621, %v625
        %v628 = vshll.u32 %v507, 16
        %v630 = vrot.slane %v628, 1
        %v631 = vsel %vm515, %v626, %v630
        %v633 = vshrl.u32 %v492, 16
        %v635 = vshll.u32 %v492, 16
        %v637 = vrot.slane %v635, 1
        %v638 = vor.u32 %v633, %v637
        %v640 = vshll.u32 %v508, 16
        %v642 = vrot.slane %v640, 1
        %v643 = vsel %vm515, %v638, %v642
        %v645 = vshrl.u32 %v493, 16
        %v647 = vshll.u32 %v493, 16
        %v649 = vrot.slane %v647, 1
        %v650 = vor.u32 %v645, %v649
        %v652 = vshll.u32 %v509, 16
        %v654 = vrot.slane %v652, 1
        %v655 = vsel %vm515, %v650, %v654
        %v657 = vshrl.u32 %v494, 16
        %v659 = vshll.u32 %v494, 16
        %v661 = vrot.slane %v659, 1
        %v662 = vor.u32 %v657, %v661
        %v664 = vshll.u32 %v510, 16
        %v666 = vrot.slane %v664, 1
        %v667 = vsel %vm515, %v662, %v666
        %v669 = vshrl.u32 %v495, 16
        %v671 = vshll.u32 %v495, 16
        %v673 = vrot.slane %v671, 1
        %v674 = vor.u32 %v669, %v673
        %v676 = vshll.u32 %v511, 16
        %v678 = vrot.slane %v676, 1
        %v679 = vsel %vm515, %v674, %v678
        %v681 = vshrl.u32 %v496, 16
        %v683 = vshll.u32 %v496, 16
        %v685 = vrot.slane %v683, 1
        %v686 = vor.u32 %v681, %v685
        %v688 = vshll.u32 %v512, 16
        %v690 = vrot.slane %v688, 1
        %v691 = vsel %vm515, %v686, %v690
        %v693 = vshrl.u32 %v497, 16
        %v695 = vshll.u32 %v497, 16
        %v697 = vrot.slane %v695, 1
        %v698 = vor.u32 %v693, %v697
        %v700 = vshll.u32 %v513, 16
        %v702 = vrot.slane %v700, 1
        %v703 = vsel %vm515, %v698, %v702
        %704 = vrot.lane.b32.xlu0 %v523, 64
        %v705 = vpop.permute.xlu0 %704
        %706 = vrot.lane.b32.xlu0 %v535, 64
        %v707 = vpop.permute.xlu0 %706
        %708 = vrot.lane.b32.xlu0 %v547, 64
        %v709 = vpop.permute.xlu0 %708
        %710 = vrot.lane.b32.xlu0 %v559, 64
        %v711 = vpop.permute.xlu0 %710
        %712 = vrot.lane.b32.xlu0 %v571, 64
        %v713 = vpop.permute.xlu0 %712
        %714 = vrot.lane.b32.xlu0 %v583, 64
        %v715 = vpop.permute.xlu0 %714
        %716 = vrot.lane.b32.xlu0 %v595, 64
        %v717 = vpop.permute.xlu0 %716
        %718 = vrot.lane.b32.xlu0 %v607, 64
        %v719 = vpop.permute.xlu0 %718
        %720 = vrot.lane.b32.xlu0 %v619, 64
        %v721 = vpop.permute.xlu0 %720
        %722 = vrot.lane.b32.xlu0 %v631, 64
        %v723 = vpop.permute.xlu0 %722
        %724 = vrot.lane.b32.xlu0 %v643, 64
        %v725 = vpop.permute.xlu0 %724
        %726 = vrot.lane.b32.xlu0 %v655, 64
        %v727 = vpop.permute.xlu0 %726
        %728 = vrot.lane.b32.xlu0 %v667, 64
        %v729 = vpop.permute.xlu0 %728
        %730 = vrot.lane.b32.xlu0 %v679, 64
        %v731 = vpop.permute.xlu0 %730
        %732 = vrot.lane.b32.xlu0 %v691, 64
        %v733 = vpop.permute.xlu0 %732
        %734 = vrot.lane.b32.xlu0 %v703, 64
        %v735 = vpop.permute.xlu0 %734
        %vm767 = vcmask 1046528
        %v768 = vrot.slane 0, 1
        %v769 = vsel %vm767, %v768, %v768
        %v770 = vrot.slane %v483, 1
        %v771 = vrot.slane %v499, 1
        %v772 = vsel %vm767, %v770, %v771
        %v773 = vrot.slane %v484, 1
        %v774 = vrot.slane %v500, 1
        %v775 = vsel %vm767, %v773, %v774
        %v776 = vrot.slane %v485, 1
        %v777 = vrot.slane %v501, 1
        %v778 = vsel %vm767, %v776, %v777
        %v779 = vrot.slane %v486, 1
        %v780 = vrot.slane %v502, 1
        %v781 = vsel %vm767, %v779, %v780
        %v782 = vrot.slane %v487, 1
        %v783 = vrot.slane %v503, 1
        %v784 = vsel %vm767, %v782, %v783
        %v785 = vrot.slane %v488, 1
        %v786 = vrot.slane %v504, 1
        %v787 = vsel %vm767, %v785, %v786
        %v788 = vrot.slane %v489, 1
        %v789 = vrot.slane %v505, 1
        %v790 = vsel %vm767, %v788, %v789
        %v791 = vrot.slane %v490, 1
        %v792 = vrot.slane %v506, 1
        %v793 = vsel %vm767, %v791, %v792
        %v794 = vrot.slane %v491, 1
        %v795 = vrot.slane %v507, 1
        %v796 = vsel %vm767, %v794, %v795
        %v797 = vrot.slane %v492, 1
        %v798 = vrot.slane %v508, 1
        %v799 = vsel %vm767, %v797, %v798
        %v800 = vrot.slane %v493, 1
        %v801 = vrot.slane %v509, 1
        %v802 = vsel %vm767, %v800, %v801
        %v803 = vrot.slane %v494, 1
        %v804 = vrot.slane %v510, 1
        %v805 = vsel %vm767, %v803, %v804
        %v806 = vrot.slane %v495, 1
        %v807 = vrot.slane %v511, 1
        %v808 = vsel %vm767, %v806, %v807
        %v809 = vrot.slane %v496, 1
        %v810 = vrot.slane %v512, 1
        %v811 = vsel %vm767, %v809, %v810
        %v812 = vrot.slane %v497, 1
        %v813 = vrot.slane %v513, 1
        %v814 = vsel %vm767, %v812, %v813
        %816 = vrot.lane.b32.xlu0 %v483, 64
        %v817 = vpop.permute.xlu0 %816
        %818 = vrot.lane.b32.xlu0 %v484, 64
        %v819 = vpop.permute.xlu0 %818
        %820 = vrot.lane.b32.xlu0 %v485, 64
        %v821 = vpop.permute.xlu0 %820
        %822 = vrot.lane.b32.xlu0 %v486, 64
        %v823 = vpop.permute.xlu0 %822
        %824 = vrot.lane.b32.xlu0 %v487, 64
        %v825 = vpop.permute.xlu0 %824
        %826 = vrot.lane.b32.xlu0 %v488, 64
        %v827 = vpop.permute.xlu0 %826
        %828 = vrot.lane.b32.xlu0 %v489, 64
        %v829 = vpop.permute.xlu0 %828
        %830 = vrot.lane.b32.xlu0 %v490, 64
        %v831 = vpop.permute.xlu0 %830
        %832 = vrot.lane.b32.xlu0 %v491, 64
        %v833 = vpop.permute.xlu0 %832
        %834 = vrot.lane.b32.xlu0 %v492, 64
        %v835 = vpop.permute.xlu0 %834
        %836 = vrot.lane.b32.xlu0 %v493, 64
        %v837 = vpop.permute.xlu0 %836
        %838 = vrot.lane.b32.xlu0 %v494, 64
        %v839 = vpop.permute.xlu0 %838
        %840 = vrot.lane.b32.xlu0 %v495, 64
        %v841 = vpop.permute.xlu0 %840
        %842 = vrot.lane.b32.xlu0 %v496, 64
        %v843 = vpop.permute.xlu0 %842
        %844 = vrot.lane.b32.xlu0 %v497, 64
        %v845 = vpop.permute.xlu0 %844
        %846 = vrot.lane.b32.xlu0 %v498, 64
        %v847 = vpop.permute.xlu0 %846
        %v849 = vshrl.u32 %v498, 16
        %v851 = vshll.u32 %v498, 16
        %v853 = vrot.slane %v851, 1
        %v854 = vor.u32 %v849, %v853
        %v856 = vshll.u32 %v514, 16
        %v858 = vrot.slane %v856, 1
        %v859 = vsel %vm515, %v854, %v858
        %v861 = vrot.slane %v498, 1
        %v862 = vrot.slane %v514, 1
        %v863 = vsel %vm767, %v861, %v862
        %864 = vrot.lane.b32.xlu0 %v772, 64
        %v865 = vpop.permute.xlu0 %864
        %866 = vrot.lane.b32.xlu0 %v775, 64
        %v867 = vpop.permute.xlu0 %866
        %868 = vrot.lane.b32.xlu0 %v778, 64
        %v869 = vpop.permute.xlu0 %868
        %870 = vrot.lane.b32.xlu0 %v781, 64
        %v871 = vpop.permute.xlu0 %870
        %872 = vrot.lane.b32.xlu0 %v784, 64
        %v873 = vpop.permute.xlu0 %872
        %874 = vrot.lane.b32.xlu0 %v787, 64
        %v875 = vpop.permute.xlu0 %874
        %876 = vrot.lane.b32.xlu0 %v790, 64
        %v877 = vpop.permute.xlu0 %876
        %878 = vrot.lane.b32.xlu0 %v793, 64
        %v879 = vpop.permute.xlu0 %878
        %880 = vrot.lane.b32.xlu0 %v796, 64
        %v881 = vpop.permute.xlu0 %880
        %882 = vrot.lane.b32.xlu0 %v799, 64
        %v883 = vpop.permute.xlu0 %882
        %884 = vrot.lane.b32.xlu0 %v802, 64
        %v885 = vpop.permute.xlu0 %884
        %886 = vrot.lane.b32.xlu0 %v805, 64
        %v887 = vpop.permute.xlu0 %886
        %888 = vrot.lane.b32.xlu0 %v808, 64
        %v889 = vpop.permute.xlu0 %888
        %890 = vrot.lane.b32.xlu0 %v811, 64
        %v891 = vpop.permute.xlu0 %890
        %892 = vrot.lane.b32.xlu0 %v814, 64
        %v893 = vpop.permute.xlu0 %892
        %894 = vrot.lane.b32.xlu0 %v863, 64
        %v895 = vpop.permute.xlu0 %894
        %896 = vrot.lane.b32.xlu0 %v859, 64
        %v897 = vpop.permute.xlu0 %896
        %vm898 = vcmask 523264
        %v900 = vsel %vm898, 0, %v705
        %v903 = vsel %vm898, %v483, %v707
        %v906 = vsel %vm898, %v484, %v709
        %v909 = vsel %vm898, %v485, %v711
        %v912 = vsel %vm898, %v486, %v713
        %v915 = vsel %vm898, %v487, %v715
        %v918 = vsel %vm898, %v488, %v717
        %v921 = vsel %vm898, %v489, %v719
        %v924 = vsel %vm898, %v490, %v721
        %v927 = vsel %vm898, %v491, %v723
        %v930 = vsel %vm898, %v492, %v725
        %v933 = vsel %vm898, %v493, %v727
        %v936 = vsel %vm898, %v494, %v729
        %v939 = vsel %vm898, %v495, %v731
        %v942 = vsel %vm898, %v496, %v733
        %v945 = vsel %vm898, %v497, %v735
        %v949 = vsel %vm898, %v769, %v817
        %v953 = vsel %vm898, %v772, %v819
        %v957 = vsel %vm898, %v775, %v821
        %v961 = vsel %vm898, %v778, %v823
        %v965 = vsel %vm898, %v781, %v825
        %v969 = vsel %vm898, %v784, %v827
        %v973 = vsel %vm898, %v787, %v829
        %v977 = vsel %vm898, %v790, %v831
        %v981 = vsel %vm898, %v793, %v833
        %v985 = vsel %vm898, %v796, %v835
        %v989 = vsel %vm898, %v799, %v837
        %v993 = vsel %vm898, %v802, %v839
        %v997 = vsel %vm898, %v805, %v841
        %v1001 = vsel %vm898, %v808, %v843
        %v1005 = vsel %vm898, %v811, %v845
        %v1009 = vsel %vm898, %v814, %v847
        %v1013 = vsel %vm898, %v535, %v865
        %v1017 = vsel %vm898, %v547, %v867
        %v1021 = vsel %vm898, %v559, %v869
        %v1025 = vsel %vm898, %v571, %v871
        %v1029 = vsel %vm898, %v583, %v873
        %v1033 = vsel %vm898, %v595, %v875
        %v1037 = vsel %vm898, %v607, %v877
        %v1041 = vsel %vm898, %v619, %v879
        %v1045 = vsel %vm898, %v631, %v881
        %v1049 = vsel %vm898, %v643, %v883
        %v1053 = vsel %vm898, %v655, %v885
        %v1057 = vsel %vm898, %v667, %v887
        %v1061 = vsel %vm898, %v679, %v889
        %v1065 = vsel %vm898, %v691, %v891
        %v1069 = vsel %vm898, %v703, %v893
        %v1073 = vsel %vm898, %v859, %v895
        %v1076 = vsel %vm898, %v498, %v897
        %v1078 = vld [vmem:[%s1] sm:$0xf]
        %v1079 = vld [vmem:[%s1 + $0x4] sm:$0xf]
        %v1080 = vld [vmem:[%s1 + $0x8] sm:$0xf]
        %v1081 = vld [vmem:[%s1 + $0xc] sm:$0xf]
        %v1082 = vld [vmem:[%s1 + $0x10] sm:$0xf]
        %v1083 = vld [vmem:[%s1 + $0x14] sm:$0xf]
        %v1084 = vld [vmem:[%s1 + $0x18] sm:$0xf]
        %v1085 = vld [vmem:[%s1 + $0x1c] sm:$0xf]
        %v1086 = vld [vmem:[%s1 + $0x20] sm:$0xf]
        %v1087 = vld [vmem:[%s1 + $0x24] sm:$0xf]
        %v1088 = vld [vmem:[%s1 + $0x28] sm:$0xf]
        %v1089 = vld [vmem:[%s1 + $0x2c] sm:$0xf]
        %v1090 = vld [vmem:[%s1 + $0x30] sm:$0xf]
        %v1091 = vld [vmem:[%s1 + $0x34] sm:$0xf]
        %v1092 = vld [vmem:[%s1 + $0x38] sm:$0xf]
        %v1093 = vld [vmem:[%s1 + $0x3c] sm:$0xf]
        %v1094 = vld [vmem:[%s1 + $0x40] sm:$0xf]
        %v1095 = vld [vmem:[%s1 + $0x44] sm:$0xf]
        %v1096 = vld [vmem:[%s1 + $0x48] sm:$0xf]
        %v1097 = vld [vmem:[%s1 + $0x4c] sm:$0xf]
        %v1098 = vld [vmem:[%s1 + $0x50] sm:$0xf]
        %v1099 = vld [vmem:[%s1 + $0x54] sm:$0xf]
        %v1100 = vld [vmem:[%s1 + $0x58] sm:$0xf]
        %v1101 = vld [vmem:[%s1 + $0x5c] sm:$0xf]
        %v1102 = vld [vmem:[%s1 + $0x60] sm:$0xf]
        %v1103 = vld [vmem:[%s1 + $0x64] sm:$0xf]
        %v1104 = vld [vmem:[%s1 + $0x68] sm:$0xf]
        %v1105 = vld [vmem:[%s1 + $0x6c] sm:$0xf]
        %v1106 = vld [vmem:[%s1 + $0x70] sm:$0xf]
        %v1107 = vld [vmem:[%s1 + $0x74] sm:$0xf]
        %v1108 = vld [vmem:[%s1 + $0x78] sm:$0xf]
        %v1109 = vld [vmem:[%s1 + $0x7c] sm:$0xf]
        %v1110 = vld [vmem:[%s1 + $0x80] sm:$0xf]
        %v1111 = vld [vmem:[%s1 + $0x84] sm:$0xf]
        %v1112 = vld [vmem:[%s1 + $0x88] sm:$0xf]
        %v1113 = vld [vmem:[%s1 + $0x8c] sm:$0xf]
        %v1114 = vld [vmem:[%s1 + $0x90] sm:$0xf]
        %v1115 = vld [vmem:[%s1 + $0x94] sm:$0xf]
        %v1116 = vld [vmem:[%s1 + $0x98] sm:$0xf]
        %v1117 = vld [vmem:[%s1 + $0x9c] sm:$0xf]
        %v1118 = vld [vmem:[%s1 + $0xa0] sm:$0xf]
        %v1119 = vld [vmem:[%s1 + $0xa4] sm:$0xf]
        %v1120 = vld [vmem:[%s1 + $0xa8] sm:$0xf]
        %v1121 = vld [vmem:[%s1 + $0xac] sm:$0xf]
        %v1122 = vld [vmem:[%s1 + $0xb0] sm:$0xf]
        %v1123 = vld [vmem:[%s1 + $0xb4] sm:$0xf]
        %v1124 = vld [vmem:[%s1 + $0xb8] sm:$0xf]
        %v1125 = vld [vmem:[%s1 + $0xbc] sm:$0xf]
        %v1126 = vld [vmem:[%s1 + $0xc0] sm:$0xf]
        %v1127 = vld [vmem:[%s1 + $0xc4] sm:$0xf]
        %v1128 = vld [vmem:[%s1 + $0xc8] sm:$0xf]
        %v1129 = vld [vmem:[%s1 + $0xcc] sm:$0xf]
        %v1130 = vld [vmem:[%s1 + $0xd0] sm:$0xf]
        %v1131 = vld [vmem:[%s1 + $0xd4] sm:$0xf]
        %v1132 = vld [vmem:[%s1 + $0xd8] sm:$0xf]
        %v1133 = vld [vmem:[%s1 + $0xdc] sm:$0xf]
        %v1134 = vld [vmem:[%s1 + $0xe0] sm:$0xf]
        %v1135 = vld [vmem:[%s1 + $0xe4] sm:$0xf]
        %v1136 = vld [vmem:[%s1 + $0xe8] sm:$0xf]
        %v1137 = vld [vmem:[%s1 + $0xec] sm:$0xf]
        %v1138 = vld [vmem:[%s1 + $0xf0] sm:$0xf]
        %v1139 = vld [vmem:[%s1 + $0xf4] sm:$0xf]
        %v1140 = vld [vmem:[%s1 + $0xf8] sm:$0xf]
        %v1141 = vld [vmem:[%s1 + $0xfc] sm:$0xf]
        %v1142 = vld [vmem:[%s1 + $0x100] sm:$0xf]
        %v1143 = vld [vmem:[%s1 + $0x104] sm:$0xf]
        %v1144 = vld [vmem:[%s1 + $0x108] sm:$0xf]
        %v1145 = vld [vmem:[%s1 + $0x10c] sm:$0xf]
        %v1146 = vld [vmem:[%s1 + $0x110] sm:$0xf]
        %v1147 = vld [vmem:[%s1 + $0x114] sm:$0xf]
        %v1148 = vld [vmem:[%s1 + $0x118] sm:$0xf]
        %v1149 = vld [vmem:[%s1 + $0x11c] sm:$0xf]
        %v1150 = vld [vmem:[%s2] sm:$0x1]
        %v1152 = vlaneseq
        %v1153 = vshrl.u32 %v1152, 7
        %v1154 = vsub.s32 0, %v1153
        %v1155 = vrot.slane %v1150, %v1154
        %v1229 = vunpack.c.l.b16 %v1078
        %v1230 = vunpack.c.l.b16 %v1079
        %v1231 = vunpack.c.l.b16 %v1080
        %v1232 = vunpack.c.l.b16 %v1081
        %v1233 = vunpack.c.l.b16 %v1082
        %v1234 = vunpack.c.l.b16 %v1083
        %v1235 = vunpack.c.l.b16 %v1084
        %v1236 = vunpack.c.l.b16 %v1085
        %v1237 = vunpack.c.l.b16 %v1086
        %v1238 = vunpack.c.l.b16 %v1087
        %v1239 = vunpack.c.l.b16 %v1088
        %v1240 = vunpack.c.l.b16 %v1089
        %v1241 = vunpack.c.l.b16 %v1090
        %v1242 = vunpack.c.l.b16 %v1091
        %v1243 = vunpack.c.l.b16 %v1092
        %v1244 = vunpack.c.l.b16 %v1093
        %v1245 = vunpack.c.l.b16 %v1094
        %v1246 = vunpack.c.l.b16 %v1095
        %v1247 = vunpack.c.l.b16 %v1096
        %v1248 = vunpack.c.l.b16 %v1097
        %v1249 = vunpack.c.l.b16 %v1098
        %v1250 = vunpack.c.l.b16 %v1099
        %v1251 = vunpack.c.l.b16 %v1100
        %v1252 = vunpack.c.l.b16 %v1101
        %v1253 = vunpack.c.l.b16 %v1102
        %v1254 = vunpack.c.l.b16 %v1103
        %v1255 = vunpack.c.l.b16 %v1104
        %v1256 = vunpack.c.l.b16 %v1105
        %v1257 = vunpack.c.l.b16 %v1106
        %v1258 = vunpack.c.l.b16 %v1107
        %v1259 = vunpack.c.l.b16 %v1108
        %v1260 = vunpack.c.l.b16 %v1109
        %v1261 = vunpack.c.l.b16 %v1110
        %v1262 = vunpack.c.l.b16 %v1111
        %v1263 = vunpack.c.l.b16 %v1112
        %v1264 = vunpack.c.l.b16 %v1113
        %v1265 = vunpack.c.l.b16 %v1114
        %v1266 = vunpack.c.l.b16 %v1115
        %v1267 = vunpack.c.l.b16 %v1116
        %v1268 = vunpack.c.l.b16 %v1117
        %v1269 = vunpack.c.l.b16 %v1118
        %v1270 = vunpack.c.l.b16 %v1119
        %v1271 = vunpack.c.l.b16 %v1120
        %v1272 = vunpack.c.l.b16 %v1121
        %v1273 = vunpack.c.l.b16 %v1122
        %v1274 = vunpack.c.l.b16 %v1123
        %v1275 = vunpack.c.l.b16 %v1124
        %v1276 = vunpack.c.l.b16 %v1125
        %v1277 = vunpack.c.l.b16 %v1126
        %v1278 = vunpack.c.l.b16 %v1127
        %v1279 = vunpack.c.l.b16 %v1128
        %v1280 = vunpack.c.l.b16 %v1129
        %v1281 = vunpack.c.l.b16 %v1130
        %v1282 = vunpack.c.l.b16 %v1131
        %v1283 = vunpack.c.l.b16 %v1132
        %v1284 = vunpack.c.l.b16 %v1133
        %v1285 = vunpack.c.l.b16 %v1134
        %v1286 = vunpack.c.l.b16 %v1135
        %v1287 = vunpack.c.l.b16 %v1136
        %v1288 = vunpack.c.l.b16 %v1137
        %v1289 = vunpack.c.l.b16 %v1138
        %v1290 = vunpack.c.l.b16 %v1139
        %v1291 = vunpack.c.l.b16 %v1140
        %v1292 = vunpack.c.l.b16 %v1141
        %v1293 = vunpack.c.l.b16 %v1142
        %v1294 = vunpack.c.l.b16 %v1143
        %v1295 = vunpack.c.l.b16 %v1144
        %v1296 = vunpack.c.l.b16 %v1145
        %v1297 = vunpack.c.l.b16 %v1146
        %v1298 = vunpack.c.l.b16 %v1147
        %v1299 = vunpack.c.l.b16 %v1148
        %v1300 = vunpack.c.l.b16 %v1149
        %v1301 = vpack.c.b16 %v1230, %v1229
        %v1302 = vpack.c.b16 %v1232, %v1231
        %v1303 = vpack.c.b16 %v1234, %v1233
        %v1304 = vpack.c.b16 %v1236, %v1235
        %v1305 = vpack.c.b16 %v1238, %v1237
        %v1306 = vpack.c.b16 %v1240, %v1239
        %v1307 = vpack.c.b16 %v1242, %v1241
        %v1308 = vpack.c.b16 %v1244, %v1243
        %v1309 = vpack.c.b16 %v1246, %v1245
        %v1310 = vpack.c.b16 %v1248, %v1247
        %v1311 = vpack.c.b16 %v1250, %v1249
        %v1312 = vpack.c.b16 %v1252, %v1251
        %v1313 = vpack.c.b16 %v1254, %v1253
        %v1314 = vpack.c.b16 %v1256, %v1255
        %v1315 = vpack.c.b16 %v1258, %v1257
        %v1316 = vpack.c.b16 %v1260, %v1259
        %v1317 = vpack.c.b16 %v1262, %v1261
        %v1318 = vpack.c.b16 %v1264, %v1263
        %v1319 = vpack.c.b16 %v1266, %v1265
        %v1320 = vpack.c.b16 %v1268, %v1267
        %v1321 = vpack.c.b16 %v1270, %v1269
        %v1322 = vpack.c.b16 %v1272, %v1271
        %v1323 = vpack.c.b16 %v1274, %v1273
        %v1324 = vpack.c.b16 %v1276, %v1275
        %v1325 = vpack.c.b16 %v1278, %v1277
        %v1326 = vpack.c.b16 %v1280, %v1279
        %v1327 = vpack.c.b16 %v1282, %v1281
        %v1328 = vpack.c.b16 %v1284, %v1283
        %v1329 = vpack.c.b16 %v1286, %v1285
        %v1330 = vpack.c.b16 %v1288, %v1287
        %v1331 = vpack.c.b16 %v1290, %v1289
        %v1332 = vpack.c.b16 %v1292, %v1291
        %v1333 = vpack.c.b16 %v1294, %v1293
        %v1334 = vpack.c.b16 %v1296, %v1295
        %v1335 = vpack.c.b16 %v1298, %v1297
        %v1336 = vpack.c.b16 %v1300, %v1299
        %v1373 = vsel %vm898, %v775, 0
        %v1375 = vsel %vm898, %v778, 0
        %v1377 = vsel %vm898, %v781, 0
        %v1379 = vsel %vm898, %v784, 0
        %v1381 = vsel %vm898, %v787, 0
        %v1383 = vsel %vm898, %v790, 0
        %v1385 = vsel %vm898, %v793, 0
        %v1387 = vsel %vm898, %v796, 0
        %v1389 = vsel %vm898, %v799, 0
        %v1391 = vsel %vm898, %v802, 0
        %v1393 = vsel %vm898, %v805, 0
        %v1395 = vsel %vm898, %v808, 0
        %v1397 = vsel %vm898, %v811, 0
        %v1399 = vsel %vm898, %v814, 0
        %v1402 = vsel %vm898, %v863, 0
        %v1404 = vsel %vm898, %v769, 0
        %1406 = vmatprep.subr.bf16.mxu0 0
        %1407 = vmatpush1.bf16.msra.mxu0 %v1308
        %1408 = vmatprep.subr.bf16.mxu0 0
        %1409 = vmatpush1.bf16.msra.mxu0 %v1307
        %1410 = vmatprep.subr.bf16.mxu0 0
        %1411 = vmatpush1.bf16.msra.mxu0 %v1306
        %1412 = vmatprep.subr.bf16.mxu0 0
        %1413 = vmatpush1.bf16.msra.mxu0 %v1305
        %1414 = vmatprep.subr.bf16.mxu0 0
        %1415 = vmatpush1.bf16.msra.mxu0 %v1304
        %1416 = vmatprep.subr.bf16.mxu0 0
        %1417 = vmatpush1.bf16.msra.mxu0 %v1303
        %1418 = vmatprep.subr.bf16.mxu0 0
        %1419 = vmatpush1.bf16.msra.mxu0 %v1302
        %1420 = vmatprep.subr.bf16.mxu0 0
        %1421 = vmatpush1.bf16.msra.mxu0 %v1301
        %1422 = vmatprep.subr.bf16.mxu0 0
        %1423 = vmatpush2.bf16.msra.mxu0 %v1316
        %1424 = vmatprep.subr.bf16.mxu0 0
        %1425 = vmatpush2.bf16.msra.mxu0 %v1315
        %1426 = vmatprep.subr.bf16.mxu0 0
        %1427 = vmatpush2.bf16.msra.mxu0 %v1314
        %1428 = vmatprep.subr.bf16.mxu0 0
        %1429 = vmatpush2.bf16.msra.mxu0 %v1313
        %1430 = vmatprep.subr.bf16.mxu0 0
        %1431 = vmatpush2.bf16.msra.mxu0 %v1312
        %1432 = vmatprep.subr.bf16.mxu0 0
        %1433 = vmatpush2.bf16.msra.mxu0 %v1311
        %1434 = vmatprep.subr.bf16.mxu0 0
        %1435 = vmatpush2.bf16.msra.mxu0 %v1310
        %1436 = vmatprep.subr.bf16.mxu0 0
        %1437 = vmatpush2.bf16.msra.mxu0 %v1309
        %1438 = vmatprep.mubr.bf16.mxu0 %v949
        %1439 = vmatmul.mubr.bf16.gmra.mxu0 %v900
        %v1440 = vpop.f32.mrf.mxu0
        %v1441 = vadd.f32 %v1155, %v1440
        %v1442 = vpop.f32.mrf.mxu0
        %v1443 = vpop.f32.mrf.mxu0
        %v1444 = vadd.f32 %v1155, %v1443
        %v1445 = vpop.f32.mrf.mxu0
        %1446 = vmatprep.mubr.bf16.mxu0 %v953
        %1447 = vmatmul.mubr.bf16.gmra.mxu0 %v903
        %v1448 = vpop.f32.mrf.mxu0
        %v1449 = vadd.f32 %v1155, %v1448
        %v1450 = vpop.f32.mrf.mxu0
        %v1451 = vpop.f32.mrf.mxu0
        %v1452 = vadd.f32 %v1155, %v1451
        %v1453 = vpop.f32.mrf.mxu0
        %1454 = vmatprep.mubr.bf16.mxu0 %v957
        %1455 = vmatmul.mubr.bf16.gmra.mxu0 %v906
        %v1456 = vpop.f32.mrf.mxu0
        %v1457 = vadd.f32 %v1155, %v1456
        %v1458 = vpop.f32.mrf.mxu0
        %v1459 = vpop.f32.mrf.mxu0
        %v1460 = vadd.f32 %v1155, %v1459
        %v1461 = vpop.f32.mrf.mxu0
        %1462 = vmatprep.mubr.bf16.mxu0 %v961
        %1463 = vmatmul.mubr.bf16.gmra.mxu0 %v909
        %v1464 = vpop.f32.mrf.mxu0
        %v1465 = vadd.f32 %v1155, %v1464
        %v1466 = vpop.f32.mrf.mxu0
        %v1467 = vpop.f32.mrf.mxu0
        %v1468 = vadd.f32 %v1155, %v1467
        %v1469 = vpop.f32.mrf.mxu0
        %1470 = vmatprep.mubr.bf16.mxu0 %v965
        %1471 = vmatmul.mubr.bf16.gmra.mxu0 %v912
        %v1472 = vpop.f32.mrf.mxu0
        %v1473 = vadd.f32 %v1155, %v1472
        %v1474 = vpop.f32.mrf.mxu0
        %v1475 = vpop.f32.mrf.mxu0
        %v1476 = vadd.f32 %v1155, %v1475
        %v1477 = vpop.f32.mrf.mxu0
        %1478 = vmatprep.mubr.bf16.mxu0 %v969
        %1479 = vmatmul.mubr.bf16.gmra.mxu0 %v915
        %v1480 = vpop.f32.mrf.mxu0
        %v1481 = vadd.f32 %v1155, %v1480
        %v1482 = vpop.f32.mrf.mxu0
        %v1483 = vpop.f32.mrf.mxu0
        %v1484 = vadd.f32 %v1155, %v1483
        %v1485 = vpop.f32.mrf.mxu0
        %1486 = vmatprep.mubr.bf16.mxu0 %v973
        %1487 = vmatmul.mubr.bf16.gmra.mxu0 %v918
        %v1488 = vpop.f32.mrf.mxu0
        %v1489 = vadd.f32 %v1155, %v1488
        %v1490 = vpop.f32.mrf.mxu0
        %v1491 = vpop.f32.mrf.mxu0
        %v1492 = vadd.f32 %v1155, %v1491
        %v1493 = vpop.f32.mrf.mxu0
        %1494 = vmatprep.mubr.bf16.mxu0 %v977
        %1495 = vmatmul.mubr.bf16.gmra.mxu0 %v921
        %v1496 = vpop.f32.mrf.mxu0
        %v1497 = vadd.f32 %v1155, %v1496
        %v1498 = vpop.f32.mrf.mxu0
        %v1499 = vpop.f32.mrf.mxu0
        %v1500 = vadd.f32 %v1155, %v1499
        %v1501 = vpop.f32.mrf.mxu0
        %1502 = vmatprep.mubr.bf16.mxu0 %v981
        %1503 = vmatmul.mubr.bf16.gmra.mxu0 %v924
        %v1504 = vpop.f32.mrf.mxu0
        %v1505 = vadd.f32 %v1155, %v1504
        %v1506 = vpop.f32.mrf.mxu0
        %v1507 = vpop.f32.mrf.mxu0
        %v1508 = vadd.f32 %v1155, %v1507
        %v1509 = vpop.f32.mrf.mxu0
        %1510 = vmatprep.mubr.bf16.mxu0 %v985
        %1511 = vmatmul.mubr.bf16.gmra.mxu0 %v927
        %v1512 = vpop.f32.mrf.mxu0
        %v1513 = vadd.f32 %v1155, %v1512
        %v1514 = vpop.f32.mrf.mxu0
        %v1515 = vpop.f32.mrf.mxu0
        %v1516 = vadd.f32 %v1155, %v1515
        %v1517 = vpop.f32.mrf.mxu0
        %1518 = vmatprep.mubr.bf16.mxu0 %v989
        %1519 = vmatmul.mubr.bf16.gmra.mxu0 %v930
        %v1520 = vpop.f32.mrf.mxu0
        %v1521 = vadd.f32 %v1155, %v1520
        %v1522 = vpop.f32.mrf.mxu0
        %v1523 = vpop.f32.mrf.mxu0
        %v1524 = vadd.f32 %v1155, %v1523
        %v1525 = vpop.f32.mrf.mxu0
        %1526 = vmatprep.mubr.bf16.mxu0 %v993
        %1527 = vmatmul.mubr.bf16.gmra.mxu0 %v933
        %v1528 = vpop.f32.mrf.mxu0
        %v1529 = vadd.f32 %v1155, %v1528
        %v1530 = vpop.f32.mrf.mxu0
        %v1531 = vpop.f32.mrf.mxu0
        %v1532 = vadd.f32 %v1155, %v1531
        %v1533 = vpop.f32.mrf.mxu0
        %1534 = vmatprep.mubr.bf16.mxu0 %v997
        %1535 = vmatmul.mubr.bf16.gmra.mxu0 %v936
        %v1536 = vpop.f32.mrf.mxu0
        %v1537 = vadd.f32 %v1155, %v1536
        %v1538 = vpop.f32.mrf.mxu0
        %v1539 = vpop.f32.mrf.mxu0
        %v1540 = vadd.f32 %v1155, %v1539
        %v1541 = vpop.f32.mrf.mxu0
        %1542 = vmatprep.mubr.bf16.mxu0 %v1001
        %1543 = vmatmul.mubr.bf16.gmra.mxu0 %v939
        %v1544 = vpop.f32.mrf.mxu0
        %v1545 = vadd.f32 %v1155, %v1544
        %v1546 = vpop.f32.mrf.mxu0
        %v1547 = vpop.f32.mrf.mxu0
        %v1548 = vadd.f32 %v1155, %v1547
        %v1549 = vpop.f32.mrf.mxu0
        %1550 = vmatprep.mubr.bf16.mxu0 %v1005
        %1551 = vmatmul.mubr.bf16.gmra.mxu0 %v942
        %v1552 = vpop.f32.mrf.mxu0
        %v1553 = vadd.f32 %v1155, %v1552
        %v1554 = vpop.f32.mrf.mxu0
        %v1555 = vpop.f32.mrf.mxu0
        %v1556 = vadd.f32 %v1155, %v1555
        %v1557 = vpop.f32.mrf.mxu0
        %1558 = vmatprep.mubr.bf16.mxu0 %v1009
        %1559 = vmatmul.mubr.bf16.gmra.mxu0 %v945
        %v1560 = vpop.f32.mrf.mxu0
        %v1561 = vadd.f32 %v1155, %v1560
        %v1562 = vpop.f32.mrf.mxu0
        %v1563 = vpop.f32.mrf.mxu0
        %v1564 = vadd.f32 %v1155, %v1563
        %v1565 = vpop.f32.mrf.mxu0
        %1566 = vdwg.mxu0
        %1567 = vmatprep.subr.bf16.mxu0 0
        %1568 = vmatpush1.bf16.msra.mxu0 %v1324
        %1569 = vmatprep.subr.bf16.mxu0 0
        %1570 = vmatpush1.bf16.msra.mxu0 %v1323
        %1571 = vmatprep.subr.bf16.mxu0 0
        %1572 = vmatpush1.bf16.msra.mxu0 %v1322
        %1573 = vmatprep.subr.bf16.mxu0 0
        %1574 = vmatpush1.bf16.msra.mxu0 %v1321
        %1575 = vmatprep.subr.bf16.mxu0 0
        %1576 = vmatpush1.bf16.msra.mxu0 %v1320
        %1577 = vmatprep.subr.bf16.mxu0 0
        %1578 = vmatpush1.bf16.msra.mxu0 %v1319
        %1579 = vmatprep.subr.bf16.mxu0 0
        %1580 = vmatpush1.bf16.msra.mxu0 %v1318
        %1581 = vmatprep.subr.bf16.mxu0 0
        %1582 = vmatpush1.bf16.msra.mxu0 %v1317
        %1583 = vmatprep.subr.bf16.mxu0 0
        %1584 = vmatpush2.bf16.msra.mxu0 %v1332
        %1585 = vmatprep.subr.bf16.mxu0 0
        %1586 = vmatpush2.bf16.msra.mxu0 %v1331
        %1587 = vmatprep.subr.bf16.mxu0 0
        %1588 = vmatpush2.bf16.msra.mxu0 %v1330
        %1589 = vmatprep.subr.bf16.mxu0 0
        %1590 = vmatpush2.bf16.msra.mxu0 %v1329
        %1591 = vmatprep.subr.bf16.mxu0 0
        %1592 = vmatpush2.bf16.msra.mxu0 %v1328
        %1593 = vmatprep.subr.bf16.mxu0 0
        %1594 = vmatpush2.bf16.msra.mxu0 %v1327
        %1595 = vmatprep.subr.bf16.mxu0 0
        %1596 = vmatpush2.bf16.msra.mxu0 %v1326
        %1597 = vmatprep.subr.bf16.mxu0 0
        %1598 = vmatpush2.bf16.msra.mxu0 %v1325
        %1599 = vmatprep.mubr.bf16.mxu0 %v906
        %1600 = vmatmul.mubr.bf16.gmra.mxu0 %v1013
        %v1601 = vpop.f32.mrf.mxu0
        %v1602 = vadd.f32 %v1441, %v1601
        %v1603 = vpop.f32.mrf.mxu0
        %v1604 = vpop.f32.mrf.mxu0
        %v1605 = vadd.f32 %v1444, %v1604
        %v1606 = vpop.f32.mrf.mxu0
        %1607 = vmatprep.mubr.bf16.mxu0 %v909
        %1608 = vmatmul.mubr.bf16.gmra.mxu0 %v1017
        %v1609 = vpop.f32.mrf.mxu0
        %v1610 = vadd.f32 %v1449, %v1609
        %v1611 = vpop.f32.mrf.mxu0
        %v1612 = vpop.f32.mrf.mxu0
        %v1613 = vadd.f32 %v1452, %v1612
        %v1614 = vpop.f32.mrf.mxu0
        %1615 = vmatprep.mubr.bf16.mxu0 %v912
        %1616 = vmatmul.mubr.bf16.gmra.mxu0 %v1021
        %v1617 = vpop.f32.mrf.mxu0
        %v1618 = vadd.f32 %v1457, %v1617
        %v1619 = vpop.f32.mrf.mxu0
        %v1620 = vpop.f32.mrf.mxu0
        %v1621 = vadd.f32 %v1460, %v1620
        %v1622 = vpop.f32.mrf.mxu0
        %1623 = vmatprep.mubr.bf16.mxu0 %v915
        %1624 = vmatmul.mubr.bf16.gmra.mxu0 %v1025
        %v1625 = vpop.f32.mrf.mxu0
        %v1626 = vadd.f32 %v1465, %v1625
        %v1627 = vpop.f32.mrf.mxu0
        %v1628 = vpop.f32.mrf.mxu0
        %v1629 = vadd.f32 %v1468, %v1628
        %v1630 = vpop.f32.mrf.mxu0
        %1631 = vmatprep.mubr.bf16.mxu0 %v918
        %1632 = vmatmul.mubr.bf16.gmra.mxu0 %v1029
        %v1633 = vpop.f32.mrf.mxu0
        %v1634 = vadd.f32 %v1473, %v1633
        %v1635 = vpop.f32.mrf.mxu0
        %v1636 = vpop.f32.mrf.mxu0
        %v1637 = vadd.f32 %v1476, %v1636
        %v1638 = vpop.f32.mrf.mxu0
        %1639 = vmatprep.mubr.bf16.mxu0 %v921
        %1640 = vmatmul.mubr.bf16.gmra.mxu0 %v1033
        %v1641 = vpop.f32.mrf.mxu0
        %v1642 = vadd.f32 %v1481, %v1641
        %v1643 = vpop.f32.mrf.mxu0
        %v1644 = vpop.f32.mrf.mxu0
        %v1645 = vadd.f32 %v1484, %v1644
        %v1646 = vpop.f32.mrf.mxu0
        %1647 = vmatprep.mubr.bf16.mxu0 %v924
        %1648 = vmatmul.mubr.bf16.gmra.mxu0 %v1037
        %v1649 = vpop.f32.mrf.mxu0
        %v1650 = vadd.f32 %v1489, %v1649
        %v1651 = vpop.f32.mrf.mxu0
        %v1652 = vpop.f32.mrf.mxu0
        %v1653 = vadd.f32 %v1492, %v1652
        %v1654 = vpop.f32.mrf.mxu0
        %1655 = vmatprep.mubr.bf16.mxu0 %v927
        %1656 = vmatmul.mubr.bf16.gmra.mxu0 %v1041
        %v1657 = vpop.f32.mrf.mxu0
        %v1658 = vadd.f32 %v1497, %v1657
        %v1659 = vpop.f32.mrf.mxu0
        %v1660 = vpop.f32.mrf.mxu0
        %v1661 = vadd.f32 %v1500, %v1660
        %v1662 = vpop.f32.mrf.mxu0
        %1663 = vmatprep.mubr.bf16.mxu0 %v930
        %1664 = vmatmul.mubr.bf16.gmra.mxu0 %v1045
        %v1665 = vpop.f32.mrf.mxu0
        %v1666 = vadd.f32 %v1505, %v1665
        %v1667 = vpop.f32.mrf.mxu0
        %v1668 = vpop.f32.mrf.mxu0
        %v1669 = vadd.f32 %v1508, %v1668
        %v1670 = vpop.f32.mrf.mxu0
        %1671 = vmatprep.mubr.bf16.mxu0 %v933
        %1672 = vmatmul.mubr.bf16.gmra.mxu0 %v1049
        %v1673 = vpop.f32.mrf.mxu0
        %v1674 = vadd.f32 %v1513, %v1673
        %v1675 = vpop.f32.mrf.mxu0
        %v1676 = vpop.f32.mrf.mxu0
        %v1677 = vadd.f32 %v1516, %v1676
        %v1678 = vpop.f32.mrf.mxu0
        %1679 = vmatprep.mubr.bf16.mxu0 %v936
        %1680 = vmatmul.mubr.bf16.gmra.mxu0 %v1053
        %v1681 = vpop.f32.mrf.mxu0
        %v1682 = vadd.f32 %v1521, %v1681
        %v1683 = vpop.f32.mrf.mxu0
        %v1684 = vpop.f32.mrf.mxu0
        %v1685 = vadd.f32 %v1524, %v1684
        %v1686 = vpop.f32.mrf.mxu0
        %1687 = vmatprep.mubr.bf16.mxu0 %v939
        %1688 = vmatmul.mubr.bf16.gmra.mxu0 %v1057
        %v1689 = vpop.f32.mrf.mxu0
        %v1690 = vadd.f32 %v1529, %v1689
        %v1691 = vpop.f32.mrf.mxu0
        %v1692 = vpop.f32.mrf.mxu0
        %v1693 = vadd.f32 %v1532, %v1692
        %v1694 = vpop.f32.mrf.mxu0
        %1695 = vmatprep.mubr.bf16.mxu0 %v942
        %1696 = vmatmul.mubr.bf16.gmra.mxu0 %v1061
        %v1697 = vpop.f32.mrf.mxu0
        %v1698 = vadd.f32 %v1537, %v1697
        %v1699 = vpop.f32.mrf.mxu0
        %v1700 = vpop.f32.mrf.mxu0
        %v1701 = vadd.f32 %v1540, %v1700
        %v1702 = vpop.f32.mrf.mxu0
        %1703 = vmatprep.mubr.bf16.mxu0 %v945
        %1704 = vmatmul.mubr.bf16.gmra.mxu0 %v1065
        %v1705 = vpop.f32.mrf.mxu0
        %v1706 = vadd.f32 %v1545, %v1705
        %v1707 = vpop.f32.mrf.mxu0
        %v1708 = vpop.f32.mrf.mxu0
        %v1709 = vadd.f32 %v1548, %v1708
        %v1710 = vpop.f32.mrf.mxu0
        %1711 = vmatprep.mubr.bf16.mxu0 %v1076
        %1712 = vmatmul.mubr.bf16.gmra.mxu0 %v1069
        %v1713 = vpop.f32.mrf.mxu0
        %v1714 = vadd.f32 %v1553, %v1713
        %v1715 = vpop.f32.mrf.mxu0
        %v1716 = vpop.f32.mrf.mxu0
        %v1717 = vadd.f32 %v1556, %v1716
        %v1718 = vpop.f32.mrf.mxu0
        %1719 = vmatprep.mubr.bf16.mxu0 %v900
        %1720 = vmatmul.mubr.bf16.gmra.mxu0 %v1073
        %v1721 = vpop.f32.mrf.mxu0
        %v1722 = vadd.f32 %v1561, %v1721
        %v1723 = vpop.f32.mrf.mxu0
        %v1724 = vpop.f32.mrf.mxu0
        %v1725 = vadd.f32 %v1564, %v1724
        %v1726 = vpop.f32.mrf.mxu0
        %1727 = vdwg.mxu0
        %1728 = vmatprep.subr.bf16.mxu0 0
        %1729 = vmatpush1.bf16.msra.mxu0 0
        %1730 = vmatprep.subr.bf16.mxu0 0
        %1731 = vmatpush1.bf16.msra.mxu0 0
        %1732 = vmatprep.subr.bf16.mxu0 0
        %1733 = vmatpush1.bf16.msra.mxu0 0
        %1734 = vmatprep.subr.bf16.mxu0 0
        %1735 = vmatpush1.bf16.msra.mxu0 0
        %1736 = vmatprep.subr.bf16.mxu0 0
        %1737 = vmatpush1.bf16.msra.mxu0 %v1336
        %1738 = vmatprep.subr.bf16.mxu0 0
        %1739 = vmatpush1.bf16.msra.mxu0 %v1335
        %1740 = vmatprep.subr.bf16.mxu0 0
        %1741 = vmatpush1.bf16.msra.mxu0 %v1334
        %1742 = vmatprep.subr.bf16.mxu0 0
        %1743 = vmatpush1.bf16.msra.mxu0 %v1333
        %1744 = vmatprep.subr.bf16.mxu0 0
        %1745 = vmatpush2.bf16.msra.mxu0 0
        %1746 = vmatprep.subr.bf16.mxu0 0
        %1747 = vmatpush2.bf16.msra.mxu0 0
        %1748 = vmatprep.subr.bf16.mxu0 0
        %1749 = vmatpush2.bf16.msra.mxu0 0
        %1750 = vmatprep.subr.bf16.mxu0 0
        %1751 = vmatpush2.bf16.msra.mxu0 0
        %1752 = vmatprep.subr.bf16.mxu0 0
        %1753 = vmatpush2.bf16.msra.mxu0 0
        %1754 = vmatprep.subr.bf16.mxu0 0
        %1755 = vmatpush2.bf16.msra.mxu0 0
        %1756 = vmatprep.subr.bf16.mxu0 0
        %1757 = vmatpush2.bf16.msra.mxu0 0
        %1758 = vmatprep.subr.bf16.mxu0 0
        %1759 = vmatpush2.bf16.msra.mxu0 0
        %1760 = vmatprep.mubr.bf16.mxu0 0
        %1761 = vmatmul.mubr.bf16.gmra.mxu0 %v1373
        %v1762 = vpop.f32.mrf.mxu0
        %v1763 = vadd.f32 %v1602, %v1762
        %v1764 = vpop.f32.mrf.mxu0
        %v1765 = vpop.f32.mrf.mxu0
        %v1766 = vadd.f32 %v1605, %v1765
        %v1767 = vpop.f32.mrf.mxu0
        %1768 = vmatprep.mubr.bf16.mxu0 0
        %1769 = vmatmul.mubr.bf16.gmra.mxu0 %v1375
        %v1770 = vpop.f32.mrf.mxu0
        %v1771 = vadd.f32 %v1610, %v1770
        %v1772 = vpop.f32.mrf.mxu0
        %v1773 = vpop.f32.mrf.mxu0
        %v1774 = vadd.f32 %v1613, %v1773
        %v1775 = vpop.f32.mrf.mxu0
        %1776 = vmatprep.mubr.bf16.mxu0 0
        %1777 = vmatmul.mubr.bf16.gmra.mxu0 %v1377
        %v1778 = vpop.f32.mrf.mxu0
        %v1779 = vadd.f32 %v1618, %v1778
        %v1780 = vpop.f32.mrf.mxu0
        %v1781 = vpop.f32.mrf.mxu0
        %v1782 = vadd.f32 %v1621, %v1781
        %v1783 = vpop.f32.mrf.mxu0
        %1784 = vmatprep.mubr.bf16.mxu0 0
        %1785 = vmatmul.mubr.bf16.gmra.mxu0 %v1379
        %v1786 = vpop.f32.mrf.mxu0
        %v1787 = vadd.f32 %v1626, %v1786
        %v1788 = vpop.f32.mrf.mxu0
        %v1789 = vpop.f32.mrf.mxu0
        %v1790 = vadd.f32 %v1629, %v1789
        %v1791 = vpop.f32.mrf.mxu0
        %1792 = vmatprep.mubr.bf16.mxu0 0
        %1793 = vmatmul.mubr.bf16.gmra.mxu0 %v1381
        %v1794 = vpop.f32.mrf.mxu0
        %v1795 = vadd.f32 %v1634, %v1794
        %v1796 = vpop.f32.mrf.mxu0
        %v1797 = vpop.f32.mrf.mxu0
        %v1798 = vadd.f32 %v1637, %v1797
        %v1799 = vpop.f32.mrf.mxu0
        %1800 = vmatprep.mubr.bf16.mxu0 0
        %1801 = vmatmul.mubr.bf16.gmra.mxu0 %v1383
        %v1802 = vpop.f32.mrf.mxu0
        %v1803 = vadd.f32 %v1642, %v1802
        %v1804 = vpop.f32.mrf.mxu0
        %v1805 = vpop.f32.mrf.mxu0
        %v1806 = vadd.f32 %v1645, %v1805
        %v1807 = vpop.f32.mrf.mxu0
        %1808 = vmatprep.mubr.bf16.mxu0 0
        %1809 = vmatmul.mubr.bf16.gmra.mxu0 %v1385
        %v1810 = vpop.f32.mrf.mxu0
        %v1811 = vadd.f32 %v1650, %v1810
        %v1812 = vpop.f32.mrf.mxu0
        %v1813 = vpop.f32.mrf.mxu0
        %v1814 = vadd.f32 %v1653, %v1813
        %v1815 = vpop.f32.mrf.mxu0
        %1816 = vmatprep.mubr.bf16.mxu0 0
        %1817 = vmatmul.mubr.bf16.gmra.mxu0 %v1387
        %v1818 = vpop.f32.mrf.mxu0
        %v1819 = vadd.f32 %v1658, %v1818
        %v1820 = vpop.f32.mrf.mxu0
        %v1821 = vpop.f32.mrf.mxu0
        %v1822 = vadd.f32 %v1661, %v1821
        %v1823 = vpop.f32.mrf.mxu0
        %1824 = vmatprep.mubr.bf16.mxu0 0
        %1825 = vmatmul.mubr.bf16.gmra.mxu0 %v1389
        %v1826 = vpop.f32.mrf.mxu0
        %v1827 = vadd.f32 %v1666, %v1826
        %v1828 = vpop.f32.mrf.mxu0
        %v1829 = vpop.f32.mrf.mxu0
        %v1830 = vadd.f32 %v1669, %v1829
        %v1831 = vpop.f32.mrf.mxu0
        %1832 = vmatprep.mubr.bf16.mxu0 0
        %1833 = vmatmul.mubr.bf16.gmra.mxu0 %v1391
        %v1834 = vpop.f32.mrf.mxu0
        %v1835 = vadd.f32 %v1674, %v1834
        %v1836 = vpop.f32.mrf.mxu0
        %v1837 = vpop.f32.mrf.mxu0
        %v1838 = vadd.f32 %v1677, %v1837
        %v1839 = vpop.f32.mrf.mxu0
        %1840 = vmatprep.mubr.bf16.mxu0 0
        %1841 = vmatmul.mubr.bf16.gmra.mxu0 %v1393
        %v1842 = vpop.f32.mrf.mxu0
        %v1843 = vadd.f32 %v1682, %v1842
        %v1844 = vpop.f32.mrf.mxu0
        %v1845 = vpop.f32.mrf.mxu0
        %v1846 = vadd.f32 %v1685, %v1845
        %v1847 = vpop.f32.mrf.mxu0
        %1848 = vmatprep.mubr.bf16.mxu0 0
        %1849 = vmatmul.mubr.bf16.gmra.mxu0 %v1395
        %v1850 = vpop.f32.mrf.mxu0
        %v1851 = vadd.f32 %v1690, %v1850
        %v1852 = vpop.f32.mrf.mxu0
        %v1853 = vpop.f32.mrf.mxu0
        %v1854 = vadd.f32 %v1693, %v1853
        %v1855 = vpop.f32.mrf.mxu0
        %1856 = vmatprep.mubr.bf16.mxu0 0
        %1857 = vmatmul.mubr.bf16.gmra.mxu0 %v1397
        %v1858 = vpop.f32.mrf.mxu0
        %v1859 = vadd.f32 %v1698, %v1858
        %v1860 = vpop.f32.mrf.mxu0
        %v1861 = vpop.f32.mrf.mxu0
        %v1862 = vadd.f32 %v1701, %v1861
        %v1863 = vpop.f32.mrf.mxu0
        %1864 = vmatprep.mubr.bf16.mxu0 0
        %1865 = vmatmul.mubr.bf16.gmra.mxu0 %v1399
        %v1866 = vpop.f32.mrf.mxu0
        %v1867 = vadd.f32 %v1706, %v1866
        %v1868 = vpop.f32.mrf.mxu0
        %v1869 = vpop.f32.mrf.mxu0
        %v1870 = vadd.f32 %v1709, %v1869
        %v1871 = vpop.f32.mrf.mxu0
        %1872 = vmatprep.mubr.bf16.mxu0 0
        %1873 = vmatmul.mubr.bf16.gmra.mxu0 %v1402
        %v1874 = vpop.f32.mrf.mxu0
        %v1875 = vadd.f32 %v1714, %v1874
        %v1876 = vpop.f32.mrf.mxu0
        %v1877 = vpop.f32.mrf.mxu0
        %v1878 = vadd.f32 %v1717, %v1877
        %v1879 = vpop.f32.mrf.mxu0
        %1880 = vmatprep.mubr.bf16.mxu0 0
        %1881 = vmatmul.mubr.bf16.gmra.mxu0 %v1404
        %v1882 = vpop.f32.mrf.mxu0
        %v1883 = vadd.f32 %v1722, %v1882
        %v1884 = vpop.f32.mrf.mxu0
        %v1885 = vpop.f32.mrf.mxu0
        %v1886 = vadd.f32 %v1725, %v1885
        %v1887 = vpop.f32.mrf.mxu0
        %1888 = vdwg.mxu0
        %v1889 = vmax.f32 %v1763, 0.0
        %v1890 = vmax.f32 %v1766, 0.0
        %v1891 = vmax.f32 %v1771, 0.0
        %v1892 = vmax.f32 %v1774, 0.0
        %v1893 = vmax.f32 %v1779, 0.0
        %v1894 = vmax.f32 %v1782, 0.0
        %v1895 = vmax.f32 %v1787, 0.0
        %v1896 = vmax.f32 %v1790, 0.0
        %v1897 = vmax.f32 %v1795, 0.0
        %v1898 = vmax.f32 %v1798, 0.0
        %v1899 = vmax.f32 %v1803, 0.0
        %v1900 = vmax.f32 %v1806, 0.0
        %v1901 = vmax.f32 %v1811, 0.0
        %v1902 = vmax.f32 %v1814, 0.0
        %v1903 = vmax.f32 %v1819, 0.0
        %v1904 = vmax.f32 %v1822, 0.0
        %v1905 = vmax.f32 %v1827, 0.0
        %v1906 = vmax.f32 %v1830, 0.0
        %v1907 = vmax.f32 %v1835, 0.0
        %v1908 = vmax.f32 %v1838, 0.0
        %v1909 = vmax.f32 %v1843, 0.0
        %v1910 = vmax.f32 %v1846, 0.0
        %v1911 = vmax.f32 %v1851, 0.0
        %v1912 = vmax.f32 %v1854, 0.0
        %v1913 = vmax.f32 %v1859, 0.0
        %v1914 = vmax.f32 %v1862, 0.0
        %v1915 = vmax.f32 %v1867, 0.0
        %v1916 = vmax.f32 %v1870, 0.0
        %v1917 = vmax.f32 %v1875, 0.0
        %v1918 = vmax.f32 %v1878, 0.0
        %v1919 = vmax.f32 %v1883, 0.0
        %v1920 = vmax.f32 %v1886, 0.0
        %v1921 = vpack.c.bf16 %v1890, %v1889
        %v1922 = vpack.c.bf16 %v1892, %v1891
        %v1923 = vpack.c.bf16 %v1894, %v1893
        %v1924 = vpack.c.bf16 %v1896, %v1895
        %v1925 = vpack.c.bf16 %v1898, %v1897
        %v1926 = vpack.c.bf16 %v1900, %v1899
        %v1927 = vpack.c.bf16 %v1902, %v1901
        %v1928 = vpack.c.bf16 %v1904, %v1903
        %v1929 = vpack.c.bf16 %v1906, %v1905
        %v1930 = vpack.c.bf16 %v1908, %v1907
        %v1931 = vpack.c.bf16 %v1910, %v1909
        %v1932 = vpack.c.bf16 %v1912, %v1911
        %v1933 = vpack.c.bf16 %v1914, %v1913
        %v1934 = vpack.c.bf16 %v1916, %v1915
        %v1935 = vpack.c.bf16 %v1918, %v1917
        %v1936 = vpack.c.bf16 %v1920, %v1919
        %v1938 = vshrl.u32 %v1921, 16
        %v1940 = vrot.slane %v1938, 7
        %v1941 = vshll.u32 %v1921, 16
        %v1943 = vor.u32 %v1940, %v1941
        %v1945 = vshrl.u32 %v1922, 16
        %v1947 = vrot.slane %v1945, 7
        %v1948 = vshll.u32 %v1922, 16
        %v1950 = vor.u32 %v1947, %v1948
        %v1952 = vshrl.u32 %v1923, 16
        %v1954 = vrot.slane %v1952, 7
        %v1955 = vshll.u32 %v1923, 16
        %v1957 = vor.u32 %v1954, %v1955
        %v1959 = vshrl.u32 %v1924, 16
        %v1961 = vrot.slane %v1959, 7
        %v1962 = vshll.u32 %v1924, 16
        %v1964 = vor.u32 %v1961, %v1962
        %v1966 = vshrl.u32 %v1925, 16
        %v1968 = vrot.slane %v1966, 7
        %v1969 = vshll.u32 %v1925, 16
        %v1971 = vor.u32 %v1968, %v1969
        %v1973 = vshrl.u32 %v1926, 16
        %v1975 = vrot.slane %v1973, 7
        %v1976 = vshll.u32 %v1926, 16
        %v1978 = vor.u32 %v1975, %v1976
        %v1980 = vshrl.u32 %v1927, 16
        %v1982 = vrot.slane %v1980, 7
        %v1983 = vshll.u32 %v1927, 16
        %v1985 = vor.u32 %v1982, %v1983
        %v1987 = vshrl.u32 %v1928, 16
        %v1989 = vrot.slane %v1987, 7
        %v1990 = vshll.u32 %v1928, 16
        %v1992 = vor.u32 %v1989, %v1990
        %v1994 = vshrl.u32 %v1929, 16
        %v1996 = vrot.slane %v1994, 7
        %v1997 = vshll.u32 %v1929, 16
        %v1999 = vor.u32 %v1996, %v1997
        %v2001 = vshrl.u32 %v1930, 16
        %v2003 = vrot.slane %v2001, 7
        %v2004 = vshll.u32 %v1930, 16
        %v2006 = vor.u32 %v2003, %v2004
        %v2008 = vshrl.u32 %v1931, 16
        %v2010 = vrot.slane %v2008, 7
        %v2011 = vshll.u32 %v1931, 16
        %v2013 = vor.u32 %v2010, %v2011
        %v2015 = vshrl.u32 %v1932, 16
        %v2017 = vrot.slane %v2015, 7
        %v2018 = vshll.u32 %v1932, 16
        %v2020 = vor.u32 %v2017, %v2018
        %v2022 = vshrl.u32 %v1933, 16
        %v2024 = vrot.slane %v2022, 7
        %v2025 = vshll.u32 %v1933, 16
        %v2027 = vor.u32 %v2024, %v2025
        %v2029 = vshrl.u32 %v1934, 16
        %v2031 = vrot.slane %v2029, 7
        %v2032 = vshll.u32 %v1934, 16
        %v2034 = vor.u32 %v2031, %v2032
        %v2036 = vshrl.u32 %v1935, 16
        %v2038 = vrot.slane %v2036, 7
        %v2039 = vshll.u32 %v1935, 16
        %v2041 = vor.u32 %v2038, %v2039
        %v2043 = vshrl.u32 %v1936, 16
        %v2045 = vrot.slane %v2043, 7
        %v2046 = vshll.u32 %v1936, 16
        %v2048 = vor.u32 %v2045, %v2046
        %v2081 = vsel %vm482, 0, %v1943
        %v2082 = vsel %vm482, 0, %v1950
        %v2083 = vsel %vm482, 0, %v1957
        %v2084 = vsel %vm482, 0, %v1964
        %v2085 = vsel %vm482, 0, %v1971
        %v2086 = vsel %vm482, 0, %v1978
        %v2087 = vsel %vm482, 0, %v1985
        %v2088 = vsel %vm482, 0, %v1992
        %v2089 = vsel %vm482, 0, %v1999
        %v2090 = vsel %vm482, 0, %v2006
        %v2091 = vsel %vm482, 0, %v2013
        %v2092 = vsel %vm482, 0, %v2020
        %v2093 = vsel %vm482, 0, %v2027
        %v2094 = vsel %vm482, 0, %v2034
        %v2095 = vsel %vm482, 0, %v2041
        %v2096 = vsel %vm482, 0, %v2048
        %v2097 = vsel %vm482, %v1940, 0
        %v2098 = vsel %vm482, %v1947, 0
        %v2099 = vsel %vm482, %v1954, 0
        %v2100 = vsel %vm482, %v1961, 0
        %v2101 = vsel %vm482, %v1968, 0
        %v2102 = vsel %vm482, %v1975, 0
        %v2103 = vsel %vm482, %v1982, 0
        %v2104 = vsel %vm482, %v1989, 0
        %v2105 = vsel %vm482, %v1996, 0
        %v2106 = vsel %vm482, %v2003, 0
        %v2107 = vsel %vm482, %v2010, 0
        %v2108 = vsel %vm482, %v2017, 0
        %v2109 = vsel %vm482, %v2024, 0
        %v2110 = vsel %vm482, %v2031, 0
        %v2111 = vsel %vm482, %v2038, 0
        %v2112 = vsel %vm482, %v2045, 0
        %v2114 = vshrl.u32 %v2081, 16
        %v2116 = vshll.u32 %v2081, 16
        %v2118 = vrot.slane %v2116, 1
        %v2119 = vor.u32 %v2114, %v2118
        %v2121 = vshll.u32 %v2097, 16
        %v2123 = vrot.slane %v2121, 1
        %v2124 = vsel %vm515, %v2119, %v2123
        %v2126 = vshrl.u32 %v2082, 16
        %v2128 = vshll.u32 %v2082, 16
        %v2130 = vrot.slane %v2128, 1
        %v2131 = vor.u32 %v2126, %v2130
        %v2133 = vshll.u32 %v2098, 16
        %v2135 = vrot.slane %v2133, 1
        %v2136 = vsel %vm515, %v2131, %v2135
        %v2138 = vshrl.u32 %v2083, 16
        %v2140 = vshll.u32 %v2083, 16
        %v2142 = vrot.slane %v2140, 1
        %v2143 = vor.u32 %v2138, %v2142
        %v2145 = vshll.u32 %v2099, 16
        %v2147 = vrot.slane %v2145, 1
        %v2148 = vsel %vm515, %v2143, %v2147
        %v2150 = vshrl.u32 %v2084, 16
        %v2152 = vshll.u32 %v2084, 16
        %v2154 = vrot.slane %v2152, 1
        %v2155 = vor.u32 %v2150, %v2154
        %v2157 = vshll.u32 %v2100, 16
        %v2159 = vrot.slane %v2157, 1
        %v2160 = vsel %vm515, %v2155, %v2159
        %v2162 = vshrl.u32 %v2085, 16
        %v2164 = vshll.u32 %v2085, 16
        %v2166 = vrot.slane %v2164, 1
        %v2167 = vor.u32 %v2162, %v2166
        %v2169 = vshll.u32 %v2101, 16
        %v2171 = vrot.slane %v2169, 1
        %v2172 = vsel %vm515, %v2167, %v2171
        %v2174 = vshrl.u32 %v2086, 16
        %v2176 = vshll.u32 %v2086, 16
        %v2178 = vrot.slane %v2176, 1
        %v2179 = vor.u32 %v2174, %v2178
        %v2181 = vshll.u32 %v2102, 16
        %v2183 = vrot.slane %v2181, 1
        %v2184 = vsel %vm515, %v2179, %v2183
        %v2186 = vshrl.u32 %v2087, 16
        %v2188 = vshll.u32 %v2087, 16
        %v2190 = vrot.slane %v2188, 1
        %v2191 = vor.u32 %v2186, %v2190
        %v2193 = vshll.u32 %v2103, 16
        %v2195 = vrot.slane %v2193, 1
        %v2196 = vsel %vm515, %v2191, %v2195
        %v2198 = vshrl.u32 %v2088, 16
        %v2200 = vshll.u32 %v2088, 16
        %v2202 = vrot.slane %v2200, 1
        %v2203 = vor.u32 %v2198, %v2202
        %v2205 = vshll.u32 %v2104, 16
        %v2207 = vrot.slane %v2205, 1
        %v2208 = vsel %vm515, %v2203, %v2207
        %v2210 = vshrl.u32 %v2089, 16
        %v2212 = vshll.u32 %v2089, 16
        %v2214 = vrot.slane %v2212, 1
        %v2215 = vor.u32 %v2210, %v2214
        %v2217 = vshll.u32 %v2105, 16
        %v2219 = vrot.slane %v2217, 1
        %v2220 = vsel %vm515, %v2215, %v2219
        %v2222 = vshrl.u32 %v2090, 16
        %v2224 = vshll.u32 %v2090, 16
        %v2226 = vrot.slane %v2224, 1
        %v2227 = vor.u32 %v2222, %v2226
        %v2229 = vshll.u32 %v2106, 16
        %v2231 = vrot.slane %v2229, 1
        %v2232 = vsel %vm515, %v2227, %v2231
        %v2234 = vshrl.u32 %v2091, 16
        %v2236 = vshll.u32 %v2091, 16
        %v2238 = vrot.slane %v2236, 1
        %v2239 = vor.u32 %v2234, %v2238
        %v2241 = vshll.u32 %v2107, 16
        %v2243 = vrot.slane %v2241, 1
        %v2244 = vsel %vm515, %v2239, %v2243
        %v2246 = vshrl.u32 %v2092, 16
        %v2248 = vshll.u32 %v2092, 16
        %v2250 = vrot.slane %v2248, 1
        %v2251 = vor.u32 %v2246, %v2250
        %v2253 = vshll.u32 %v2108, 16
        %v2255 = vrot.slane %v2253, 1
        %v2256 = vsel %vm515, %v2251, %v2255
        %v2258 = vshrl.u32 %v2093, 16
        %v2260 = vshll.u32 %v2093, 16
        %v2262 = vrot.slane %v2260, 1
        %v2263 = vor.u32 %v2258, %v2262
        %v2265 = vshll.u32 %v2109, 16
        %v2267 = vrot.slane %v2265, 1
        %v2268 = vsel %vm515, %v2263, %v2267
        %v2270 = vshrl.u32 %v2094, 16
        %v2272 = vshll.u32 %v2094, 16
        %v2274 = vrot.slane %v2272, 1
        %v2275 = vor.u32 %v2270, %v2274
        %v2277 = vshll.u32 %v2110, 16
        %v2279 = vrot.slane %v2277, 1
        %v2280 = vsel %vm515, %v2275, %v2279
        %v2282 = vshrl.u32 %v2095, 16
        %v2284 = vshll.u32 %v2095, 16
        %v2286 = vrot.slane %v2284, 1
        %v2287 = vor.u32 %v2282, %v2286
        %v2289 = vshll.u32 %v2111, 16
        %v2291 = vrot.slane %v2289, 1
        %v2292 = vsel %vm515, %v2287, %v2291
        %2293 = vrot.lane.b32.xlu0 %v2124, 64
        %v2294 = vpop.permute.xlu0 %2293
        %2295 = vrot.lane.b32.xlu0 %v2136, 64
        %v2296 = vpop.permute.xlu0 %2295
        %2297 = vrot.lane.b32.xlu0 %v2148, 64
        %v2298 = vpop.permute.xlu0 %2297
        %2299 = vrot.lane.b32.xlu0 %v2160, 64
        %v2300 = vpop.permute.xlu0 %2299
        %2301 = vrot.lane.b32.xlu0 %v2172, 64
        %v2302 = vpop.permute.xlu0 %2301
        %2303 = vrot.lane.b32.xlu0 %v2184, 64
        %v2304 = vpop.permute.xlu0 %2303
        %2305 = vrot.lane.b32.xlu0 %v2196, 64
        %v2306 = vpop.permute.xlu0 %2305
        %2307 = vrot.lane.b32.xlu0 %v2208, 64
        %v2308 = vpop.permute.xlu0 %2307
        %2309 = vrot.lane.b32.xlu0 %v2220, 64
        %v2310 = vpop.permute.xlu0 %2309
        %2311 = vrot.lane.b32.xlu0 %v2232, 64
        %v2312 = vpop.permute.xlu0 %2311
        %2313 = vrot.lane.b32.xlu0 %v2244, 64
        %v2314 = vpop.permute.xlu0 %2313
        %2315 = vrot.lane.b32.xlu0 %v2256, 64
        %v2316 = vpop.permute.xlu0 %2315
        %2317 = vrot.lane.b32.xlu0 %v2268, 64
        %v2318 = vpop.permute.xlu0 %2317
        %2319 = vrot.lane.b32.xlu0 %v2280, 64
        %v2320 = vpop.permute.xlu0 %2319
        %2321 = vrot.lane.b32.xlu0 %v2292, 64
        %v2322 = vpop.permute.xlu0 %2321
        %v2353 = vrot.slane %v2081, 1
        %v2354 = vrot.slane %v2097, 1
        %v2355 = vsel %vm767, %v2353, %v2354
        %v2356 = vrot.slane %v2082, 1
        %v2357 = vrot.slane %v2098, 1
        %v2358 = vsel %vm767, %v2356, %v2357
        %v2359 = vrot.slane %v2083, 1
        %v2360 = vrot.slane %v2099, 1
        %v2361 = vsel %vm767, %v2359, %v2360
        %v2362 = vrot.slane %v2084, 1
        %v2363 = vrot.slane %v2100, 1
        %v2364 = vsel %vm767, %v2362, %v2363
        %v2365 = vrot.slane %v2085, 1
        %v2366 = vrot.slane %v2101, 1
        %v2367 = vsel %vm767, %v2365, %v2366
        %v2368 = vrot.slane %v2086, 1
        %v2369 = vrot.slane %v2102, 1
        %v2370 = vsel %vm767, %v2368, %v2369
        %v2371 = vrot.slane %v2087, 1
        %v2372 = vrot.slane %v2103, 1
        %v2373 = vsel %vm767, %v2371, %v2372
        %v2374 = vrot.slane %v2088, 1
        %v2375 = vrot.slane %v2104, 1
        %v2376 = vsel %vm767, %v2374, %v2375
        %v2377 = vrot.slane %v2089, 1
        %v2378 = vrot.slane %v2105, 1
        %v2379 = vsel %vm767, %v2377, %v2378
        %v2380 = vrot.slane %v2090, 1
        %v2381 = vrot.slane %v2106, 1
        %v2382 = vsel %vm767, %v2380, %v2381
        %v2383 = vrot.slane %v2091, 1
        %v2384 = vrot.slane %v2107, 1
        %v2385 = vsel %vm767, %v2383, %v2384
        %v2386 = vrot.slane %v2092, 1
        %v2387 = vrot.slane %v2108, 1
        %v2388 = vsel %vm767, %v2386, %v2387
        %v2389 = vrot.slane %v2093, 1
        %v2390 = vrot.slane %v2109, 1
        %v2391 = vsel %vm767, %v2389, %v2390
        %v2392 = vrot.slane %v2094, 1
        %v2393 = vrot.slane %v2110, 1
        %v2394 = vsel %vm767, %v2392, %v2393
        %v2395 = vrot.slane %v2095, 1
        %v2396 = vrot.slane %v2111, 1
        %v2397 = vsel %vm767, %v2395, %v2396
        %2399 = vrot.lane.b32.xlu0 %v2081, 64
        %v2400 = vpop.permute.xlu0 %2399
        %2401 = vrot.lane.b32.xlu0 %v2082, 64
        %v2402 = vpop.permute.xlu0 %2401
        %2403 = vrot.lane.b32.xlu0 %v2083, 64
        %v2404 = vpop.permute.xlu0 %2403
        %2405 = vrot.lane.b32.xlu0 %v2084, 64
        %v2406 = vpop.permute.xlu0 %2405
        %2407 = vrot.lane.b32.xlu0 %v2085, 64
        %v2408 = vpop.permute.xlu0 %2407
        %2409 = vrot.lane.b32.xlu0 %v2086, 64
        %v2410 = vpop.permute.xlu0 %2409
        %2411 = vrot.lane.b32.xlu0 %v2087, 64
        %v2412 = vpop.permute.xlu0 %2411
        %2413 = vrot.lane.b32.xlu0 %v2088, 64
        %v2414 = vpop.permute.xlu0 %2413
        %2415 = vrot.lane.b32.xlu0 %v2089, 64
        %v2416 = vpop.permute.xlu0 %2415
        %2417 = vrot.lane.b32.xlu0 %v2090, 64
        %v2418 = vpop.permute.xlu0 %2417
        %2419 = vrot.lane.b32.xlu0 %v2091, 64
        %v2420 = vpop.permute.xlu0 %2419
        %2421 = vrot.lane.b32.xlu0 %v2092, 64
        %v2422 = vpop.permute.xlu0 %2421
        %2423 = vrot.lane.b32.xlu0 %v2093, 64
        %v2424 = vpop.permute.xlu0 %2423
        %2425 = vrot.lane.b32.xlu0 %v2094, 64
        %v2426 = vpop.permute.xlu0 %2425
        %2427 = vrot.lane.b32.xlu0 %v2095, 64
        %v2428 = vpop.permute.xlu0 %2427
        %2429 = vrot.lane.b32.xlu0 %v2096, 64
        %v2430 = vpop.permute.xlu0 %2429
        %v2432 = vshrl.u32 %v2096, 16
        %v2434 = vshll.u32 %v2096, 16
        %v2436 = vrot.slane %v2434, 1
        %v2437 = vor.u32 %v2432, %v2436
        %v2439 = vshll.u32 %v2112, 16
        %v2441 = vrot.slane %v2439, 1
        %v2442 = vsel %vm515, %v2437, %v2441
        %v2444 = vrot.slane %v2096, 1
        %v2445 = vrot.slane %v2112, 1
        %v2446 = vsel %vm767, %v2444, %v2445
        %2447 = vrot.lane.b32.xlu0 %v2355, 64
        %v2448 = vpop.permute.xlu0 %2447
        %2449 = vrot.lane.b32.xlu0 %v2358, 64
        %v2450 = vpop.permute.xlu0 %2449
        %2451 = vrot.lane.b32.xlu0 %v2361, 64
        %v2452 = vpop.permute.xlu0 %2451
        %2453 = vrot.lane.b32.xlu0 %v2364, 64
        %v2454 = vpop.permute.xlu0 %2453
        %2455 = vrot.lane.b32.xlu0 %v2367, 64
        %v2456 = vpop.permute.xlu0 %2455
        %2457 = vrot.lane.b32.xlu0 %v2370, 64
        %v2458 = vpop.permute.xlu0 %2457
        %2459 = vrot.lane.b32.xlu0 %v2373, 64
        %v2460 = vpop.permute.xlu0 %2459
        %2461 = vrot.lane.b32.xlu0 %v2376, 64
        %v2462 = vpop.permute.xlu0 %2461
        %2463 = vrot.lane.b32.xlu0 %v2379, 64
        %v2464 = vpop.permute.xlu0 %2463
        %2465 = vrot.lane.b32.xlu0 %v2382, 64
        %v2466 = vpop.permute.xlu0 %2465
        %2467 = vrot.lane.b32.xlu0 %v2385, 64
        %v2468 = vpop.permute.xlu0 %2467
        %2469 = vrot.lane.b32.xlu0 %v2388, 64
        %v2470 = vpop.permute.xlu0 %2469
        %2471 = vrot.lane.b32.xlu0 %v2391, 64
        %v2472 = vpop.permute.xlu0 %2471
        %2473 = vrot.lane.b32.xlu0 %v2394, 64
        %v2474 = vpop.permute.xlu0 %2473
        %2475 = vrot.lane.b32.xlu0 %v2397, 64
        %v2476 = vpop.permute.xlu0 %2475
        %2477 = vrot.lane.b32.xlu0 %v2446, 64
        %v2478 = vpop.permute.xlu0 %2477
        %2479 = vrot.lane.b32.xlu0 %v2442, 64
        %v2480 = vpop.permute.xlu0 %2479
        %v2482 = vsel %vm898, %v2081, %v2294
        %v2485 = vsel %vm898, %v2082, %v2296
        %v2488 = vsel %vm898, %v2083, %v2298
        %v2491 = vsel %vm898, %v2084, %v2300
        %v2494 = vsel %vm898, %v2085, %v2302
        %v2497 = vsel %vm898, %v2086, %v2304
        %v2500 = vsel %vm898, %v2087, %v2306
        %v2503 = vsel %vm898, %v2088, %v2308
        %v2506 = vsel %vm898, %v2089, %v2310
        %v2509 = vsel %vm898, %v2090, %v2312
        %v2512 = vsel %vm898, %v2091, %v2314
        %v2515 = vsel %vm898, %v2092, %v2316
        %v2518 = vsel %vm898, %v2093, %v2318
        %v2521 = vsel %vm898, %v2094, %v2320
        %v2524 = vsel %vm898, %v2095, %v2322
        %v2527 = vsel %vm898, %v769, %v2400
        %v2531 = vsel %vm898, %v2355, %v2402
        %v2535 = vsel %vm898, %v2358, %v2404
        %v2539 = vsel %vm898, %v2361, %v2406
        %v2543 = vsel %vm898, %v2364, %v2408
        %v2547 = vsel %vm898, %v2367, %v2410
        %v2551 = vsel %vm898, %v2370, %v2412
        %v2555 = vsel %vm898, %v2373, %v2414
        %v2559 = vsel %vm898, %v2376, %v2416
        %v2563 = vsel %vm898, %v2379, %v2418
        %v2567 = vsel %vm898, %v2382, %v2420
        %v2571 = vsel %vm898, %v2385, %v2422
        %v2575 = vsel %vm898, %v2388, %v2424
        %v2579 = vsel %vm898, %v2391, %v2426
        %v2583 = vsel %vm898, %v2394, %v2428
        %v2587 = vsel %vm898, %v2397, %v2430
        %v2591 = vsel %vm898, %v2124, %v2448
        %v2595 = vsel %vm898, %v2136, %v2450
        %v2599 = vsel %vm898, %v2148, %v2452
        %v2603 = vsel %vm898, %v2160, %v2454
        %v2607 = vsel %vm898, %v2172, %v2456
        %v2611 = vsel %vm898, %v2184, %v2458
        %v2615 = vsel %vm898, %v2196, %v2460
        %v2619 = vsel %vm898, %v2208, %v2462
        %v2623 = vsel %vm898, %v2220, %v2464
        %v2627 = vsel %vm898, %v2232, %v2466
        %v2631 = vsel %vm898, %v2244, %v2468
        %v2635 = vsel %vm898, %v2256, %v2470
        %v2639 = vsel %vm898, %v2268, %v2472
        %v2643 = vsel %vm898, %v2280, %v2474
        %v2647 = vsel %vm898, %v2292, %v2476
        %v2651 = vsel %vm898, %v2442, %v2478
        %v2654 = vsel %vm898, %v2096, %v2480
        %v2656 = vld [vmem:[%s3] sm:$0xf]
        %v2657 = vld [vmem:[%s3 + $0x4] sm:$0xf]
        %v2658 = vld [vmem:[%s3 + $0x8] sm:$0xf]
        %v2659 = vld [vmem:[%s3 + $0xc] sm:$0xf]
        %v2660 = vld [vmem:[%s3 + $0x10] sm:$0xf]
        %v2661 = vld [vmem:[%s3 + $0x14] sm:$0xf]
        %v2662 = vld [vmem:[%s3 + $0x18] sm:$0xf]
        %v2663 = vld [vmem:[%s3 + $0x1c] sm:$0xf]
        %v2664 = vld [vmem:[%s3 + $0x20] sm:$0xf]
        %v2665 = vld [vmem:[%s3 + $0x24] sm:$0xf]
        %v2666 = vld [vmem:[%s3 + $0x28] sm:$0xf]
        %v2667 = vld [vmem:[%s3 + $0x2c] sm:$0xf]
        %v2668 = vld [vmem:[%s3 + $0x30] sm:$0xf]
        %v2669 = vld [vmem:[%s3 + $0x34] sm:$0xf]
        %v2670 = vld [vmem:[%s3 + $0x38] sm:$0xf]
        %v2671 = vld [vmem:[%s3 + $0x3c] sm:$0xf]
        %v2672 = vld [vmem:[%s3 + $0x40] sm:$0xf]
        %v2673 = vld [vmem:[%s3 + $0x44] sm:$0xf]
        %v2674 = vld [vmem:[%s3 + $0x48] sm:$0xf]
        %v2675 = vld [vmem:[%s3 + $0x4c] sm:$0xf]
        %v2676 = vld [vmem:[%s3 + $0x50] sm:$0xf]
        %v2677 = vld [vmem:[%s3 + $0x54] sm:$0xf]
        %v2678 = vld [vmem:[%s3 + $0x58] sm:$0xf]
        %v2679 = vld [vmem:[%s3 + $0x5c] sm:$0xf]
        %v2680 = vld [vmem:[%s3 + $0x60] sm:$0xf]
        %v2681 = vld [vmem:[%s3 + $0x64] sm:$0xf]
        %v2682 = vld [vmem:[%s3 + $0x68] sm:$0xf]
        %v2683 = vld [vmem:[%s3 + $0x6c] sm:$0xf]
        %v2684 = vld [vmem:[%s3 + $0x70] sm:$0xf]
        %v2685 = vld [vmem:[%s3 + $0x74] sm:$0xf]
        %v2686 = vld [vmem:[%s3 + $0x78] sm:$0xf]
        %v2687 = vld [vmem:[%s3 + $0x7c] sm:$0xf]
        %v2688 = vld [vmem:[%s3 + $0x80] sm:$0xf]
        %v2689 = vld [vmem:[%s3 + $0x84] sm:$0xf]
        %v2690 = vld [vmem:[%s3 + $0x88] sm:$0xf]
        %v2691 = vld [vmem:[%s3 + $0x8c] sm:$0xf]
        %v2692 = vld [vmem:[%s3 + $0x90] sm:$0xf]
        %v2693 = vld [vmem:[%s3 + $0x94] sm:$0xf]
        %v2694 = vld [vmem:[%s3 + $0x98] sm:$0xf]
        %v2695 = vld [vmem:[%s3 + $0x9c] sm:$0xf]
        %v2696 = vld [vmem:[%s3 + $0xa0] sm:$0xf]
        %v2697 = vld [vmem:[%s3 + $0xa4] sm:$0xf]
        %v2698 = vld [vmem:[%s3 + $0xa8] sm:$0xf]
        %v2699 = vld [vmem:[%s3 + $0xac] sm:$0xf]
        %v2700 = vld [vmem:[%s3 + $0xb0] sm:$0xf]
        %v2701 = vld [vmem:[%s3 + $0xb4] sm:$0xf]
        %v2702 = vld [vmem:[%s3 + $0xb8] sm:$0xf]
        %v2703 = vld [vmem:[%s3 + $0xbc] sm:$0xf]
        %v2704 = vld [vmem:[%s3 + $0xc0] sm:$0xf]
        %v2705 = vld [vmem:[%s3 + $0xc4] sm:$0xf]
        %v2706 = vld [vmem:[%s3 + $0xc8] sm:$0xf]
        %v2707 = vld [vmem:[%s3 + $0xcc] sm:$0xf]
        %v2708 = vld [vmem:[%s3 + $0xd0] sm:$0xf]
        %v2709 = vld [vmem:[%s3 + $0xd4] sm:$0xf]
        %v2710 = vld [vmem:[%s3 + $0xd8] sm:$0xf]
        %v2711 = vld [vmem:[%s3 + $0xdc] sm:$0xf]
        %v2712 = vld [vmem:[%s3 + $0xe0] sm:$0xf]
        %v2713 = vld [vmem:[%s3 + $0xe4] sm:$0xf]
        %v2714 = vld [vmem:[%s3 + $0xe8] sm:$0xf]
        %v2715 = vld [vmem:[%s3 + $0xec] sm:$0xf]
        %v2716 = vld [vmem:[%s3 + $0xf0] sm:$0xf]
        %v2717 = vld [vmem:[%s3 + $0xf4] sm:$0xf]
        %v2718 = vld [vmem:[%s3 + $0xf8] sm:$0xf]
        %v2719 = vld [vmem:[%s3 + $0xfc] sm:$0xf]
        %v2720 = vld [vmem:[%s3 + $0x100] sm:$0xf]
        %v2721 = vld [vmem:[%s3 + $0x104] sm:$0xf]
        %v2722 = vld [vmem:[%s3 + $0x108] sm:$0xf]
        %v2723 = vld [vmem:[%s3 + $0x10c] sm:$0xf]
        %v2724 = vld [vmem:[%s3 + $0x110] sm:$0xf]
        %v2725 = vld [vmem:[%s3 + $0x114] sm:$0xf]
        %v2726 = vld [vmem:[%s3 + $0x118] sm:$0xf]
        %v2727 = vld [vmem:[%s3 + $0x11c] sm:$0xf]
        %v2728 = vld [vmem:[%s4] sm:$0x1]
        %v2730 = vlaneseq
        %v2731 = vshrl.u32 %v2730, 7
        %v2732 = vsub.s32 0, %v2731
        %v2733 = vrot.slane %v2728, %v2732
        %v2807 = vunpack.c.l.b16 %v2656
        %v2808 = vunpack.c.l.b16 %v2657
        %v2809 = vunpack.c.l.b16 %v2658
        %v2810 = vunpack.c.l.b16 %v2659
        %v2811 = vunpack.c.l.b16 %v2660
        %v2812 = vunpack.c.l.b16 %v2661
        %v2813 = vunpack.c.l.b16 %v2662
        %v2814 = vunpack.c.l.b16 %v2663
        %v2815 = vunpack.c.l.b16 %v2664
        %v2816 = vunpack.c.l.b16 %v2665
        %v2817 = vunpack.c.l.b16 %v2666
        %v2818 = vunpack.c.l.b16 %v2667
        %v2819 = vunpack.c.l.b16 %v2668
        %v2820 = vunpack.c.l.b16 %v2669
        %v2821 = vunpack.c.l.b16 %v2670
        %v2822 = vunpack.c.l.b16 %v2671
        %v2823 = vunpack.c.l.b16 %v2672
        %v2824 = vunpack.c.l.b16 %v2673
        %v2825 = vunpack.c.l.b16 %v2674
        %v2826 = vunpack.c.l.b16 %v2675
        %v2827 = vunpack.c.l.b16 %v2676
        %v2828 = vunpack.c.l.b16 %v2677
        %v2829 = vunpack.c.l.b16 %v2678
        %v2830 = vunpack.c.l.b16 %v2679
        %v2831 = vunpack.c.l.b16 %v2680
        %v2832 = vunpack.c.l.b16 %v2681
        %v2833 = vunpack.c.l.b16 %v2682
        %v2834 = vunpack.c.l.b16 %v2683
        %v2835 = vunpack.c.l.b16 %v2684
        %v2836 = vunpack.c.l.b16 %v2685
        %v2837 = vunpack.c.l.b16 %v2686
        %v2838 = vunpack.c.l.b16 %v2687
        %v2839 = vunpack.c.l.b16 %v2688
        %v2840 = vunpack.c.l.b16 %v2689
        %v2841 = vunpack.c.l.b16 %v2690
        %v2842 = vunpack.c.l.b16 %v2691
        %v2843 = vunpack.c.l.b16 %v2692
        %v2844 = vunpack.c.l.b16 %v2693
        %v2845 = vunpack.c.l.b16 %v2694
        %v2846 = vunpack.c.l.b16 %v2695
        %v2847 = vunpack.c.l.b16 %v2696
        %v2848 = vunpack.c.l.b16 %v2697
        %v2849 = vunpack.c.l.b16 %v2698
        %v2850 = vunpack.c.l.b16 %v2699
        %v2851 = vunpack.c.l.b16 %v2700
        %v2852 = vunpack.c.l.b16 %v2701
        %v2853 = vunpack.c.l.b16 %v2702
        %v2854 = vunpack.c.l.b16 %v2703
        %v2855 = vunpack.c.l.b16 %v2704
        %v2856 = vunpack.c.l.b16 %v2705
        %v2857 = vunpack.c.l.b16 %v2706
        %v2858 = vunpack.c.l.b16 %v2707
        %v2859 = vunpack.c.l.b16 %v2708
        %v2860 = vunpack.c.l.b16 %v2709
        %v2861 = vunpack.c.l.b16 %v2710
        %v2862 = vunpack.c.l.b16 %v2711
        %v2863 = vunpack.c.l.b16 %v2712
        %v2864 = vunpack.c.l.b16 %v2713
        %v2865 = vunpack.c.l.b16 %v2714
        %v2866 = vunpack.c.l.b16 %v2715
        %v2867 = vunpack.c.l.b16 %v2716
        %v2868 = vunpack.c.l.b16 %v2717
        %v2869 = vunpack.c.l.b16 %v2718
        %v2870 = vunpack.c.l.b16 %v2719
        %v2871 = vunpack.c.l.b16 %v2720
        %v2872 = vunpack.c.l.b16 %v2721
        %v2873 = vunpack.c.l.b16 %v2722
        %v2874 = vunpack.c.l.b16 %v2723
        %v2875 = vunpack.c.l.b16 %v2724
        %v2876 = vunpack.c.l.b16 %v2725
        %v2877 = vunpack.c.l.b16 %v2726
        %v2878 = vunpack.c.l.b16 %v2727
        %v2879 = vpack.c.b16 %v2808, %v2807
        %v2880 = vpack.c.b16 %v2810, %v2809
        %v2881 = vpack.c.b16 %v2812, %v2811
        %v2882 = vpack.c.b16 %v2814, %v2813
        %v2883 = vpack.c.b16 %v2816, %v2815
        %v2884 = vpack.c.b16 %v2818, %v2817
        %v2885 = vpack.c.b16 %v2820, %v2819
        %v2886 = vpack.c.b16 %v2822, %v2821
        %v2887 = vpack.c.b16 %v2824, %v2823
        %v2888 = vpack.c.b16 %v2826, %v2825
        %v2889 = vpack.c.b16 %v2828, %v2827
        %v2890 = vpack.c.b16 %v2830, %v2829
        %v2891 = vpack.c.b16 %v2832, %v2831
        %v2892 = vpack.c.b16 %v2834, %v2833
        %v2893 = vpack.c.b16 %v2836, %v2835
        %v2894 = vpack.c.b16 %v2838, %v2837
        %v2895 = vpack.c.b16 %v2840, %v2839
        %v2896 = vpack.c.b16 %v2842, %v2841
        %v2897 = vpack.c.b16 %v2844, %v2843
        %v2898 = vpack.c.b16 %v2846, %v2845
        %v2899 = vpack.c.b16 %v2848, %v2847
        %v2900 = vpack.c.b16 %v2850, %v2849
        %v2901 = vpack.c.b16 %v2852, %v2851
        %v2902 = vpack.c.b16 %v2854, %v2853
        %v2903 = vpack.c.b16 %v2856, %v2855
        %v2904 = vpack.c.b16 %v2858, %v2857
        %v2905 = vpack.c.b16 %v2860, %v2859
        %v2906 = vpack.c.b16 %v2862, %v2861
        %v2907 = vpack.c.b16 %v2864, %v2863
        %v2908 = vpack.c.b16 %v2866, %v2865
        %v2909 = vpack.c.b16 %v2868, %v2867
        %v2910 = vpack.c.b16 %v2870, %v2869
        %v2911 = vpack.c.b16 %v2872, %v2871
        %v2912 = vpack.c.b16 %v2874, %v2873
        %v2913 = vpack.c.b16 %v2876, %v2875
        %v2914 = vpack.c.b16 %v2878, %v2877
        %v2951 = vsel %vm898, %v2358, 0
        %v2953 = vsel %vm898, %v2361, 0
        %v2955 = vsel %vm898, %v2364, 0
        %v2957 = vsel %vm898, %v2367, 0
        %v2959 = vsel %vm898, %v2370, 0
        %v2961 = vsel %vm898, %v2373, 0
        %v2963 = vsel %vm898, %v2376, 0
        %v2965 = vsel %vm898, %v2379, 0
        %v2967 = vsel %vm898, %v2382, 0
        %v2969 = vsel %vm898, %v2385, 0
        %v2971 = vsel %vm898, %v2388, 0
        %v2973 = vsel %vm898, %v2391, 0
        %v2975 = vsel %vm898, %v2394, 0
        %v2977 = vsel %vm898, %v2397, 0
        %v2980 = vsel %vm898, %v2446, 0
        %2982 = vmatprep.subr.bf16.mxu0 0
        %2983 = vmatpush1.bf16.msra.mxu0 %v2886
        %2984 = vmatprep.subr.bf16.mxu0 0
        %2985 = vmatpush1.bf16.msra.mxu0 %v2885
        %2986 = vmatprep.subr.bf16.mxu0 0
        %2987 = vmatpush1.bf16.msra.mxu0 %v2884
        %2988 = vmatprep.subr.bf16.mxu0 0
        %2989 = vmatpush1.bf16.msra.mxu0 %v2883
        %2990 = vmatprep.subr.bf16.mxu0 0
        %2991 = vmatpush1.bf16.msra.mxu0 %v2882
        %2992 = vmatprep.subr.bf16.mxu0 0
        %2993 = vmatpush1.bf16.msra.mxu0 %v2881
        %2994 = vmatprep.subr.bf16.mxu0 0
        %2995 = vmatpush1.bf16.msra.mxu0 %v2880
        %2996 = vmatprep.subr.bf16.mxu0 0
        %2997 = vmatpush1.bf16.msra.mxu0 %v2879
        %2998 = vmatprep.subr.bf16.mxu0 0
        %2999 = vmatpush2.bf16.msra.mxu0 %v2894
        %3000 = vmatprep.subr.bf16.mxu0 0
        %3001 = vmatpush2.bf16.msra.mxu0 %v2893
        %3002 = vmatprep.subr.bf16.mxu0 0
        %3003 = vmatpush2.bf16.msra.mxu0 %v2892
        %3004 = vmatprep.subr.bf16.mxu0 0
        %3005 = vmatpush2.bf16.msra.mxu0 %v2891
        %3006 = vmatprep.subr.bf16.mxu0 0
        %3007 = vmatpush2.bf16.msra.mxu0 %v2890
        %3008 = vmatprep.subr.bf16.mxu0 0
        %3009 = vmatpush2.bf16.msra.mxu0 %v2889
        %3010 = vmatprep.subr.bf16.mxu0 0
        %3011 = vmatpush2.bf16.msra.mxu0 %v2888
        %3012 = vmatprep.subr.bf16.mxu0 0
        %3013 = vmatpush2.bf16.msra.mxu0 %v2887
        %3014 = vmatprep.mubr.bf16.mxu0 %v2527
        %3015 = vmatmul.mubr.bf16.gmra.mxu0 %v900
        %v3016 = vpop.f32.mrf.mxu0
        %v3017 = vadd.f32 %v2733, %v3016
        %v3018 = vpop.f32.mrf.mxu0
        %v3019 = vpop.f32.mrf.mxu0
        %v3020 = vadd.f32 %v2733, %v3019
        %v3021 = vpop.f32.mrf.mxu0
        %3022 = vmatprep.mubr.bf16.mxu0 %v2531
        %3023 = vmatmul.mubr.bf16.gmra.mxu0 %v2482
        %v3024 = vpop.f32.mrf.mxu0
        %v3025 = vadd.f32 %v2733, %v3024
        %v3026 = vpop.f32.mrf.mxu0
        %v3027 = vpop.f32.mrf.mxu0
        %v3028 = vadd.f32 %v2733, %v3027
        %v3029 = vpop.f32.mrf.mxu0
        %3030 = vmatprep.mubr.bf16.mxu0 %v2535
        %3031 = vmatmul.mubr.bf16.gmra.mxu0 %v2485
        %v3032 = vpop.f32.mrf.mxu0
        %v3033 = vadd.f32 %v2733, %v3032
        %v3034 = vpop.f32.mrf.mxu0
        %v3035 = vpop.f32.mrf.mxu0
        %v3036 = vadd.f32 %v2733, %v3035
        %v3037 = vpop.f32.mrf.mxu0
        %3038 = vmatprep.mubr.bf16.mxu0 %v2539
        %3039 = vmatmul.mubr.bf16.gmra.mxu0 %v2488
        %v3040 = vpop.f32.mrf.mxu0
        %v3041 = vadd.f32 %v2733, %v3040
        %v3042 = vpop.f32.mrf.mxu0
        %v3043 = vpop.f32.mrf.mxu0
        %v3044 = vadd.f32 %v2733, %v3043
        %v3045 = vpop.f32.mrf.mxu0
        %3046 = vmatprep.mubr.bf16.mxu0 %v2543
        %3047 = vmatmul.mubr.bf16.gmra.mxu0 %v2491
        %v3048 = vpop.f32.mrf.mxu0
        %v3049 = vadd.f32 %v2733, %v3048
        %v3050 = vpop.f32.mrf.mxu0
        %v3051 = vpop.f32.mrf.mxu0
        %v3052 = vadd.f32 %v2733, %v3051
        %v3053 = vpop.f32.mrf.mxu0
        %3054 = vmatprep.mubr.bf16.mxu0 %v2547
        %3055 = vmatmul.mubr.bf16.gmra.mxu0 %v2494
        %v3056 = vpop.f32.mrf.mxu0
        %v3057 = vadd.f32 %v2733, %v3056
        %v3058 = vpop.f32.mrf.mxu0
        %v3059 = vpop.f32.mrf.mxu0
        %v3060 = vadd.f32 %v2733, %v3059
        %v3061 = vpop.f32.mrf.mxu0
        %3062 = vmatprep.mubr.bf16.mxu0 %v2551
        %3063 = vmatmul.mubr.bf16.gmra.mxu0 %v2497
        %v3064 = vpop.f32.mrf.mxu0
        %v3065 = vadd.f32 %v2733, %v3064
        %v3066 = vpop.f32.mrf.mxu0
        %v3067 = vpop.f32.mrf.mxu0
        %v3068 = vadd.f32 %v2733, %v3067
        %v3069 = vpop.f32.mrf.mxu0
        %3070 = vmatprep.mubr.bf16.mxu0 %v2555
        %3071 = vmatmul.mubr.bf16.gmra.mxu0 %v2500
        %v3072 = vpop.f32.mrf.mxu0
        %v3073 = vadd.f32 %v2733, %v3072
        %v3074 = vpop.f32.mrf.mxu0
        %v3075 = vpop.f32.mrf.mxu0
        %v3076 = vadd.f32 %v2733, %v3075
        %v3077 = vpop.f32.mrf.mxu0
        %3078 = vmatprep.mubr.bf16.mxu0 %v2559
        %3079 = vmatmul.mubr.bf16.gmra.mxu0 %v2503
        %v3080 = vpop.f32.mrf.mxu0
        %v3081 = vadd.f32 %v2733, %v3080
        %v3082 = vpop.f32.mrf.mxu0
        %v3083 = vpop.f32.mrf.mxu0
        %v3084 = vadd.f32 %v2733, %v3083
        %v3085 = vpop.f32.mrf.mxu0
        %3086 = vmatprep.mubr.bf16.mxu0 %v2563
        %3087 = vmatmul.mubr.bf16.gmra.mxu0 %v2506
        %v3088 = vpop.f32.mrf.mxu0
        %v3089 = vadd.f32 %v2733, %v3088
        %v3090 = vpop.f32.mrf.mxu0
        %v3091 = vpop.f32.mrf.mxu0
        %v3092 = vadd.f32 %v2733, %v3091
        %v3093 = vpop.f32.mrf.mxu0
        %3094 = vmatprep.mubr.bf16.mxu0 %v2567
        %3095 = vmatmul.mubr.bf16.gmra.mxu0 %v2509
        %v3096 = vpop.f32.mrf.mxu0
        %v3097 = vadd.f32 %v2733, %v3096
        %v3098 = vpop.f32.mrf.mxu0
        %v3099 = vpop.f32.mrf.mxu0
        %v3100 = vadd.f32 %v2733, %v3099
        %v3101 = vpop.f32.mrf.mxu0
        %3102 = vmatprep.mubr.bf16.mxu0 %v2571
        %3103 = vmatmul.mubr.bf16.gmra.mxu0 %v2512
        %v3104 = vpop.f32.mrf.mxu0
        %v3105 = vadd.f32 %v2733, %v3104
        %v3106 = vpop.f32.mrf.mxu0
        %v3107 = vpop.f32.mrf.mxu0
        %v3108 = vadd.f32 %v2733, %v3107
        %v3109 = vpop.f32.mrf.mxu0
        %3110 = vmatprep.mubr.bf16.mxu0 %v2575
        %3111 = vmatmul.mubr.bf16.gmra.mxu0 %v2515
        %v3112 = vpop.f32.mrf.mxu0
        %v3113 = vadd.f32 %v2733, %v3112
        %v3114 = vpop.f32.mrf.mxu0
        %v3115 = vpop.f32.mrf.mxu0
        %v3116 = vadd.f32 %v2733, %v3115
        %v3117 = vpop.f32.mrf.mxu0
        %3118 = vmatprep.mubr.bf16.mxu0 %v2579
        %3119 = vmatmul.mubr.bf16.gmra.mxu0 %v2518
        %v3120 = vpop.f32.mrf.mxu0
        %v3121 = vadd.f32 %v2733, %v3120
        %v3122 = vpop.f32.mrf.mxu0
        %v3123 = vpop.f32.mrf.mxu0
        %v3124 = vadd.f32 %v2733, %v3123
        %v3125 = vpop.f32.mrf.mxu0
        %3126 = vmatprep.mubr.bf16.mxu0 %v2583
        %3127 = vmatmul.mubr.bf16.gmra.mxu0 %v2521
        %v3128 = vpop.f32.mrf.mxu0
        %v3129 = vadd.f32 %v2733, %v3128
        %v3130 = vpop.f32.mrf.mxu0
        %v3131 = vpop.f32.mrf.mxu0
        %v3132 = vadd.f32 %v2733, %v3131
        %v3133 = vpop.f32.mrf.mxu0
        %3134 = vmatprep.mubr.bf16.mxu0 %v2587
        %3135 = vmatmul.mubr.bf16.gmra.mxu0 %v2524
        %v3136 = vpop.f32.mrf.mxu0
        %v3137 = vadd.f32 %v2733, %v3136
        %v3138 = vpop.f32.mrf.mxu0
        %v3139 = vpop.f32.mrf.mxu0
        %v3140 = vadd.f32 %v2733, %v3139
        %v3141 = vpop.f32.mrf.mxu0
        %3142 = vdwg.mxu0
        %3143 = vmatprep.subr.bf16.mxu0 0
        %3144 = vmatpush1.bf16.msra.mxu0 %v2902
        %3145 = vmatprep.subr.bf16.mxu0 0
        %3146 = vmatpush1.bf16.msra.mxu0 %v2901
        %3147 = vmatprep.subr.bf16.mxu0 0
        %3148 = vmatpush1.bf16.msra.mxu0 %v2900
        %3149 = vmatprep.subr.bf16.mxu0 0
        %3150 = vmatpush1.bf16.msra.mxu0 %v2899
        %3151 = vmatprep.subr.bf16.mxu0 0
        %3152 = vmatpush1.bf16.msra.mxu0 %v2898
        %3153 = vmatprep.subr.bf16.mxu0 0
        %3154 = vmatpush1.bf16.msra.mxu0 %v2897
        %3155 = vmatprep.subr.bf16.mxu0 0
        %3156 = vmatpush1.bf16.msra.mxu0 %v2896
        %3157 = vmatprep.subr.bf16.mxu0 0
        %3158 = vmatpush1.bf16.msra.mxu0 %v2895
        %3159 = vmatprep.subr.bf16.mxu0 0
        %3160 = vmatpush2.bf16.msra.mxu0 %v2910
        %3161 = vmatprep.subr.bf16.mxu0 0
        %3162 = vmatpush2.bf16.msra.mxu0 %v2909
        %3163 = vmatprep.subr.bf16.mxu0 0
        %3164 = vmatpush2.bf16.msra.mxu0 %v2908
        %3165 = vmatprep.subr.bf16.mxu0 0
        %3166 = vmatpush2.bf16.msra.mxu0 %v2907
        %3167 = vmatprep.subr.bf16.mxu0 0
        %3168 = vmatpush2.bf16.msra.mxu0 %v2906
        %3169 = vmatprep.subr.bf16.mxu0 0
        %3170 = vmatpush2.bf16.msra.mxu0 %v2905
        %3171 = vmatprep.subr.bf16.mxu0 0
        %3172 = vmatpush2.bf16.msra.mxu0 %v2904
        %3173 = vmatprep.subr.bf16.mxu0 0
        %3174 = vmatpush2.bf16.msra.mxu0 %v2903
        %3175 = vmatprep.mubr.bf16.mxu0 %v2485
        %3176 = vmatmul.mubr.bf16.gmra.mxu0 %v2591
        %v3177 = vpop.f32.mrf.mxu0
        %v3178 = vadd.f32 %v3017, %v3177
        %v3179 = vpop.f32.mrf.mxu0
        %v3180 = vpop.f32.mrf.mxu0
        %v3181 = vadd.f32 %v3020, %v3180
        %v3182 = vpop.f32.mrf.mxu0
        %3183 = vmatprep.mubr.bf16.mxu0 %v2488
        %3184 = vmatmul.mubr.bf16.gmra.mxu0 %v2595
        %v3185 = vpop.f32.mrf.mxu0
        %v3186 = vadd.f32 %v3025, %v3185
        %v3187 = vpop.f32.mrf.mxu0
        %v3188 = vpop.f32.mrf.mxu0
        %v3189 = vadd.f32 %v3028, %v3188
        %v3190 = vpop.f32.mrf.mxu0
        %3191 = vmatprep.mubr.bf16.mxu0 %v2491
        %3192 = vmatmul.mubr.bf16.gmra.mxu0 %v2599
        %v3193 = vpop.f32.mrf.mxu0
        %v3194 = vadd.f32 %v3033, %v3193
        %v3195 = vpop.f32.mrf.mxu0
        %v3196 = vpop.f32.mrf.mxu0
        %v3197 = vadd.f32 %v3036, %v3196
        %v3198 = vpop.f32.mrf.mxu0
        %3199 = vmatprep.mubr.bf16.mxu0 %v2494
        %3200 = vmatmul.mubr.bf16.gmra.mxu0 %v2603
        %v3201 = vpop.f32.mrf.mxu0
        %v3202 = vadd.f32 %v3041, %v3201
        %v3203 = vpop.f32.mrf.mxu0
        %v3204 = vpop.f32.mrf.mxu0
        %v3205 = vadd.f32 %v3044, %v3204
        %v3206 = vpop.f32.mrf.mxu0
        %3207 = vmatprep.mubr.bf16.mxu0 %v2497
        %3208 = vmatmul.mubr.bf16.gmra.mxu0 %v2607
        %v3209 = vpop.f32.mrf.mxu0
        %v3210 = vadd.f32 %v3049, %v3209
        %v3211 = vpop.f32.mrf.mxu0
        %v3212 = vpop.f32.mrf.mxu0
        %v3213 = vadd.f32 %v3052, %v3212
        %v3214 = vpop.f32.mrf.mxu0
        %3215 = vmatprep.mubr.bf16.mxu0 %v2500
        %3216 = vmatmul.mubr.bf16.gmra.mxu0 %v2611
        %v3217 = vpop.f32.mrf.mxu0
        %v3218 = vadd.f32 %v3057, %v3217
        %v3219 = vpop.f32.mrf.mxu0
        %v3220 = vpop.f32.mrf.mxu0
        %v3221 = vadd.f32 %v3060, %v3220
        %v3222 = vpop.f32.mrf.mxu0
        %3223 = vmatprep.mubr.bf16.mxu0 %v2503
        %3224 = vmatmul.mubr.bf16.gmra.mxu0 %v2615
        %v3225 = vpop.f32.mrf.mxu0
        %v3226 = vadd.f32 %v3065, %v3225
        %v3227 = vpop.f32.mrf.mxu0
        %v3228 = vpop.f32.mrf.mxu0
        %v3229 = vadd.f32 %v3068, %v3228
        %v3230 = vpop.f32.mrf.mxu0
        %3231 = vmatprep.mubr.bf16.mxu0 %v2506
        %3232 = vmatmul.mubr.bf16.gmra.mxu0 %v2619
        %v3233 = vpop.f32.mrf.mxu0
        %v3234 = vadd.f32 %v3073, %v3233
        %v3235 = vpop.f32.mrf.mxu0
        %v3236 = vpop.f32.mrf.mxu0
        %v3237 = vadd.f32 %v3076, %v3236
        %v3238 = vpop.f32.mrf.mxu0
        %3239 = vmatprep.mubr.bf16.mxu0 %v2509
        %3240 = vmatmul.mubr.bf16.gmra.mxu0 %v2623
        %v3241 = vpop.f32.mrf.mxu0
        %v3242 = vadd.f32 %v3081, %v3241
        %v3243 = vpop.f32.mrf.mxu0
        %v3244 = vpop.f32.mrf.mxu0
        %v3245 = vadd.f32 %v3084, %v3244
        %v3246 = vpop.f32.mrf.mxu0
        %3247 = vmatprep.mubr.bf16.mxu0 %v2512
        %3248 = vmatmul.mubr.bf16.gmra.mxu0 %v2627
        %v3249 = vpop.f32.mrf.mxu0
        %v3250 = vadd.f32 %v3089, %v3249
        %v3251 = vpop.f32.mrf.mxu0
        %v3252 = vpop.f32.mrf.mxu0
        %v3253 = vadd.f32 %v3092, %v3252
        %v3254 = vpop.f32.mrf.mxu0
        %3255 = vmatprep.mubr.bf16.mxu0 %v2515
        %3256 = vmatmul.mubr.bf16.gmra.mxu0 %v2631
        %v3257 = vpop.f32.mrf.mxu0
        %v3258 = vadd.f32 %v3097, %v3257
        %v3259 = vpop.f32.mrf.mxu0
        %v3260 = vpop.f32.mrf.mxu0
        %v3261 = vadd.f32 %v3100, %v3260
        %v3262 = vpop.f32.mrf.mxu0
        %3263 = vmatprep.mubr.bf16.mxu0 %v2518
        %3264 = vmatmul.mubr.bf16.gmra.mxu0 %v2635
        %v3265 = vpop.f32.mrf.mxu0
        %v3266 = vadd.f32 %v3105, %v3265
        %v3267 = vpop.f32.mrf.mxu0
        %v3268 = vpop.f32.mrf.mxu0
        %v3269 = vadd.f32 %v3108, %v3268
        %v3270 = vpop.f32.mrf.mxu0
        %3271 = vmatprep.mubr.bf16.mxu0 %v2521
        %3272 = vmatmul.mubr.bf16.gmra.mxu0 %v2639
        %v3273 = vpop.f32.mrf.mxu0
        %v3274 = vadd.f32 %v3113, %v3273
        %v3275 = vpop.f32.mrf.mxu0
        %v3276 = vpop.f32.mrf.mxu0
        %v3277 = vadd.f32 %v3116, %v3276
        %v3278 = vpop.f32.mrf.mxu0
        %3279 = vmatprep.mubr.bf16.mxu0 %v2524
        %3280 = vmatmul.mubr.bf16.gmra.mxu0 %v2643
        %v3281 = vpop.f32.mrf.mxu0
        %v3282 = vadd.f32 %v3121, %v3281
        %v3283 = vpop.f32.mrf.mxu0
        %v3284 = vpop.f32.mrf.mxu0
        %v3285 = vadd.f32 %v3124, %v3284
        %v3286 = vpop.f32.mrf.mxu0
        %3287 = vmatprep.mubr.bf16.mxu0 %v2654
        %3288 = vmatmul.mubr.bf16.gmra.mxu0 %v2647
        %v3289 = vpop.f32.mrf.mxu0
        %v3290 = vadd.f32 %v3129, %v3289
        %v3291 = vpop.f32.mrf.mxu0
        %v3292 = vpop.f32.mrf.mxu0
        %v3293 = vadd.f32 %v3132, %v3292
        %v3294 = vpop.f32.mrf.mxu0
        %3295 = vmatprep.mubr.bf16.mxu0 %v900
        %3296 = vmatmul.mubr.bf16.gmra.mxu0 %v2651
        %v3297 = vpop.f32.mrf.mxu0
        %v3298 = vadd.f32 %v3137, %v3297
        %v3299 = vpop.f32.mrf.mxu0
        %v3300 = vpop.f32.mrf.mxu0
        %v3301 = vadd.f32 %v3140, %v3300
        %v3302 = vpop.f32.mrf.mxu0
        %3303 = vdwg.mxu0
        %3304 = vmatprep.subr.bf16.mxu0 0
        %3305 = vmatpush1.bf16.msra.mxu0 0
        %3306 = vmatprep.subr.bf16.mxu0 0
        %3307 = vmatpush1.bf16.msra.mxu0 0
        %3308 = vmatprep.subr.bf16.mxu0 0
        %3309 = vmatpush1.bf16.msra.mxu0 0
        %3310 = vmatprep.subr.bf16.mxu0 0
        %3311 = vmatpush1.bf16.msra.mxu0 0
        %3312 = vmatprep.subr.bf16.mxu0 0
        %3313 = vmatpush1.bf16.msra.mxu0 %v2914
        %3314 = vmatprep.subr.bf16.mxu0 0
        %3315 = vmatpush1.bf16.msra.mxu0 %v2913
        %3316 = vmatprep.subr.bf16.mxu0 0
        %3317 = vmatpush1.bf16.msra.mxu0 %v2912
        %3318 = vmatprep.subr.bf16.mxu0 0
        %3319 = vmatpush1.bf16.msra.mxu0 %v2911
        %3320 = vmatprep.subr.bf16.mxu0 0
        %3321 = vmatpush2.bf16.msra.mxu0 0
        %3322 = vmatprep.subr.bf16.mxu0 0
        %3323 = vmatpush2.bf16.msra.mxu0 0
        %3324 = vmatprep.subr.bf16.mxu0 0
        %3325 = vmatpush2.bf16.msra.mxu0 0
        %3326 = vmatprep.subr.bf16.mxu0 0
        %3327 = vmatpush2.bf16.msra.mxu0 0
        %3328 = vmatprep.subr.bf16.mxu0 0
        %3329 = vmatpush2.bf16.msra.mxu0 0
        %3330 = vmatprep.subr.bf16.mxu0 0
        %3331 = vmatpush2.bf16.msra.mxu0 0
        %3332 = vmatprep.subr.bf16.mxu0 0
        %3333 = vmatpush2.bf16.msra.mxu0 0
        %3334 = vmatprep.subr.bf16.mxu0 0
        %3335 = vmatpush2.bf16.msra.mxu0 0
        %3336 = vmatprep.mubr.bf16.mxu0 0
        %3337 = vmatmul.mubr.bf16.gmra.mxu0 %v2951
        %v3338 = vpop.f32.mrf.mxu0
        %v3339 = vadd.f32 %v3178, %v3338
        %v3340 = vpop.f32.mrf.mxu0
        %v3341 = vpop.f32.mrf.mxu0
        %v3342 = vadd.f32 %v3181, %v3341
        %v3343 = vpop.f32.mrf.mxu0
        %3344 = vmatprep.mubr.bf16.mxu0 0
        %3345 = vmatmul.mubr.bf16.gmra.mxu0 %v2953
        %v3346 = vpop.f32.mrf.mxu0
        %v3347 = vadd.f32 %v3186, %v3346
        %v3348 = vpop.f32.mrf.mxu0
        %v3349 = vpop.f32.mrf.mxu0
        %v3350 = vadd.f32 %v3189, %v3349
        %v3351 = vpop.f32.mrf.mxu0
        %3352 = vmatprep.mubr.bf16.mxu0 0
        %3353 = vmatmul.mubr.bf16.gmra.mxu0 %v2955
        %v3354 = vpop.f32.mrf.mxu0
        %v3355 = vadd.f32 %v3194, %v3354
        %v3356 = vpop.f32.mrf.mxu0
        %v3357 = vpop.f32.mrf.mxu0
        %v3358 = vadd.f32 %v3197, %v3357
        %v3359 = vpop.f32.mrf.mxu0
        %3360 = vmatprep.mubr.bf16.mxu0 0
        %3361 = vmatmul.mubr.bf16.gmra.mxu0 %v2957
        %v3362 = vpop.f32.mrf.mxu0
        %v3363 = vadd.f32 %v3202, %v3362
        %v3364 = vpop.f32.mrf.mxu0
        %v3365 = vpop.f32.mrf.mxu0
        %v3366 = vadd.f32 %v3205, %v3365
        %v3367 = vpop.f32.mrf.mxu0
        %3368 = vmatprep.mubr.bf16.mxu0 0
        %3369 = vmatmul.mubr.bf16.gmra.mxu0 %v2959
        %v3370 = vpop.f32.mrf.mxu0
        %v3371 = vadd.f32 %v3210, %v3370
        %v3372 = vpop.f32.mrf.mxu0
        %v3373 = vpop.f32.mrf.mxu0
        %v3374 = vadd.f32 %v3213, %v3373
        %v3375 = vpop.f32.mrf.mxu0
        %3376 = vmatprep.mubr.bf16.mxu0 0
        %3377 = vmatmul.mubr.bf16.gmra.mxu0 %v2961
        %v3378 = vpop.f32.mrf.mxu0
        %v3379 = vadd.f32 %v3218, %v3378
        %v3380 = vpop.f32.mrf.mxu0
        %v3381 = vpop.f32.mrf.mxu0
        %v3382 = vadd.f32 %v3221, %v3381
        %v3383 = vpop.f32.mrf.mxu0
        %3384 = vmatprep.mubr.bf16.mxu0 0
        %3385 = vmatmul.mubr.bf16.gmra.mxu0 %v2963
        %v3386 = vpop.f32.mrf.mxu0
        %v3387 = vadd.f32 %v3226, %v3386
        %v3388 = vpop.f32.mrf.mxu0
        %v3389 = vpop.f32.mrf.mxu0
        %v3390 = vadd.f32 %v3229, %v3389
        %v3391 = vpop.f32.mrf.mxu0
        %3392 = vmatprep.mubr.bf16.mxu0 0
        %3393 = vmatmul.mubr.bf16.gmra.mxu0 %v2965
        %v3394 = vpop.f32.mrf.mxu0
        %v3395 = vadd.f32 %v3234, %v3394
        %v3396 = vpop.f32.mrf.mxu0
        %v3397 = vpop.f32.mrf.mxu0
        %v3398 = vadd.f32 %v3237, %v3397
        %v3399 = vpop.f32.mrf.mxu0
        %3400 = vmatprep.mubr.bf16.mxu0 0
        %3401 = vmatmul.mubr.bf16.gmra.mxu0 %v2967
        %v3402 = vpop.f32.mrf.mxu0
        %v3403 = vadd.f32 %v3242, %v3402
        %v3404 = vpop.f32.mrf.mxu0
        %v3405 = vpop.f32.mrf.mxu0
        %v3406 = vadd.f32 %v3245, %v3405
        %v3407 = vpop.f32.mrf.mxu0
        %3408 = vmatprep.mubr.bf16.mxu0 0
        %3409 = vmatmul.mubr.bf16.gmra.mxu0 %v2969
        %v3410 = vpop.f32.mrf.mxu0
        %v3411 = vadd.f32 %v3250, %v3410
        %v3412 = vpop.f32.mrf.mxu0
        %v3413 = vpop.f32.mrf.mxu0
        %v3414 = vadd.f32 %v3253, %v3413
        %v3415 = vpop.f32.mrf.mxu0
        %3416 = vmatprep.mubr.bf16.mxu0 0
        %3417 = vmatmul.mubr.bf16.gmra.mxu0 %v2971
        %v3418 = vpop.f32.mrf.mxu0
        %v3419 = vadd.f32 %v3258, %v3418
        %v3420 = vpop.f32.mrf.mxu0
        %v3421 = vpop.f32.mrf.mxu0
        %v3422 = vadd.f32 %v3261, %v3421
        %v3423 = vpop.f32.mrf.mxu0
        %3424 = vmatprep.mubr.bf16.mxu0 0
        %3425 = vmatmul.mubr.bf16.gmra.mxu0 %v2973
        %v3426 = vpop.f32.mrf.mxu0
        %v3427 = vadd.f32 %v3266, %v3426
        %v3428 = vpop.f32.mrf.mxu0
        %v3429 = vpop.f32.mrf.mxu0
        %v3430 = vadd.f32 %v3269, %v3429
        %v3431 = vpop.f32.mrf.mxu0
        %3432 = vmatprep.mubr.bf16.mxu0 0
        %3433 = vmatmul.mubr.bf16.gmra.mxu0 %v2975
        %v3434 = vpop.f32.mrf.mxu0
        %v3435 = vadd.f32 %v3274, %v3434
        %v3436 = vpop.f32.mrf.mxu0
        %v3437 = vpop.f32.mrf.mxu0
        %v3438 = vadd.f32 %v3277, %v3437
        %v3439 = vpop.f32.mrf.mxu0
        %3440 = vmatprep.mubr.bf16.mxu0 0
        %3441 = vmatmul.mubr.bf16.gmra.mxu0 %v2977
        %v3442 = vpop.f32.mrf.mxu0
        %v3443 = vadd.f32 %v3282, %v3442
        %v3444 = vpop.f32.mrf.mxu0
        %v3445 = vpop.f32.mrf.mxu0
        %v3446 = vadd.f32 %v3285, %v3445
        %v3447 = vpop.f32.mrf.mxu0
        %3448 = vmatprep.mubr.bf16.mxu0 0
        %3449 = vmatmul.mubr.bf16.gmra.mxu0 %v2980
        %v3450 = vpop.f32.mrf.mxu0
        %v3451 = vadd.f32 %v3290, %v3450
        %v3452 = vpop.f32.mrf.mxu0
        %v3453 = vpop.f32.mrf.mxu0
        %v3454 = vadd.f32 %v3293, %v3453
        %v3455 = vpop.f32.mrf.mxu0
        %3456 = vmatprep.mubr.bf16.mxu0 0
        %3457 = vmatmul.mubr.bf16.gmra.mxu0 %v1404
        %v3458 = vpop.f32.mrf.mxu0
        %v3459 = vadd.f32 %v3298, %v3458
        %v3460 = vpop.f32.mrf.mxu0
        %v3461 = vpop.f32.mrf.mxu0
        %v3462 = vadd.f32 %v3301, %v3461
        %v3463 = vpop.f32.mrf.mxu0
        %3464 = vdwg.mxu0
        %v3465 = vunpack.c.l.bf16 %v224
        %v3466 = vunpack.c.l.bf16 %v225
        %v3467 = vunpack.c.l.bf16 %v226
        %v3468 = vunpack.c.l.bf16 %v227
        %v3469 = vunpack.c.l.bf16 %v228
        %v3470 = vunpack.c.l.bf16 %v229
        %v3471 = vunpack.c.l.bf16 %v230
        %v3472 = vunpack.c.l.bf16 %v231
        %v3473 = vunpack.c.l.bf16 %v232
        %v3474 = vunpack.c.l.bf16 %v233
        %v3475 = vunpack.c.l.bf16 %v234
        %v3476 = vunpack.c.l.bf16 %v235
        %v3477 = vunpack.c.l.bf16 %v236
        %v3478 = vunpack.c.l.bf16 %v237
        %v3479 = vunpack.c.l.bf16 %v238
        %v3480 = vunpack.c.l.bf16 %v239
        %v3481 = vunpack.c.l.bf16 %v240
        %v3482 = vunpack.c.l.bf16 %v241
        %v3483 = vunpack.c.l.bf16 %v242
        %v3484 = vunpack.c.l.bf16 %v243
        %v3485 = vunpack.c.l.bf16 %v244
        %v3486 = vunpack.c.l.bf16 %v245
        %v3487 = vunpack.c.l.bf16 %v246
        %v3488 = vunpack.c.l.bf16 %v247
        %v3489 = vunpack.c.l.bf16 %v248
        %v3490 = vunpack.c.l.bf16 %v249
        %v3491 = vunpack.c.l.bf16 %v250
        %v3492 = vunpack.c.l.bf16 %v251
        %v3493 = vunpack.c.l.bf16 %v252
        %v3494 = vunpack.c.l.bf16 %v253
        %v3495 = vunpack.c.l.bf16 %v254
        %v3496 = vunpack.c.l.bf16 %v255
        %v3497 = vadd.f32 %v3339, %v3465
        %v3498 = vadd.f32 %v3342, %v3466
        %v3499 = vadd.f32 %v3347, %v3467
        %v3500 = vadd.f32 %v3350, %v3468
        %v3501 = vadd.f32 %v3355, %v3469
        %v3502 = vadd.f32 %v3358, %v3470
        %v3503 = vadd.f32 %v3363, %v3471
        %v3504 = vadd.f32 %v3366, %v3472
        %v3505 = vadd.f32 %v3371, %v3473
        %v3506 = vadd.f32 %v3374, %v3474
        %v3507 = vadd.f32 %v3379, %v3475
        %v3508 = vadd.f32 %v3382, %v3476
        %v3509 = vadd.f32 %v3387, %v3477
        %v3510 = vadd.f32 %v3390, %v3478
        %v3511 = vadd.f32 %v3395, %v3479
        %v3512 = vadd.f32 %v3398, %v3480
        %v3513 = vadd.f32 %v3403, %v3481
        %v3514 = vadd.f32 %v3406, %v3482
        %v3515 = vadd.f32 %v3411, %v3483
        %v3516 = vadd.f32 %v3414, %v3484
        %v3517 = vadd.f32 %v3419, %v3485
        %v3518 = vadd.f32 %v3422, %v3486
        %v3519 = vadd.f32 %v3427, %v3487
        %v3520 = vadd.f32 %v3430, %v3488
        %v3521 = vadd.f32 %v3435, %v3489
        %v3522 = vadd.f32 %v3438, %v3490
        %v3523 = vadd.f32 %v3443, %v3491
        %v3524 = vadd.f32 %v3446, %v3492
        %v3525 = vadd.f32 %v3451, %v3493
        %v3526 = vadd.f32 %v3454, %v3494
        %v3527 = vadd.f32 %v3459, %v3495
        %v3528 = vadd.f32 %v3462, %v3496
        %v3529 = vmax.f32 %v3497, 0.0
        %v3530 = vmax.f32 %v3498, 0.0
        %v3531 = vmax.f32 %v3499, 0.0
        %v3532 = vmax.f32 %v3500, 0.0
        %v3533 = vmax.f32 %v3501, 0.0
        %v3534 = vmax.f32 %v3502, 0.0
        %v3535 = vmax.f32 %v3503, 0.0
        %v3536 = vmax.f32 %v3504, 0.0
        %v3537 = vmax.f32 %v3505, 0.0
        %v3538 = vmax.f32 %v3506, 0.0
        %v3539 = vmax.f32 %v3507, 0.0
        %v3540 = vmax.f32 %v3508, 0.0
        %v3541 = vmax.f32 %v3509, 0.0
        %v3542 = vmax.f32 %v3510, 0.0
        %v3543 = vmax.f32 %v3511, 0.0
        %v3544 = vmax.f32 %v3512, 0.0
        %v3545 = vmax.f32 %v3513, 0.0
        %v3546 = vmax.f32 %v3514, 0.0
        %v3547 = vmax.f32 %v3515, 0.0
        %v3548 = vmax.f32 %v3516, 0.0
        %v3549 = vmax.f32 %v3517, 0.0
        %v3550 = vmax.f32 %v3518, 0.0
        %v3551 = vmax.f32 %v3519, 0.0
        %v3552 = vmax.f32 %v3520, 0.0
        %v3553 = vmax.f32 %v3521, 0.0
        %v3554 = vmax.f32 %v3522, 0.0
        %v3555 = vmax.f32 %v3523, 0.0
        %v3556 = vmax.f32 %v3524, 0.0
        %v3557 = vmax.f32 %v3525, 0.0
        %v3558 = vmax.f32 %v3526, 0.0
        %v3559 = vmax.f32 %v3527, 0.0
        %v3560 = vmax.f32 %v3528, 0.0
        %3561 = vst.msk [vmem:[%s217] sm:$0xff] %vm898, %v3529
        %3562 = vst.msk [vmem:[%s217 + $0x8] sm:$0xff] %vm898, %v3530
        %3563 = vst.msk [vmem:[%s217 + $0x10] sm:$0xff] %vm898, %v3531
        %3564 = vst.msk [vmem:[%s217 + $0x18] sm:$0xff] %vm898, %v3532
        %3565 = vst.msk [vmem:[%s217 + $0x20] sm:$0xff] %vm898, %v3533
        %3566 = vst.msk [vmem:[%s217 + $0x28] sm:$0xff] %vm898, %v3534
        %3567 = vst.msk [vmem:[%s217 + $0x30] sm:$0xff] %vm898, %v3535
        %3568 = vst.msk [vmem:[%s217 + $0x38] sm:$0xff] %vm898, %v3536
        %3569 = vst.msk [vmem:[%s217 + $0x40] sm:$0xff] %vm898, %v3537
        %3570 = vst.msk [vmem:[%s217 + $0x48] sm:$0xff] %vm898, %v3538
        %3571 = vst.msk [vmem:[%s217 + $0x50] sm:$0xff] %vm898, %v3539
        %3572 = vst.msk [vmem:[%s217 + $0x58] sm:$0xff] %vm898, %v3540
        %3573 = vst.msk [vmem:[%s217 + $0x60] sm:$0xff] %vm898, %v3541
        %3574 = vst.msk [vmem:[%s217 + $0x68] sm:$0xff] %vm898, %v3542
        %3575 = vst.msk [vmem:[%s217 + $0x70] sm:$0xff] %vm898, %v3543
        %3576 = vst.msk [vmem:[%s217 + $0x78] sm:$0xff] %vm898, %v3544
        %3577 = vst.msk [vmem:[%s217 + $0x80] sm:$0xff] %vm898, %v3545
        %3578 = vst.msk [vmem:[%s217 + $0x88] sm:$0xff] %vm898, %v3546
        %3579 = vst.msk [vmem:[%s217 + $0x90] sm:$0xff] %vm898, %v3547
        %3580 = vst.msk [vmem:[%s217 + $0x98] sm:$0xff] %vm898, %v3548
        %3581 = vst.msk [vmem:[%s217 + $0xa0] sm:$0xff] %vm898, %v3549
        %3582 = vst.msk [vmem:[%s217 + $0xa8] sm:$0xff] %vm898, %v3550
        %3583 = vst.msk [vmem:[%s217 + $0xb0] sm:$0xff] %vm898, %v3551
        %3584 = vst.msk [vmem:[%s217 + $0xb8] sm:$0xff] %vm898, %v3552
        %3585 = vst.msk [vmem:[%s217 + $0xc0] sm:$0xff] %vm898, %v3553
        %3586 = vst.msk [vmem:[%s217 + $0xc8] sm:$0xff] %vm898, %v3554
        %3587 = vst.msk [vmem:[%s217 + $0xd0] sm:$0xff] %vm898, %v3555
        %3588 = vst.msk [vmem:[%s217 + $0xd8] sm:$0xff] %vm898, %v3556
        %3589 = vst.msk [vmem:[%s217 + $0xe0] sm:$0xff] %vm898, %v3557
        %3590 = vst.msk [vmem:[%s217 + $0xe8] sm:$0xff] %vm898, %v3558
        %3591 = vst.msk [vmem:[%s217 + $0xf0] sm:$0xff] %vm898, %v3559
        %3592 = vst.msk [vmem:[%s217 + $0xf8] sm:$0xff] %vm898, %v3560
        %s3593 = sand.u32 %s137, 1
        %s3594 = scalar_lea.sflag [#allocation3], %s3593
        %s3595 = sand.u32 %s137, 1
        %s3596 = smul.addr %s3595, 256
        %s3597 = scalar_lea.vmem [#allocation2], %s3596
        // Predicated region
        $region41: #{_lambda_.3} parent=39 // pred_check
          %p3598 = pneg %p147
        $region42: #{_lambda_.3} parent=39 // pred_check_branch
          %3600 = sbr.rel (%p3598) target = $region44
        $region43: #{_lambda_.3} parent=39 // pred_region
          %s3602 = ssub.s32 4096, 4096
          %3603 = vsyncadd %s3594, %s3602
          %s3604 = smul.addr %s19, 32
          %s3605 = smul.addr %s3604, 128
          %s3606 = scalar_lea.hbm %s5, %s3605
          %s3607 = sshll.u32 %s3597, 4
          %s3608 = int_to_ptr.vmem [resolvable:$true] %s3607
          %3613 = dma.vmem_to_hbm [thread:$0]  %s3608, 4096, %s3606, %s3594, 128, 128, 8
        $region44: #{_lambda_.3} parent=39 // pred_fallthru
          _
      $region40: #{_lambda_.3} parent=5 // pred_fallthru
        _
      %p3614 = scmp.le.s32.totalorder 2, %s14
      // Predicated region
      $region45: #{_lambda_.3} parent=5 // pred_check
        %p3615 = pneg %p3614
      $region46: #{_lambda_.3} parent=5 // pred_check_branch
        %3617 = sbr.rel (%p3615) target = $region48
      $region47: #{_lambda_.3} parent=5 // pred_region
        %s3618 = ssub.s32 %s14, 2
        // Predicated region
        $region49: #{_lambda_.3} parent=47 // pred_check
          %p3619 = pneg %p153
        $region50: #{_lambda_.3} parent=47 // pred_check_branch
          %3621 = sbr.rel (%p3619) target = $region52
        $region51: #{_lambda_.3} parent=47 // pred_region
          %s3622 = sand.u32 %s138, 1
          %s3623 = scalar_lea.sflag [#allocation3], %s3622
          %s3624 = sand.u32 %s138, 1
          %s3625 = smul.addr %s3624, 256
          %s3626 = scalar_lea.vmem [#allocation2], %s3625
          %3627 = dma.done %s3623, 4096
        $region52: #{_lambda_.3} parent=47 // pred_fallthru
          _
      $region48: #{_lambda_.3} parent=5 // pred_fallthru
        _
    $region6: #{_lambda_.3} parent=1 // loop_footer
      %s18 = sadd.s32 1, %s14
    $region7: #{_lambda_.3} parent=1 // loop_footer_branch
      %13 = sbr.rel target = $region3
    $region8: #{_lambda_.3} parent=1 // loop_exit
      _
    %3628 = vsyncpa [#allocation3], 1
    %s3629 = scalar_lea.sflag [#allocation3], 1
    %3630 = vsyncpa %s3629, 1

// kernel: _lambda_.2
$region0: #{_lambda_.2}
  #allocation0 [shape = 'u32[]', space=smem, size = 0x4, offset = 0x4, fixed_abs, tag = 'smem constant byte address 0x4 - core index']
  #allocation1 [shape = 'u32[144,128]{1,0:T(1,128)}', space=vmem, size = 0x12000, scoped, tag = 'internal scratch']
  %s0 = inlined_call_operand.vmem [shape: bf16[2,256,32], index: 0, kind: input, shape index: {}]
  %s1 = inlined_call_operand.vmem [shape: bf16[288,64], index: 1, kind: input, shape index: {}]
  %s2 = inlined_call_operand.vmem [shape: f32[1,64], index: 2, kind: input, shape index: {}, may-alias: {2,4,6}]
  %s3 = inlined_call_operand.vmem [shape: bf16[576,64], index: 3, kind: input, shape index: {}]
  %s4 = inlined_call_operand.vmem [shape: f32[1,64], index: 4, kind: input, shape index: {}, may-alias: {2,4,6}]
  %s5 = inlined_call_operand.vmem [shape: bf16[32,64], index: 5, kind: input, shape index: {}]
  %s6 = inlined_call_operand.vmem [shape: f32[1,64], index: 6, kind: input, shape index: {}, may-alias: {2,4,6}]
  %s7 = inlined_call_operand.vmem [shape: bf16[2,256,64], index: 7, kind: output, shape index: {}]
  %s8 = sld [smem:[#allocation0]]
  $region61: #{_lambda_.2} parent=0
    _
  %s10 = ssub.s32 1, %s8
  %s11 = scalar_select 0, %s10, %s8
  loop: start=0, step=1, limit=4
  $region2: #{_lambda_.2} parent=0 // loop_pre_header
    _
  $region3: #{_lambda_.2} parent=0 // loop_header
    %s13 = sphi 0, %s17
    %p14 = scmp.ge.s32.totalorder %s13, 4
    %s23 = sphi 0, %s25
    %s26 = sphi 0, %s23
    %s27 = sphi 0, %s26
    %s43 = sphi 0, %s27
    %s47 = sphi 0, %s47
    %s49 = sphi 0, %s47
    %s50 = sphi 0, %s49
    %s64 = sphi 0, %s50
    %s68 = sphi 0, %s68
    %s70 = sphi 0, %s68
    %s71 = sphi 0, %s70
    %s85 = sphi 0, %s71
    %s89 = sphi 0, %s89
    %s91 = sphi 0, %s89
    %s92 = sphi 0, %s91
    %s106 = sphi 0, %s92
    %s110 = sphi 0, %s110
    %s112 = sphi 0, %s110
    %s113 = sphi 0, %s112
    %s127 = sphi 0, %s113
    %s131 = sphi 0, %s131
    %s133 = sphi 0, %s131
    %s134 = sphi 0, %s133
    %s148 = sphi 0, %s134
    %s152 = sphi 0, %s152
    %s154 = sphi 0, %s152
    %s155 = sphi 0, %s154
    %s169 = sphi 0, %s155
    %s175 = sphi 0, %s177
    %s178 = sphi 0, %s175
    %s179 = sphi 0, %s178
    %s195 = sphi 0, %s179
  $region4: #{_lambda_.2} parent=0 // loop_header_branch
    %16 = sbr.rel (%p14) target = $region8
  $region5: #{_lambda_.2} parent=0 // loop_body
    %s18 = ssub.s32 %s13, 1
    %s19 = ssub.s32 %s13, 2
    %s20 = sadd.s32 %s13, 1
    %s21 = ssub.s32 %s13, %s20
    %p22 = scmp.eq.s32.totalorder %s21, 0
    %s24 = sadd.s32 %s23, 1
    %s25 = scalar_select %p22, %s23, %s24
    %p28 = pneg %p22
    %p29 = scmp.eq.s32.totalorder %s13, 1
    %p30 = por %p28, %p29
    %p31 = scmp.ne.s32.totalorder %s23, %s26
    %p32 = scmp.eq.s32.totalorder %s13, 0
    %p33 = por %p31, %p32
    %p34 = scmp.ne.s32.totalorder %s23, %s26
    %p35 = scmp.eq.s32.totalorder %s18, 1
    %p36 = por %p34, %p35
    %p37 = scmp.ne.s32.totalorder %s26, %s27
    %p38 = scmp.eq.s32.totalorder %s18, 0
    %p39 = por %p37, %p38
    %p40 = scmp.ne.s32.totalorder %s26, %s27
    %p41 = scmp.eq.s32.totalorder %s19, 1
    %p42 = por %p40, %p41
    %p44 = scmp.ne.s32.totalorder %s27, %s43
    %p45 = scmp.eq.s32.totalorder %s19, 0
    %p46 = por %p44, %p45
    %s48 = sadd.s32 %s47, 1
    %p51 = scmp.eq.s32.totalorder %s13, 1
    %p52 = scmp.ne.s32.totalorder %s47, %s49
    %p53 = scmp.eq.s32.totalorder %s13, 0
    %p54 = por %p52, %p53
    %p55 = scmp.ne.s32.totalorder %s47, %s49
    %p56 = scmp.eq.s32.totalorder %s18, 1
    %p57 = por %p55, %p56
    %p58 = scmp.ne.s32.totalorder %s49, %s50
    %p59 = scmp.eq.s32.totalorder %s18, 0
    %p60 = por %p58, %p59
    %p61 = scmp.ne.s32.totalorder %s49, %s50
    %p62 = scmp.eq.s32.totalorder %s19, 1
    %p63 = por %p61, %p62
    %p65 = scmp.ne.s32.totalorder %s50, %s64
    %p66 = scmp.eq.s32.totalorder %s19, 0
    %p67 = por %p65, %p66
    %s69 = sadd.s32 %s68, 1
    %p72 = scmp.eq.s32.totalorder %s13, 1
    %p73 = scmp.ne.s32.totalorder %s68, %s70
    %p74 = scmp.eq.s32.totalorder %s13, 0
    %p75 = por %p73, %p74
    %p76 = scmp.ne.s32.totalorder %s68, %s70
    %p77 = scmp.eq.s32.totalorder %s18, 1
    %p78 = por %p76, %p77
    %p79 = scmp.ne.s32.totalorder %s70, %s71
    %p80 = scmp.eq.s32.totalorder %s18, 0
    %p81 = por %p79, %p80
    %p82 = scmp.ne.s32.totalorder %s70, %s71
    %p83 = scmp.eq.s32.totalorder %s19, 1
    %p84 = por %p82, %p83
    %p86 = scmp.ne.s32.totalorder %s71, %s85
    %p87 = scmp.eq.s32.totalorder %s19, 0
    %p88 = por %p86, %p87
    %s90 = sadd.s32 %s89, 1
    %p93 = scmp.eq.s32.totalorder %s13, 1
    %p94 = scmp.ne.s32.totalorder %s89, %s91
    %p95 = scmp.eq.s32.totalorder %s13, 0
    %p96 = por %p94, %p95
    %p97 = scmp.ne.s32.totalorder %s89, %s91
    %p98 = scmp.eq.s32.totalorder %s18, 1
    %p99 = por %p97, %p98
    %p100 = scmp.ne.s32.totalorder %s91, %s92
    %p101 = scmp.eq.s32.totalorder %s18, 0
    %p102 = por %p100, %p101
    %p103 = scmp.ne.s32.totalorder %s91, %s92
    %p104 = scmp.eq.s32.totalorder %s19, 1
    %p105 = por %p103, %p104
    %p107 = scmp.ne.s32.totalorder %s92, %s106
    %p108 = scmp.eq.s32.totalorder %s19, 0
    %p109 = por %p107, %p108
    %s111 = sadd.s32 %s110, 1
    %p114 = scmp.eq.s32.totalorder %s13, 1
    %p115 = scmp.ne.s32.totalorder %s110, %s112
    %p116 = scmp.eq.s32.totalorder %s13, 0
    %p117 = por %p115, %p116
    %p118 = scmp.ne.s32.totalorder %s110, %s112
    %p119 = scmp.eq.s32.totalorder %s18, 1
    %p120 = por %p118, %p119
    %p121 = scmp.ne.s32.totalorder %s112, %s113
    %p122 = scmp.eq.s32.totalorder %s18, 0
    %p123 = por %p121, %p122
    %p124 = scmp.ne.s32.totalorder %s112, %s113
    %p125 = scmp.eq.s32.totalorder %s19, 1
    %p126 = por %p124, %p125
    %p128 = scmp.ne.s32.totalorder %s113, %s127
    %p129 = scmp.eq.s32.totalorder %s19, 0
    %p130 = por %p128, %p129
    %s132 = sadd.s32 %s131, 1
    %p135 = scmp.eq.s32.totalorder %s13, 1
    %p136 = scmp.ne.s32.totalorder %s131, %s133
    %p137 = scmp.eq.s32.totalorder %s13, 0
    %p138 = por %p136, %p137
    %p139 = scmp.ne.s32.totalorder %s131, %s133
    %p140 = scmp.eq.s32.totalorder %s18, 1
    %p141 = por %p139, %p140
    %p142 = scmp.ne.s32.totalorder %s133, %s134
    %p143 = scmp.eq.s32.totalorder %s18, 0
    %p144 = por %p142, %p143
    %p145 = scmp.ne.s32.totalorder %s133, %s134
    %p146 = scmp.eq.s32.totalorder %s19, 1
    %p147 = por %p145, %p146
    %p149 = scmp.ne.s32.totalorder %s134, %s148
    %p150 = scmp.eq.s32.totalorder %s19, 0
    %p151 = por %p149, %p150
    %s153 = sadd.s32 %s152, 1
    %p156 = scmp.eq.s32.totalorder %s13, 1
    %p157 = scmp.ne.s32.totalorder %s152, %s154
    %p158 = scmp.eq.s32.totalorder %s13, 0
    %p159 = por %p157, %p158
    %p160 = scmp.ne.s32.totalorder %s152, %s154
    %p161 = scmp.eq.s32.totalorder %s18, 1
    %p162 = por %p160, %p161
    %p163 = scmp.ne.s32.totalorder %s154, %s155
    %p164 = scmp.eq.s32.totalorder %s18, 0
    %p165 = por %p163, %p164
    %p166 = scmp.ne.s32.totalorder %s154, %s155
    %p167 = scmp.eq.s32.totalorder %s19, 1
    %p168 = por %p166, %p167
    %p170 = scmp.ne.s32.totalorder %s155, %s169
    %p171 = scmp.eq.s32.totalorder %s19, 0
    %p172 = por %p170, %p171
    %s173 = ssub.s32 %s13, %s20
    %p174 = scmp.eq.s32.totalorder %s173, 0
    %s176 = sadd.s32 %s175, 1
    %s177 = scalar_select %p174, %s175, %s176
    %p180 = pneg %p174
    %p181 = scmp.eq.s32.totalorder %s13, 1
    %p182 = por %p180, %p181
    %p183 = scmp.ne.s32.totalorder %s175, %s178
    %p184 = scmp.eq.s32.totalorder %s13, 0
    %p185 = por %p183, %p184
    %p186 = scmp.ne.s32.totalorder %s175, %s178
    %p187 = scmp.eq.s32.totalorder %s18, 1
    %p188 = por %p186, %p187
    %p189 = scmp.ne.s32.totalorder %s178, %s179
    %p190 = scmp.eq.s32.totalorder %s18, 0
    %p191 = por %p189, %p190
    %p192 = scmp.ne.s32.totalorder %s178, %s179
    %p193 = scmp.eq.s32.totalorder %s19, 1
    %p194 = por %p192, %p193
    %p196 = scmp.ne.s32.totalorder %s179, %s195
    %p197 = scmp.eq.s32.totalorder %s19, 0
    %p198 = por %p196, %p197
    %p199 = scmp.le.s32.totalorder 1, %s13
    %p200 = scmp.lt.s32.totalorder %s13, 3
    %p201 = pnand %p199, %p200
    %p202 = pneg %p201
    // Predicated region
    $region9: #{_lambda_.2} parent=5 // pred_check
      _
    $region10: #{_lambda_.2} parent=5 // pred_check_branch
      %204 = sbr.rel (%p201) target = $region12
    $region11: #{_lambda_.2} parent=5 // pred_region
      %s205 = ssub.s32 %s13, 1
      // Predicated region
      $region13: #{_lambda_.2} parent=11 // pred_check
        %p206 = pneg %p60
      $region14: #{_lambda_.2} parent=11 // pred_check_branch
        %208 = sbr.rel (%p206) target = $region16
      $region15: #{_lambda_.2} parent=11 // pred_region
        _
      $region16: #{_lambda_.2} parent=11 // pred_fallthru
        _
      // Predicated region
      $region17: #{_lambda_.2} parent=11 // pred_check
        %p209 = pneg %p81
      $region18: #{_lambda_.2} parent=11 // pred_check_branch
        %211 = sbr.rel (%p209) target = $region20
      $region19: #{_lambda_.2} parent=11 // pred_region
        _
      $region20: #{_lambda_.2} parent=11 // pred_fallthru
        _
      // Predicated region
      $region21: #{_lambda_.2} parent=11 // pred_check
        %p212 = pneg %p102
      $region22: #{_lambda_.2} parent=11 // pred_check_branch
        %214 = sbr.rel (%p212) target = $region24
      $region23: #{_lambda_.2} parent=11 // pred_region
        _
      $region24: #{_lambda_.2} parent=11 // pred_fallthru
        _
      // Predicated region
      $region25: #{_lambda_.2} parent=11 // pred_check
        %p215 = pneg %p123
      $region26: #{_lambda_.2} parent=11 // pred_check_branch
        %217 = sbr.rel (%p215) target = $region28
      $region27: #{_lambda_.2} parent=11 // pred_region
        _
      $region28: #{_lambda_.2} parent=11 // pred_fallthru
        _
      // Predicated region
      $region29: #{_lambda_.2} parent=11 // pred_check
        %p218 = pneg %p144
      $region30: #{_lambda_.2} parent=11 // pred_check_branch
        %220 = sbr.rel (%p218) target = $region32
      $region31: #{_lambda_.2} parent=11 // pred_region
        _
      $region32: #{_lambda_.2} parent=11 // pred_fallthru
        _
      // Predicated region
      $region33: #{_lambda_.2} parent=11 // pred_check
        %p221 = pneg %p165
      $region34: #{_lambda_.2} parent=11 // pred_check_branch
        %223 = sbr.rel (%p221) target = $region36
      $region35: #{_lambda_.2} parent=11 // pred_region
        _
      $region36: #{_lambda_.2} parent=11 // pred_fallthru
        _
    $region12: #{_lambda_.2} parent=5 // pred_fallthru
      _
    %p224 = scmp.lt.s32.totalorder %s13, 2
    // Predicated region
    $region37: #{_lambda_.2} parent=5 // pred_check
      %p225 = pneg %p224
    $region38: #{_lambda_.2} parent=5 // pred_check_branch
      %227 = sbr.rel (%p225) target = $region40
    $region39: #{_lambda_.2} parent=5 // pred_region
      // Predicated region
      $region41: #{_lambda_.2} parent=39 // pred_check
        %p228 = pneg %p33
      $region42: #{_lambda_.2} parent=39 // pred_check_branch
        %230 = sbr.rel (%p228) target = $region44
      $region43: #{_lambda_.2} parent=39 // pred_region
        %p231 = scmp.lt.s32.totalorder %s13, 1
        %s232 = scalar_select %p231, %s13, 1
        %s233 = smul.addr %s232, 32
        %s234 = smul.addr %s233, 4
        %s235 = scalar_lea.vmem %s0, %s234
      $region44: #{_lambda_.2} parent=39 // pred_fallthru
        _
    $region40: #{_lambda_.2} parent=5 // pred_fallthru
      _
    %p236 = scmp.le.s32.totalorder 1, %s13
    %p237 = scmp.lt.s32.totalorder %s13, 3
    %p238 = pnand %p236, %p237
    %p239 = pneg %p238
    // Predicated region
    $region45: #{_lambda_.2} parent=5 // pred_check
      _
    $region46: #{_lambda_.2} parent=5 // pred_check_branch
      %241 = sbr.rel (%p238) target = $region48
    $region47: #{_lambda_.2} parent=5 // pred_region
      %s242 = ssub.s32 %s13, 1
      %p243 = scmp.lt.s32.totalorder %s18, 1
      %s244 = scalar_select %p243, %s18, 1
      %s245 = smul.addr %s244, 32
      %s246 = smul.addr %s245, 4
      %s247 = scalar_lea.vmem %s0, %s246
      %p248 = pneg %p39
      %p249 = pneg %p36
      %p250 = pneg %p60
      %p251 = pneg %p57
      %p252 = pneg %p81
      %p253 = pneg %p78
      %p254 = pneg %p102
      %p255 = pneg %p99
      %p256 = pneg %p123
      %p257 = pneg %p120
      %p258 = pneg %p144
      %p259 = pneg %p141
      %p260 = pneg %p165
      %p261 = pneg %p162
      %p262 = pneg %p191
      %p263 = pneg %p188
      %p264 = scmp.lt.s32.totalorder %s18, 1
      %s265 = scalar_select %p264, %s18, 1
      %s266 = smul.addr %s265, 32
      %s267 = smul.addr %s266, 4
      %s268 = scalar_lea.vmem %s7, %s267
      %p269 = scmp.lt.s32.totalorder %s18, 1
      %s270 = scalar_select %p269, %s18, 1
      %s271 = smul.addr %s270, 32
      %s272 = smul.addr %s271, 4
      %s273 = scalar_lea.vmem %s0, %s272
      %p274 = scmp.lt.s32.totalorder %s18, 1
      %s275 = scalar_select %p274, %s18, 1
      %s276 = smul.addr %s275, 32
      %s277 = smul.addr %s276, 4
      %s278 = scalar_lea.vmem %s7, %s277
      %v280 = vld [vmem:[%s273] sm:$0xf]
      %v281 = vld [vmem:[%s273 + $0x4] sm:$0xf]
      %v282 = vld [vmem:[%s273 + $0x8] sm:$0xf]
      %v283 = vld [vmem:[%s273 + $0xc] sm:$0xf]
      %v284 = vld [vmem:[%s273 + $0x10] sm:$0xf]
      %v285 = vld [vmem:[%s273 + $0x14] sm:$0xf]
      %v286 = vld [vmem:[%s273 + $0x18] sm:$0xf]
      %v287 = vld [vmem:[%s273 + $0x1c] sm:$0xf]
      %v288 = vld [vmem:[%s273 + $0x20] sm:$0xf]
      %v289 = vld [vmem:[%s273 + $0x24] sm:$0xf]
      %v290 = vld [vmem:[%s273 + $0x28] sm:$0xf]
      %v291 = vld [vmem:[%s273 + $0x2c] sm:$0xf]
      %v292 = vld [vmem:[%s273 + $0x30] sm:$0xf]
      %v293 = vld [vmem:[%s273 + $0x34] sm:$0xf]
      %v294 = vld [vmem:[%s273 + $0x38] sm:$0xf]
      %v295 = vld [vmem:[%s273 + $0x3c] sm:$0xf]
      %v296 = vld [vmem:[%s273 + $0x40] sm:$0xf]
      %v297 = vld [vmem:[%s273 + $0x44] sm:$0xf]
      %v298 = vld [vmem:[%s273 + $0x48] sm:$0xf]
      %v299 = vld [vmem:[%s273 + $0x4c] sm:$0xf]
      %v300 = vld [vmem:[%s273 + $0x50] sm:$0xf]
      %v301 = vld [vmem:[%s273 + $0x54] sm:$0xf]
      %v302 = vld [vmem:[%s273 + $0x58] sm:$0xf]
      %v303 = vld [vmem:[%s273 + $0x5c] sm:$0xf]
      %v304 = vld [vmem:[%s273 + $0x60] sm:$0xf]
      %v305 = vld [vmem:[%s273 + $0x64] sm:$0xf]
      %v306 = vld [vmem:[%s273 + $0x68] sm:$0xf]
      %v307 = vld [vmem:[%s273 + $0x6c] sm:$0xf]
      %v308 = vld [vmem:[%s273 + $0x70] sm:$0xf]
      %v309 = vld [vmem:[%s273 + $0x74] sm:$0xf]
      %v310 = vld [vmem:[%s273 + $0x78] sm:$0xf]
      %v311 = vld [vmem:[%s273 + $0x7c] sm:$0xf]
      %v344 = vunpack.c.l.b16 %v280
      %v345 = vunpack.c.l.b16 %v281
      %v346 = vunpack.c.l.b16 %v282
      %v347 = vunpack.c.l.b16 %v283
      %v348 = vunpack.c.l.b16 %v284
      %v349 = vunpack.c.l.b16 %v285
      %v350 = vunpack.c.l.b16 %v286
      %v351 = vunpack.c.l.b16 %v287
      %v352 = vunpack.c.l.b16 %v288
      %v353 = vunpack.c.l.b16 %v289
      %v354 = vunpack.c.l.b16 %v290
      %v355 = vunpack.c.l.b16 %v291
      %v356 = vunpack.c.l.b16 %v292
      %v357 = vunpack.c.l.b16 %v293
      %v358 = vunpack.c.l.b16 %v294
      %v359 = vunpack.c.l.b16 %v295
      %v360 = vunpack.c.l.b16 %v296
      %v361 = vunpack.c.l.b16 %v297
      %v362 = vunpack.c.l.b16 %v298
      %v363 = vunpack.c.l.b16 %v299
      %v364 = vunpack.c.l.b16 %v300
      %v365 = vunpack.c.l.b16 %v301
      %v366 = vunpack.c.l.b16 %v302
      %v367 = vunpack.c.l.b16 %v303
      %v368 = vunpack.c.l.b16 %v304
      %v369 = vunpack.c.l.b16 %v305
      %v370 = vunpack.c.l.b16 %v306
      %v371 = vunpack.c.l.b16 %v307
      %v372 = vunpack.c.l.b16 %v308
      %v373 = vunpack.c.l.b16 %v309
      %v374 = vunpack.c.l.b16 %v310
      %v375 = vunpack.c.l.b16 %v311
      %v376 = vpack.c.b16 %v345, %v344
      %v377 = vpack.c.b16 %v347, %v346
      %v378 = vpack.c.b16 %v349, %v348
      %v379 = vpack.c.b16 %v351, %v350
      %v380 = vpack.c.b16 %v353, %v352
      %v381 = vpack.c.b16 %v355, %v354
      %v382 = vpack.c.b16 %v357, %v356
      %v383 = vpack.c.b16 %v359, %v358
      %v384 = vpack.c.b16 %v361, %v360
      %v385 = vpack.c.b16 %v363, %v362
      %v386 = vpack.c.b16 %v365, %v364
      %v387 = vpack.c.b16 %v367, %v366
      %v388 = vpack.c.b16 %v369, %v368
      %v389 = vpack.c.b16 %v371, %v370
      %v390 = vpack.c.b16 %v373, %v372
      %v391 = vpack.c.b16 %v375, %v374
      %v393 = vshrl.u32 %v376, 16
      %v395 = vrot.slane %v393, 7
      %v396 = vshll.u32 %v376, 16
      %v398 = vor.u32 %v395, %v396
      %v400 = vshrl.u32 %v377, 16
      %v402 = vrot.slane %v400, 7
      %v403 = vshll.u32 %v377, 16
      %v405 = vor.u32 %v402, %v403
      %v407 = vshrl.u32 %v378, 16
      %v409 = vrot.slane %v407, 7
      %v410 = vshll.u32 %v378, 16
      %v412 = vor.u32 %v409, %v410
      %v414 = vshrl.u32 %v379, 16
      %v416 = vrot.slane %v414, 7
      %v417 = vshll.u32 %v379, 16
      %v419 = vor.u32 %v416, %v417
      %v421 = vshrl.u32 %v380, 16
      %v423 = vrot.slane %v421, 7
      %v424 = vshll.u32 %v380, 16
      %v426 = vor.u32 %v423, %v424
      %v428 = vshrl.u32 %v381, 16
      %v430 = vrot.slane %v428, 7
      %v431 = vshll.u32 %v381, 16
      %v433 = vor.u32 %v430, %v431
      %v435 = vshrl.u32 %v382, 16
      %v437 = vrot.slane %v435, 7
      %v438 = vshll.u32 %v382, 16
      %v440 = vor.u32 %v437, %v438
      %v442 = vshrl.u32 %v383, 16
      %v444 = vrot.slane %v442, 7
      %v445 = vshll.u32 %v383, 16
      %v447 = vor.u32 %v444, %v445
      %v449 = vshrl.u32 %v384, 16
      %v451 = vrot.slane %v449, 7
      %v452 = vshll.u32 %v384, 16
      %v454 = vor.u32 %v451, %v452
      %v456 = vshrl.u32 %v385, 16
      %v458 = vrot.slane %v456, 7
      %v459 = vshll.u32 %v385, 16
      %v461 = vor.u32 %v458, %v459
      %v463 = vshrl.u32 %v386, 16
      %v465 = vrot.slane %v463, 7
      %v466 = vshll.u32 %v386, 16
      %v468 = vor.u32 %v465, %v466
      %v470 = vshrl.u32 %v387, 16
      %v472 = vrot.slane %v470, 7
      %v473 = vshll.u32 %v387, 16
      %v475 = vor.u32 %v472, %v473
      %v477 = vshrl.u32 %v388, 16
      %v479 = vrot.slane %v477, 7
      %v480 = vshll.u32 %v388, 16
      %v482 = vor.u32 %v479, %v480
      %v484 = vshrl.u32 %v389, 16
      %v486 = vrot.slane %v484, 7
      %v487 = vshll.u32 %v389, 16
      %v489 = vor.u32 %v486, %v487
      %v491 = vshrl.u32 %v390, 16
      %v493 = vrot.slane %v491, 7
      %v494 = vshll.u32 %v390, 16
      %v496 = vor.u32 %v493, %v494
      %v498 = vshrl.u32 %v391, 16
      %v500 = vrot.slane %v498, 7
      %v501 = vshll.u32 %v391, 16
      %v503 = vor.u32 %v500, %v501
      %vm536 = vcmask 1040384
      %vm537 = vsmask.f32 256
      %vm538 = vmand %vm536, %vm537
      %v539 = vsel %vm538, 0, %v398
      %v540 = vsel %vm538, 0, %v405
      %v541 = vsel %vm538, 0, %v412
      %v542 = vsel %vm538, 0, %v419
      %v543 = vsel %vm538, 0, %v426
      %v544 = vsel %vm538, 0, %v433
      %v545 = vsel %vm538, 0, %v440
      %v546 = vsel %vm538, 0, %v447
      %v547 = vsel %vm538, 0, %v454
      %v548 = vsel %vm538, 0, %v461
      %v549 = vsel %vm538, 0, %v468
      %v550 = vsel %vm538, 0, %v475
      %v551 = vsel %vm538, 0, %v482
      %v552 = vsel %vm538, 0, %v489
      %v553 = vsel %vm538, 0, %v496
      %v554 = vsel %vm538, 0, %v503
      %v555 = vsel %vm538, %v395, 0
      %v556 = vsel %vm538, %v402, 0
      %v557 = vsel %vm538, %v409, 0
      %v558 = vsel %vm538, %v416, 0
      %v559 = vsel %vm538, %v423, 0
      %v560 = vsel %vm538, %v430, 0
      %v561 = vsel %vm538, %v437, 0
      %v562 = vsel %vm538, %v444, 0
      %v563 = vsel %vm538, %v451, 0
      %v564 = vsel %vm538, %v458, 0
      %v565 = vsel %vm538, %v465, 0
      %v566 = vsel %vm538, %v472, 0
      %v567 = vsel %vm538, %v479, 0
      %v568 = vsel %vm538, %v486, 0
      %v569 = vsel %vm538, %v493, 0
      %v570 = vsel %vm538, %v500, 0
      %vm571 = vsmask.f32 7424
      %v573 = vshrl.u32 0, 16
      %v575 = vshll.u32 0, 16
      %v577 = vrot.slane %v575, 1
      %v578 = vor.u32 %v573, %v577
      %v579 = vsel %vm571, %v578, %v577
      %v581 = vshrl.u32 %v539, 16
      %v583 = vshll.u32 %v539, 16
      %v585 = vrot.slane %v583, 1
      %v586 = vor.u32 %v581, %v585
      %v588 = vshll.u32 %v555, 16
      %v590 = vrot.slane %v588, 1
      %v591 = vsel %vm571, %v586, %v590
      %v593 = vshrl.u32 %v540, 16
      %v595 = vshll.u32 %v540, 16
      %v597 = vrot.slane %v595, 1
      %v598 = vor.u32 %v593, %v597
      %v600 = vshll.u32 %v556, 16
      %v602 = vrot.slane %v600, 1
      %v603 = vsel %vm571, %v598, %v602
      %v605 = vshrl.u32 %v541, 16
      %v607 = vshll.u32 %v541, 16
      %v609 = vrot.slane %v607, 1
      %v610 = vor.u32 %v605, %v609
      %v612 = vshll.u32 %v557, 16
      %v614 = vrot.slane %v612, 1
      %v615 = vsel %vm571, %v610, %v614
      %v617 = vshrl.u32 %v542, 16
      %v619 = vshll.u32 %v542, 16
      %v621 = vrot.slane %v619, 1
      %v622 = vor.u32 %v617, %v621
      %v624 = vshll.u32 %v558, 16
      %v626 = vrot.slane %v624, 1
      %v627 = vsel %vm571, %v622, %v626
      %v629 = vshrl.u32 %v543, 16
      %v631 = vshll.u32 %v543, 16
      %v633 = vrot.slane %v631, 1
      %v634 = vor.u32 %v629, %v633
      %v636 = vshll.u32 %v559, 16
      %v638 = vrot.slane %v636, 1
      %v639 = vsel %vm571, %v634, %v638
      %v641 = vshrl.u32 %v544, 16
      %v643 = vshll.u32 %v544, 16
      %v645 = vrot.slane %v643, 1
      %v646 = vor.u32 %v641, %v645
      %v648 = vshll.u32 %v560, 16
      %v650 = vrot.slane %v648, 1
      %v651 = vsel %vm571, %v646, %v650
      %v653 = vshrl.u32 %v545, 16
      %v655 = vshll.u32 %v545, 16
      %v657 = vrot.slane %v655, 1
      %v658 = vor.u32 %v653, %v657
      %v660 = vshll.u32 %v561, 16
      %v662 = vrot.slane %v660, 1
      %v663 = vsel %vm571, %v658, %v662
      %v665 = vshrl.u32 %v546, 16
      %v667 = vshll.u32 %v546, 16
      %v669 = vrot.slane %v667, 1
      %v670 = vor.u32 %v665, %v669
      %v672 = vshll.u32 %v562, 16
      %v674 = vrot.slane %v672, 1
      %v675 = vsel %vm571, %v670, %v674
      %v677 = vshrl.u32 %v547, 16
      %v679 = vshll.u32 %v547, 16
      %v681 = vrot.slane %v679, 1
      %v682 = vor.u32 %v677, %v681
      %v684 = vshll.u32 %v563, 16
      %v686 = vrot.slane %v684, 1
      %v687 = vsel %vm571, %v682, %v686
      %v689 = vshrl.u32 %v548, 16
      %v691 = vshll.u32 %v548, 16
      %v693 = vrot.slane %v691, 1
      %v694 = vor.u32 %v689, %v693
      %v696 = vshll.u32 %v564, 16
      %v698 = vrot.slane %v696, 1
      %v699 = vsel %vm571, %v694, %v698
      %v701 = vshrl.u32 %v549, 16
      %v703 = vshll.u32 %v549, 16
      %v705 = vrot.slane %v703, 1
      %v706 = vor.u32 %v701, %v705
      %v708 = vshll.u32 %v565, 16
      %v710 = vrot.slane %v708, 1
      %v711 = vsel %vm571, %v706, %v710
      %v713 = vshrl.u32 %v550, 16
      %v715 = vshll.u32 %v550, 16
      %v717 = vrot.slane %v715, 1
      %v718 = vor.u32 %v713, %v717
      %v720 = vshll.u32 %v566, 16
      %v722 = vrot.slane %v720, 1
      %v723 = vsel %vm571, %v718, %v722
      %v725 = vshrl.u32 %v551, 16
      %v727 = vshll.u32 %v551, 16
      %v729 = vrot.slane %v727, 1
      %v730 = vor.u32 %v725, %v729
      %v732 = vshll.u32 %v567, 16
      %v734 = vrot.slane %v732, 1
      %v735 = vsel %vm571, %v730, %v734
      %v737 = vshrl.u32 %v552, 16
      %v739 = vshll.u32 %v552, 16
      %v741 = vrot.slane %v739, 1
      %v742 = vor.u32 %v737, %v741
      %v744 = vshll.u32 %v568, 16
      %v746 = vrot.slane %v744, 1
      %v747 = vsel %vm571, %v742, %v746
      %v749 = vshrl.u32 %v553, 16
      %v751 = vshll.u32 %v553, 16
      %v753 = vrot.slane %v751, 1
      %v754 = vor.u32 %v749, %v753
      %v756 = vshll.u32 %v569, 16
      %v758 = vrot.slane %v756, 1
      %v759 = vsel %vm571, %v754, %v758
      %760 = vrot.lane.b32.xlu0 %v579, 32
      %v761 = vpop.permute.xlu0 %760
      %762 = vrot.lane.b32.xlu0 %v591, 32
      %v763 = vpop.permute.xlu0 %762
      %764 = vrot.lane.b32.xlu0 %v603, 32
      %v765 = vpop.permute.xlu0 %764
      %766 = vrot.lane.b32.xlu0 %v615, 32
      %v767 = vpop.permute.xlu0 %766
      %768 = vrot.lane.b32.xlu0 %v627, 32
      %v769 = vpop.permute.xlu0 %768
      %770 = vrot.lane.b32.xlu0 %v639, 32
      %v771 = vpop.permute.xlu0 %770
      %772 = vrot.lane.b32.xlu0 %v651, 32
      %v773 = vpop.permute.xlu0 %772
      %774 = vrot.lane.b32.xlu0 %v663, 32
      %v775 = vpop.permute.xlu0 %774
      %776 = vrot.lane.b32.xlu0 %v675, 32
      %v777 = vpop.permute.xlu0 %776
      %778 = vrot.lane.b32.xlu0 %v687, 32
      %v779 = vpop.permute.xlu0 %778
      %780 = vrot.lane.b32.xlu0 %v699, 32
      %v781 = vpop.permute.xlu0 %780
      %782 = vrot.lane.b32.xlu0 %v711, 32
      %v783 = vpop.permute.xlu0 %782
      %784 = vrot.lane.b32.xlu0 %v723, 32
      %v785 = vpop.permute.xlu0 %784
      %786 = vrot.lane.b32.xlu0 %v735, 32
      %v787 = vpop.permute.xlu0 %786
      %788 = vrot.lane.b32.xlu0 %v747, 32
      %v789 = vpop.permute.xlu0 %788
      %790 = vrot.lane.b32.xlu0 %v759, 32
      %v791 = vpop.permute.xlu0 %790
      %vm823 = vcmask 1046528
      %v824 = vrot.slane 0, 1
      %v825 = vsel %vm823, %v824, %v824
      %v826 = vrot.slane %v539, 1
      %v827 = vrot.slane %v555, 1
      %v828 = vsel %vm823, %v826, %v827
      %v829 = vrot.slane %v540, 1
      %v830 = vrot.slane %v556, 1
      %v831 = vsel %vm823, %v829, %v830
      %v832 = vrot.slane %v541, 1
      %v833 = vrot.slane %v557, 1
      %v834 = vsel %vm823, %v832, %v833
      %v835 = vrot.slane %v542, 1
      %v836 = vrot.slane %v558, 1
      %v837 = vsel %vm823, %v835, %v836
      %v838 = vrot.slane %v543, 1
      %v839 = vrot.slane %v559, 1
      %v840 = vsel %vm823, %v838, %v839
      %v841 = vrot.slane %v544, 1
      %v842 = vrot.slane %v560, 1
      %v843 = vsel %vm823, %v841, %v842
      %v844 = vrot.slane %v545, 1
      %v845 = vrot.slane %v561, 1
      %v846 = vsel %vm823, %v844, %v845
      %v847 = vrot.slane %v546, 1
      %v848 = vrot.slane %v562, 1
      %v849 = vsel %vm823, %v847, %v848
      %v850 = vrot.slane %v547, 1
      %v851 = vrot.slane %v563, 1
      %v852 = vsel %vm823, %v850, %v851
      %v853 = vrot.slane %v548, 1
      %v854 = vrot.slane %v564, 1
      %v855 = vsel %vm823, %v853, %v854
      %v856 = vrot.slane %v549, 1
      %v857 = vrot.slane %v565, 1
      %v858 = vsel %vm823, %v856, %v857
      %v859 = vrot.slane %v550, 1
      %v860 = vrot.slane %v566, 1
      %v861 = vsel %vm823, %v859, %v860
      %v862 = vrot.slane %v551, 1
      %v863 = vrot.slane %v567, 1
      %v864 = vsel %vm823, %v862, %v863
      %v865 = vrot.slane %v552, 1
      %v866 = vrot.slane %v568, 1
      %v867 = vsel %vm823, %v865, %v866
      %v868 = vrot.slane %v553, 1
      %v869 = vrot.slane %v569, 1
      %v870 = vsel %vm823, %v868, %v869
      %871 = vrot.lane.b32.xlu0 %v825, 64
      %v872 = vpop.permute.xlu0 %871
      %873 = vrot.lane.b32.xlu0 %v828, 64
      %v874 = vpop.permute.xlu0 %873
      %875 = vrot.lane.b32.xlu0 %v831, 64
      %v876 = vpop.permute.xlu0 %875
      %877 = vrot.lane.b32.xlu0 %v834, 64
      %v878 = vpop.permute.xlu0 %877
      %879 = vrot.lane.b32.xlu0 %v837, 64
      %v880 = vpop.permute.xlu0 %879
      %881 = vrot.lane.b32.xlu0 %v840, 64
      %v882 = vpop.permute.xlu0 %881
      %883 = vrot.lane.b32.xlu0 %v843, 64
      %v884 = vpop.permute.xlu0 %883
      %885 = vrot.lane.b32.xlu0 %v846, 64
      %v886 = vpop.permute.xlu0 %885
      %887 = vrot.lane.b32.xlu0 %v849, 64
      %v888 = vpop.permute.xlu0 %887
      %889 = vrot.lane.b32.xlu0 %v852, 64
      %v890 = vpop.permute.xlu0 %889
      %891 = vrot.lane.b32.xlu0 %v855, 64
      %v892 = vpop.permute.xlu0 %891
      %893 = vrot.lane.b32.xlu0 %v858, 64
      %v894 = vpop.permute.xlu0 %893
      %895 = vrot.lane.b32.xlu0 %v861, 64
      %v896 = vpop.permute.xlu0 %895
      %897 = vrot.lane.b32.xlu0 %v864, 64
      %v898 = vpop.permute.xlu0 %897
      %899 = vrot.lane.b32.xlu0 %v867, 64
      %v900 = vpop.permute.xlu0 %899
      %901 = vrot.lane.b32.xlu0 %v870, 64
      %v902 = vpop.permute.xlu0 %901
      %904 = vrot.lane.b32.xlu0 %v539, 96
      %v905 = vpop.permute.xlu0 %904
      %906 = vrot.lane.b32.xlu0 %v540, 96
      %v907 = vpop.permute.xlu0 %906
      %908 = vrot.lane.b32.xlu0 %v541, 96
      %v909 = vpop.permute.xlu0 %908
      %910 = vrot.lane.b32.xlu0 %v542, 96
      %v911 = vpop.permute.xlu0 %910
      %912 = vrot.lane.b32.xlu0 %v543, 96
      %v913 = vpop.permute.xlu0 %912
      %914 = vrot.lane.b32.xlu0 %v544, 96
      %v915 = vpop.permute.xlu0 %914
      %916 = vrot.lane.b32.xlu0 %v545, 96
      %v917 = vpop.permute.xlu0 %916
      %918 = vrot.lane.b32.xlu0 %v546, 96
      %v919 = vpop.permute.xlu0 %918
      %920 = vrot.lane.b32.xlu0 %v547, 96
      %v921 = vpop.permute.xlu0 %920
      %922 = vrot.lane.b32.xlu0 %v548, 96
      %v923 = vpop.permute.xlu0 %922
      %924 = vrot.lane.b32.xlu0 %v549, 96
      %v925 = vpop.permute.xlu0 %924
      %926 = vrot.lane.b32.xlu0 %v550, 96
      %v927 = vpop.permute.xlu0 %926
      %928 = vrot.lane.b32.xlu0 %v551, 96
      %v929 = vpop.permute.xlu0 %928
      %930 = vrot.lane.b32.xlu0 %v552, 96
      %v931 = vpop.permute.xlu0 %930
      %932 = vrot.lane.b32.xlu0 %v553, 96
      %v933 = vpop.permute.xlu0 %932
      %934 = vrot.lane.b32.xlu0 %v554, 96
      %v935 = vpop.permute.xlu0 %934
      %v937 = vshrl.u32 %v554, 16
      %v939 = vshll.u32 %v554, 16
      %v941 = vrot.slane %v939, 1
      %v942 = vor.u32 %v937, %v941
      %v944 = vshll.u32 %v570, 16
      %v946 = vrot.slane %v944, 1
      %v947 = vsel %vm571, %v942, %v946
      %v949 = vrot.slane %v554, 1
      %v950 = vrot.slane %v570, 1
      %v951 = vsel %vm823, %v949, %v950
      %952 = vrot.lane.b32.xlu0 %v828, 32
      %v953 = vpop.permute.xlu0 %952
      %954 = vrot.lane.b32.xlu0 %v831, 32
      %v955 = vpop.permute.xlu0 %954
      %956 = vrot.lane.b32.xlu0 %v834, 32
      %v957 = vpop.permute.xlu0 %956
      %958 = vrot.lane.b32.xlu0 %v837, 32
      %v959 = vpop.permute.xlu0 %958
      %960 = vrot.lane.b32.xlu0 %v840, 32
      %v961 = vpop.permute.xlu0 %960
      %962 = vrot.lane.b32.xlu0 %v843, 32
      %v963 = vpop.permute.xlu0 %962
      %964 = vrot.lane.b32.xlu0 %v846, 32
      %v965 = vpop.permute.xlu0 %964
      %966 = vrot.lane.b32.xlu0 %v849, 32
      %v967 = vpop.permute.xlu0 %966
      %968 = vrot.lane.b32.xlu0 %v852, 32
      %v969 = vpop.permute.xlu0 %968
      %970 = vrot.lane.b32.xlu0 %v855, 32
      %v971 = vpop.permute.xlu0 %970
      %972 = vrot.lane.b32.xlu0 %v858, 32
      %v973 = vpop.permute.xlu0 %972
      %974 = vrot.lane.b32.xlu0 %v861, 32
      %v975 = vpop.permute.xlu0 %974
      %976 = vrot.lane.b32.xlu0 %v864, 32
      %v977 = vpop.permute.xlu0 %976
      %978 = vrot.lane.b32.xlu0 %v867, 32
      %v979 = vpop.permute.xlu0 %978
      %980 = vrot.lane.b32.xlu0 %v870, 32
      %v981 = vpop.permute.xlu0 %980
      %982 = vrot.lane.b32.xlu0 %v951, 32
      %v983 = vpop.permute.xlu0 %982
      %984 = vrot.lane.b32.xlu0 %v540, 64
      %v985 = vpop.permute.xlu0 %984
      %986 = vrot.lane.b32.xlu0 %v541, 64
      %v987 = vpop.permute.xlu0 %986
      %988 = vrot.lane.b32.xlu0 %v542, 64
      %v989 = vpop.permute.xlu0 %988
      %990 = vrot.lane.b32.xlu0 %v543, 64
      %v991 = vpop.permute.xlu0 %990
      %992 = vrot.lane.b32.xlu0 %v544, 64
      %v993 = vpop.permute.xlu0 %992
      %994 = vrot.lane.b32.xlu0 %v545, 64
      %v995 = vpop.permute.xlu0 %994
      %996 = vrot.lane.b32.xlu0 %v546, 64
      %v997 = vpop.permute.xlu0 %996
      %998 = vrot.lane.b32.xlu0 %v547, 64
      %v999 = vpop.permute.xlu0 %998
      %1000 = vrot.lane.b32.xlu0 %v548, 64
      %v1001 = vpop.permute.xlu0 %1000
      %1002 = vrot.lane.b32.xlu0 %v549, 64
      %v1003 = vpop.permute.xlu0 %1002
      %1004 = vrot.lane.b32.xlu0 %v550, 64
      %v1005 = vpop.permute.xlu0 %1004
      %1006 = vrot.lane.b32.xlu0 %v551, 64
      %v1007 = vpop.permute.xlu0 %1006
      %1008 = vrot.lane.b32.xlu0 %v552, 64
      %v1009 = vpop.permute.xlu0 %1008
      %1010 = vrot.lane.b32.xlu0 %v553, 64
      %v1011 = vpop.permute.xlu0 %1010
      %1012 = vrot.lane.b32.xlu0 %v554, 64
      %v1013 = vpop.permute.xlu0 %1012
      %1014 = vrot.lane.b32.xlu0 0, 64
      %v1015 = vpop.permute.xlu0 %1014
      %1016 = vrot.lane.b32.xlu0 %v603, 96
      %v1017 = vpop.permute.xlu0 %1016
      %1018 = vrot.lane.b32.xlu0 %v615, 96
      %v1019 = vpop.permute.xlu0 %1018
      %1020 = vrot.lane.b32.xlu0 %v627, 96
      %v1021 = vpop.permute.xlu0 %1020
      %1022 = vrot.lane.b32.xlu0 %v639, 96
      %v1023 = vpop.permute.xlu0 %1022
      %1024 = vrot.lane.b32.xlu0 %v651, 96
      %v1025 = vpop.permute.xlu0 %1024
      %1026 = vrot.lane.b32.xlu0 %v663, 96
      %v1027 = vpop.permute.xlu0 %1026
      %1028 = vrot.lane.b32.xlu0 %v675, 96
      %v1029 = vpop.permute.xlu0 %1028
      %1030 = vrot.lane.b32.xlu0 %v687, 96
      %v1031 = vpop.permute.xlu0 %1030
      %1032 = vrot.lane.b32.xlu0 %v699, 96
      %v1033 = vpop.permute.xlu0 %1032
      %1034 = vrot.lane.b32.xlu0 %v711, 96
      %v1035 = vpop.permute.xlu0 %1034
      %1036 = vrot.lane.b32.xlu0 %v723, 96
      %v1037 = vpop.permute.xlu0 %1036
      %1038 = vrot.lane.b32.xlu0 %v735, 96
      %v1039 = vpop.permute.xlu0 %1038
      %1040 = vrot.lane.b32.xlu0 %v747, 96
      %v1041 = vpop.permute.xlu0 %1040
      %1042 = vrot.lane.b32.xlu0 %v759, 96
      %v1043 = vpop.permute.xlu0 %1042
      %1044 = vrot.lane.b32.xlu0 %v947, 96
      %v1045 = vpop.permute.xlu0 %1044
      %1046 = vrot.lane.b32.xlu0 %v579, 96
      %v1047 = vpop.permute.xlu0 %1046
      %vm1048 = vcmask 261120
      %v1050 = vsel %vm1048, 0, %v761
      %v1052 = vsel %vm1048, %v539, %v763
      %v1054 = vsel %vm1048, %v540, %v765
      %v1056 = vsel %vm1048, %v541, %v767
      %v1058 = vsel %vm1048, %v542, %v769
      %v1060 = vsel %vm1048, %v543, %v771
      %v1062 = vsel %vm1048, %v544, %v773
      %v1064 = vsel %vm1048, %v545, %v775
      %v1066 = vsel %vm1048, %v546, %v777
      %v1068 = vsel %vm1048, %v547, %v779
      %v1070 = vsel %vm1048, %v548, %v781
      %v1072 = vsel %vm1048, %v549, %v783
      %v1074 = vsel %vm1048, %v550, %v785
      %v1076 = vsel %vm1048, %v551, %v787
      %v1078 = vsel %vm1048, %v552, %v789
      %v1080 = vsel %vm1048, %v553, %v791
      %vm1081 = vcmask 523264
      %v1083 = vsel %vm1081, %v1050, %v872
      %v1085 = vsel %vm1081, %v1052, %v874
      %v1087 = vsel %vm1081, %v1054, %v876
      %v1089 = vsel %vm1081, %v1056, %v878
      %v1091 = vsel %vm1081, %v1058, %v880
      %v1093 = vsel %vm1081, %v1060, %v882
      %v1095 = vsel %vm1081, %v1062, %v884
      %v1097 = vsel %vm1081, %v1064, %v886
      %v1099 = vsel %vm1081, %v1066, %v888
      %v1101 = vsel %vm1081, %v1068, %v890
      %v1103 = vsel %vm1081, %v1070, %v892
      %v1105 = vsel %vm1081, %v1072, %v894
      %v1107 = vsel %vm1081, %v1074, %v896
      %v1109 = vsel %vm1081, %v1076, %v898
      %v1111 = vsel %vm1081, %v1078, %v900
      %v1113 = vsel %vm1081, %v1080, %v902
      %vm1114 = vcmask 785408
      %v1116 = vsel %vm1114, %v1083, %v905
      %v1119 = vsel %vm1114, %v1085, %v907
      %v1122 = vsel %vm1114, %v1087, %v909
      %v1125 = vsel %vm1114, %v1089, %v911
      %v1128 = vsel %vm1114, %v1091, %v913
      %v1131 = vsel %vm1114, %v1093, %v915
      %v1134 = vsel %vm1114, %v1095, %v917
      %v1137 = vsel %vm1114, %v1097, %v919
      %v1140 = vsel %vm1114, %v1099, %v921
      %v1143 = vsel %vm1114, %v1101, %v923
      %v1146 = vsel %vm1114, %v1103, %v925
      %v1149 = vsel %vm1114, %v1105, %v927
      %v1152 = vsel %vm1114, %v1107, %v929
      %v1155 = vsel %vm1114, %v1109, %v931
      %v1158 = vsel %vm1114, %v1111, %v933
      %v1161 = vsel %vm1114, %v1113, %v935
      %v1165 = vsel %vm1048, %v591, %v953
      %v1168 = vsel %vm1048, %v603, %v955
      %v1171 = vsel %vm1048, %v615, %v957
      %v1174 = vsel %vm1048, %v627, %v959
      %v1177 = vsel %vm1048, %v639, %v961
      %v1180 = vsel %vm1048, %v651, %v963
      %v1183 = vsel %vm1048, %v663, %v965
      %v1186 = vsel %vm1048, %v675, %v967
      %v1189 = vsel %vm1048, %v687, %v969
      %v1192 = vsel %vm1048, %v699, %v971
      %v1195 = vsel %vm1048, %v711, %v973
      %v1198 = vsel %vm1048, %v723, %v975
      %v1201 = vsel %vm1048, %v735, %v977
      %v1204 = vsel %vm1048, %v747, %v979
      %v1207 = vsel %vm1048, %v759, %v981
      %v1210 = vsel %vm1048, %v947, %v983
      %v1212 = vsel %vm1081, %v1165, %v985
      %v1214 = vsel %vm1081, %v1168, %v987
      %v1216 = vsel %vm1081, %v1171, %v989
      %v1218 = vsel %vm1081, %v1174, %v991
      %v1220 = vsel %vm1081, %v1177, %v993
      %v1222 = vsel %vm1081, %v1180, %v995
      %v1224 = vsel %vm1081, %v1183, %v997
      %v1226 = vsel %vm1081, %v1186, %v999
      %v1228 = vsel %vm1081, %v1189, %v1001
      %v1230 = vsel %vm1081, %v1192, %v1003
      %v1232 = vsel %vm1081, %v1195, %v1005
      %v1234 = vsel %vm1081, %v1198, %v1007
      %v1236 = vsel %vm1081, %v1201, %v1009
      %v1238 = vsel %vm1081, %v1204, %v1011
      %v1240 = vsel %vm1081, %v1207, %v1013
      %v1242 = vsel %vm1081, %v1210, %v1015
      %v1244 = vsel %vm1114, %v1212, %v1017
      %v1247 = vsel %vm1114, %v1214, %v1019
      %v1250 = vsel %vm1114, %v1216, %v1021
      %v1253 = vsel %vm1114, %v1218, %v1023
      %v1256 = vsel %vm1114, %v1220, %v1025
      %v1259 = vsel %vm1114, %v1222, %v1027
      %v1262 = vsel %vm1114, %v1224, %v1029
      %v1265 = vsel %vm1114, %v1226, %v1031
      %v1268 = vsel %vm1114, %v1228, %v1033
      %v1271 = vsel %vm1114, %v1230, %v1035
      %v1274 = vsel %vm1114, %v1232, %v1037
      %v1277 = vsel %vm1114, %v1234, %v1039
      %v1280 = vsel %vm1114, %v1236, %v1041
      %v1283 = vsel %vm1114, %v1238, %v1043
      %v1286 = vsel %vm1114, %v1240, %v1045
      %v1289 = vsel %vm1114, %v1242, %v1047
      %v1291 = vld [vmem:[%s1] sm:$0xf]
      %v1292 = vld [vmem:[%s1 + $0x4] sm:$0xf]
      %v1293 = vld [vmem:[%s1 + $0x8] sm:$0xf]
      %v1294 = vld [vmem:[%s1 + $0xc] sm:$0xf]
      %v1295 = vld [vmem:[%s1 + $0x10] sm:$0xf]
      %v1296 = vld [vmem:[%s1 + $0x14] sm:$0xf]
      %v1297 = vld [vmem:[%s1 + $0x18] sm:$0xf]
      %v1298 = vld [vmem:[%s1 + $0x1c] sm:$0xf]
      %v1299 = vld [vmem:[%s1 + $0x20] sm:$0xf]
      %v1300 = vld [vmem:[%s1 + $0x24] sm:$0xf]
      %v1301 = vld [vmem:[%s1 + $0x28] sm:$0xf]
      %v1302 = vld [vmem:[%s1 + $0x2c] sm:$0xf]
      %v1303 = vld [vmem:[%s1 + $0x30] sm:$0xf]
      %v1304 = vld [vmem:[%s1 + $0x34] sm:$0xf]
      %v1305 = vld [vmem:[%s1 + $0x38] sm:$0xf]
      %v1306 = vld [vmem:[%s1 + $0x3c] sm:$0xf]
      %v1307 = vld [vmem:[%s1 + $0x40] sm:$0xf]
      %v1308 = vld [vmem:[%s1 + $0x44] sm:$0xf]
      %v1309 = vld [vmem:[%s1 + $0x48] sm:$0xf]
      %v1310 = vld [vmem:[%s1 + $0x4c] sm:$0xf]
      %v1311 = vld [vmem:[%s1 + $0x50] sm:$0xf]
      %v1312 = vld [vmem:[%s1 + $0x54] sm:$0xf]
      %v1313 = vld [vmem:[%s1 + $0x58] sm:$0xf]
      %v1314 = vld [vmem:[%s1 + $0x5c] sm:$0xf]
      %v1315 = vld [vmem:[%s1 + $0x60] sm:$0xf]
      %v1316 = vld [vmem:[%s1 + $0x64] sm:$0xf]
      %v1317 = vld [vmem:[%s1 + $0x68] sm:$0xf]
      %v1318 = vld [vmem:[%s1 + $0x6c] sm:$0xf]
      %v1319 = vld [vmem:[%s1 + $0x70] sm:$0xf]
      %v1320 = vld [vmem:[%s1 + $0x74] sm:$0xf]
      %v1321 = vld [vmem:[%s1 + $0x78] sm:$0xf]
      %v1322 = vld [vmem:[%s1 + $0x7c] sm:$0xf]
      %v1323 = vld [vmem:[%s1 + $0x80] sm:$0xf]
      %v1324 = vld [vmem:[%s1 + $0x84] sm:$0xf]
      %v1325 = vld [vmem:[%s1 + $0x88] sm:$0xf]
      %v1326 = vld [vmem:[%s1 + $0x8c] sm:$0xf]
      %v1327 = vld [vmem:[%s2] sm:$0x1]
      %v1329 = vlaneseq
      %v1330 = vshrl.u32 %v1329, 7
      %v1331 = vsub.s32 0, %v1330
      %v1332 = vrot.slane %v1327, %v1331
      %v1370 = vunpack.c.l.b16 %v1291
      %v1371 = vunpack.c.l.b16 %v1292
      %v1372 = vunpack.c.l.b16 %v1293
      %v1373 = vunpack.c.l.b16 %v1294
      %v1374 = vunpack.c.l.b16 %v1295
      %v1375 = vunpack.c.l.b16 %v1296
      %v1376 = vunpack.c.l.b16 %v1297
      %v1377 = vunpack.c.l.b16 %v1298
      %v1378 = vunpack.c.l.b16 %v1299
      %v1379 = vunpack.c.l.b16 %v1300
      %v1380 = vunpack.c.l.b16 %v1301
      %v1381 = vunpack.c.l.b16 %v1302
      %v1382 = vunpack.c.l.b16 %v1303
      %v1383 = vunpack.c.l.b16 %v1304
      %v1384 = vunpack.c.l.b16 %v1305
      %v1385 = vunpack.c.l.b16 %v1306
      %v1386 = vunpack.c.l.b16 %v1307
      %v1387 = vunpack.c.l.b16 %v1308
      %v1388 = vunpack.c.l.b16 %v1309
      %v1389 = vunpack.c.l.b16 %v1310
      %v1390 = vunpack.c.l.b16 %v1311
      %v1391 = vunpack.c.l.b16 %v1312
      %v1392 = vunpack.c.l.b16 %v1313
      %v1393 = vunpack.c.l.b16 %v1314
      %v1394 = vunpack.c.l.b16 %v1315
      %v1395 = vunpack.c.l.b16 %v1316
      %v1396 = vunpack.c.l.b16 %v1317
      %v1397 = vunpack.c.l.b16 %v1318
      %v1398 = vunpack.c.l.b16 %v1319
      %v1399 = vunpack.c.l.b16 %v1320
      %v1400 = vunpack.c.l.b16 %v1321
      %v1401 = vunpack.c.l.b16 %v1322
      %v1402 = vunpack.c.l.b16 %v1323
      %v1403 = vunpack.c.l.b16 %v1324
      %v1404 = vunpack.c.l.b16 %v1325
      %v1405 = vunpack.c.l.b16 %v1326
      %v1406 = vpack.c.b16 %v1371, %v1370
      %v1407 = vpack.c.b16 %v1373, %v1372
      %v1408 = vpack.c.b16 %v1375, %v1374
      %v1409 = vpack.c.b16 %v1377, %v1376
      %v1410 = vpack.c.b16 %v1379, %v1378
      %v1411 = vpack.c.b16 %v1381, %v1380
      %v1412 = vpack.c.b16 %v1383, %v1382
      %v1413 = vpack.c.b16 %v1385, %v1384
      %v1414 = vpack.c.b16 %v1387, %v1386
      %v1415 = vpack.c.b16 %v1389, %v1388
      %v1416 = vpack.c.b16 %v1391, %v1390
      %v1417 = vpack.c.b16 %v1393, %v1392
      %v1418 = vpack.c.b16 %v1395, %v1394
      %v1419 = vpack.c.b16 %v1397, %v1396
      %v1420 = vpack.c.b16 %v1399, %v1398
      %v1421 = vpack.c.b16 %v1401, %v1400
      %v1422 = vpack.c.b16 %v1403, %v1402
      %v1423 = vpack.c.b16 %v1405, %v1404
      %v1443 = vsel %vm1048, %v831, 0
      %v1446 = vsel %vm1048, %v834, 0
      %v1449 = vsel %vm1048, %v837, 0
      %v1452 = vsel %vm1048, %v840, 0
      %v1455 = vsel %vm1048, %v843, 0
      %v1458 = vsel %vm1048, %v846, 0
      %v1461 = vsel %vm1048, %v849, 0
      %v1464 = vsel %vm1048, %v852, 0
      %v1467 = vsel %vm1048, %v855, 0
      %v1470 = vsel %vm1048, %v858, 0
      %v1473 = vsel %vm1048, %v861, 0
      %v1476 = vsel %vm1048, %v864, 0
      %v1479 = vsel %vm1048, %v867, 0
      %v1482 = vsel %vm1048, %v870, 0
      %v1485 = vsel %vm1048, %v951, 0
      %v1488 = vsel %vm1048, %v825, 0
      %1490 = vmatprep.subr.bf16.mxu0 0
      %1491 = vmatpush1.bf16.msra.mxu0 %v1413
      %1492 = vmatprep.subr.bf16.mxu0 0
      %1493 = vmatpush1.bf16.msra.mxu0 %v1412
      %1494 = vmatprep.subr.bf16.mxu0 0
      %1495 = vmatpush1.bf16.msra.mxu0 %v1411
      %1496 = vmatprep.subr.bf16.mxu0 0
      %1497 = vmatpush1.bf16.msra.mxu0 %v1410
      %1498 = vmatprep.subr.bf16.mxu0 0
      %1499 = vmatpush1.bf16.msra.mxu0 %v1409
      %1500 = vmatprep.subr.bf16.mxu0 0
      %1501 = vmatpush1.bf16.msra.mxu0 %v1408
      %1502 = vmatprep.subr.bf16.mxu0 0
      %1503 = vmatpush1.bf16.msra.mxu0 %v1407
      %1504 = vmatprep.subr.bf16.mxu0 0
      %1505 = vmatpush1.bf16.msra.mxu0 %v1406
      %1506 = vmatprep.subr.bf16.mxu0 0
      %1507 = vmatpush2.bf16.msra.mxu0 %v1421
      %1508 = vmatprep.subr.bf16.mxu0 0
      %1509 = vmatpush2.bf16.msra.mxu0 %v1420
      %1510 = vmatprep.subr.bf16.mxu0 0
      %1511 = vmatpush2.bf16.msra.mxu0 %v1419
      %1512 = vmatprep.subr.bf16.mxu0 0
      %1513 = vmatpush2.bf16.msra.mxu0 %v1418
      %1514 = vmatprep.subr.bf16.mxu0 0
      %1515 = vmatpush2.bf16.msra.mxu0 %v1417
      %1516 = vmatprep.subr.bf16.mxu0 0
      %1517 = vmatpush2.bf16.msra.mxu0 %v1416
      %1518 = vmatprep.subr.bf16.mxu0 0
      %1519 = vmatpush2.bf16.msra.mxu0 %v1415
      %1520 = vmatprep.subr.bf16.mxu0 0
      %1521 = vmatpush2.bf16.msra.mxu0 %v1414
      %1522 = vmatprep.mubr.bf16.mxu0 %v1244
      %1523 = vmatmul.mubr.bf16.gmra.mxu0 %v1116
      %v1524 = vpop.f32.mrf.mxu0
      %v1525 = vadd.f32 %v1332, %v1524
      %v1526 = vpop.f32.mrf.mxu0
      %v1527 = vpop.f32.mrf.mxu0
      %v1528 = vadd.f32 %v1332, %v1527
      %v1529 = vpop.f32.mrf.mxu0
      %1530 = vmatprep.mubr.bf16.mxu0 %v1247
      %1531 = vmatmul.mubr.bf16.gmra.mxu0 %v1119
      %v1532 = vpop.f32.mrf.mxu0
      %v1533 = vadd.f32 %v1332, %v1532
      %v1534 = vpop.f32.mrf.mxu0
      %v1535 = vpop.f32.mrf.mxu0
      %v1536 = vadd.f32 %v1332, %v1535
      %v1537 = vpop.f32.mrf.mxu0
      %1538 = vmatprep.mubr.bf16.mxu0 %v1250
      %1539 = vmatmul.mubr.bf16.gmra.mxu0 %v1122
      %v1540 = vpop.f32.mrf.mxu0
      %v1541 = vadd.f32 %v1332, %v1540
      %v1542 = vpop.f32.mrf.mxu0
      %v1543 = vpop.f32.mrf.mxu0
      %v1544 = vadd.f32 %v1332, %v1543
      %v1545 = vpop.f32.mrf.mxu0
      %1546 = vmatprep.mubr.bf16.mxu0 %v1253
      %1547 = vmatmul.mubr.bf16.gmra.mxu0 %v1125
      %v1548 = vpop.f32.mrf.mxu0
      %v1549 = vadd.f32 %v1332, %v1548
      %v1550 = vpop.f32.mrf.mxu0
      %v1551 = vpop.f32.mrf.mxu0
      %v1552 = vadd.f32 %v1332, %v1551
      %v1553 = vpop.f32.mrf.mxu0
      %1554 = vmatprep.mubr.bf16.mxu0 %v1256
      %1555 = vmatmul.mubr.bf16.gmra.mxu0 %v1128
      %v1556 = vpop.f32.mrf.mxu0
      %v1557 = vadd.f32 %v1332, %v1556
      %v1558 = vpop.f32.mrf.mxu0
      %v1559 = vpop.f32.mrf.mxu0
      %v1560 = vadd.f32 %v1332, %v1559
      %v1561 = vpop.f32.mrf.mxu0
      %1562 = vmatprep.mubr.bf16.mxu0 %v1259
      %1563 = vmatmul.mubr.bf16.gmra.mxu0 %v1131
      %v1564 = vpop.f32.mrf.mxu0
      %v1565 = vadd.f32 %v1332, %v1564
      %v1566 = vpop.f32.mrf.mxu0
      %v1567 = vpop.f32.mrf.mxu0
      %v1568 = vadd.f32 %v1332, %v1567
      %v1569 = vpop.f32.mrf.mxu0
      %1570 = vmatprep.mubr.bf16.mxu0 %v1262
      %1571 = vmatmul.mubr.bf16.gmra.mxu0 %v1134
      %v1572 = vpop.f32.mrf.mxu0
      %v1573 = vadd.f32 %v1332, %v1572
      %v1574 = vpop.f32.mrf.mxu0
      %v1575 = vpop.f32.mrf.mxu0
      %v1576 = vadd.f32 %v1332, %v1575
      %v1577 = vpop.f32.mrf.mxu0
      %1578 = vmatprep.mubr.bf16.mxu0 %v1265
      %1579 = vmatmul.mubr.bf16.gmra.mxu0 %v1137
      %v1580 = vpop.f32.mrf.mxu0
      %v1581 = vadd.f32 %v1332, %v1580
      %v1582 = vpop.f32.mrf.mxu0
      %v1583 = vpop.f32.mrf.mxu0
      %v1584 = vadd.f32 %v1332, %v1583
      %v1585 = vpop.f32.mrf.mxu0
      %1586 = vmatprep.mubr.bf16.mxu0 %v1268
      %1587 = vmatmul.mubr.bf16.gmra.mxu0 %v1140
      %v1588 = vpop.f32.mrf.mxu0
      %v1589 = vadd.f32 %v1332, %v1588
      %v1590 = vpop.f32.mrf.mxu0
      %v1591 = vpop.f32.mrf.mxu0
      %v1592 = vadd.f32 %v1332, %v1591
      %v1593 = vpop.f32.mrf.mxu0
      %1594 = vmatprep.mubr.bf16.mxu0 %v1271
      %1595 = vmatmul.mubr.bf16.gmra.mxu0 %v1143
      %v1596 = vpop.f32.mrf.mxu0
      %v1597 = vadd.f32 %v1332, %v1596
      %v1598 = vpop.f32.mrf.mxu0
      %v1599 = vpop.f32.mrf.mxu0
      %v1600 = vadd.f32 %v1332, %v1599
      %v1601 = vpop.f32.mrf.mxu0
      %1602 = vmatprep.mubr.bf16.mxu0 %v1274
      %1603 = vmatmul.mubr.bf16.gmra.mxu0 %v1146
      %v1604 = vpop.f32.mrf.mxu0
      %v1605 = vadd.f32 %v1332, %v1604
      %v1606 = vpop.f32.mrf.mxu0
      %v1607 = vpop.f32.mrf.mxu0
      %v1608 = vadd.f32 %v1332, %v1607
      %v1609 = vpop.f32.mrf.mxu0
      %1610 = vmatprep.mubr.bf16.mxu0 %v1277
      %1611 = vmatmul.mubr.bf16.gmra.mxu0 %v1149
      %v1612 = vpop.f32.mrf.mxu0
      %v1613 = vadd.f32 %v1332, %v1612
      %v1614 = vpop.f32.mrf.mxu0
      %v1615 = vpop.f32.mrf.mxu0
      %v1616 = vadd.f32 %v1332, %v1615
      %v1617 = vpop.f32.mrf.mxu0
      %1618 = vmatprep.mubr.bf16.mxu0 %v1280
      %1619 = vmatmul.mubr.bf16.gmra.mxu0 %v1152
      %v1620 = vpop.f32.mrf.mxu0
      %v1621 = vadd.f32 %v1332, %v1620
      %v1622 = vpop.f32.mrf.mxu0
      %v1623 = vpop.f32.mrf.mxu0
      %v1624 = vadd.f32 %v1332, %v1623
      %v1625 = vpop.f32.mrf.mxu0
      %1626 = vmatprep.mubr.bf16.mxu0 %v1283
      %1627 = vmatmul.mubr.bf16.gmra.mxu0 %v1155
      %v1628 = vpop.f32.mrf.mxu0
      %v1629 = vadd.f32 %v1332, %v1628
      %v1630 = vpop.f32.mrf.mxu0
      %v1631 = vpop.f32.mrf.mxu0
      %v1632 = vadd.f32 %v1332, %v1631
      %v1633 = vpop.f32.mrf.mxu0
      %1634 = vmatprep.mubr.bf16.mxu0 %v1286
      %1635 = vmatmul.mubr.bf16.gmra.mxu0 %v1158
      %v1636 = vpop.f32.mrf.mxu0
      %v1637 = vadd.f32 %v1332, %v1636
      %v1638 = vpop.f32.mrf.mxu0
      %v1639 = vpop.f32.mrf.mxu0
      %v1640 = vadd.f32 %v1332, %v1639
      %v1641 = vpop.f32.mrf.mxu0
      %1642 = vmatprep.mubr.bf16.mxu0 %v1289
      %1643 = vmatmul.mubr.bf16.gmra.mxu0 %v1161
      %v1644 = vpop.f32.mrf.mxu0
      %v1645 = vadd.f32 %v1332, %v1644
      %v1646 = vpop.f32.mrf.mxu0
      %v1647 = vpop.f32.mrf.mxu0
      %v1648 = vadd.f32 %v1332, %v1647
      %v1649 = vpop.f32.mrf.mxu0
      %1650 = vdwg.mxu0
      %1651 = vmatprep.subr.bf16.mxu0 0
      %1652 = vmatpush1.bf16.msra.mxu0 0
      %1653 = vmatprep.subr.bf16.mxu0 0
      %1654 = vmatpush1.bf16.msra.mxu0 0
      %1655 = vmatprep.subr.bf16.mxu0 0
      %1656 = vmatpush1.bf16.msra.mxu0 0
      %1657 = vmatprep.subr.bf16.mxu0 0
      %1658 = vmatpush1.bf16.msra.mxu0 0
      %1659 = vmatprep.subr.bf16.mxu0 0
      %1660 = vmatpush1.bf16.msra.mxu0 0
      %1661 = vmatprep.subr.bf16.mxu0 0
      %1662 = vmatpush1.bf16.msra.mxu0 0
      %1663 = vmatprep.subr.bf16.mxu0 0
      %1664 = vmatpush1.bf16.msra.mxu0 %v1423
      %1665 = vmatprep.subr.bf16.mxu0 0
      %1666 = vmatpush1.bf16.msra.mxu0 %v1422
      %1667 = vmatprep.subr.bf16.mxu0 0
      %1668 = vmatpush2.bf16.msra.mxu0 0
      %1669 = vmatprep.subr.bf16.mxu0 0
      %1670 = vmatpush2.bf16.msra.mxu0 0
      %1671 = vmatprep.subr.bf16.mxu0 0
      %1672 = vmatpush2.bf16.msra.mxu0 0
      %1673 = vmatprep.subr.bf16.mxu0 0
      %1674 = vmatpush2.bf16.msra.mxu0 0
      %1675 = vmatprep.subr.bf16.mxu0 0
      %1676 = vmatpush2.bf16.msra.mxu0 0
      %1677 = vmatprep.subr.bf16.mxu0 0
      %1678 = vmatpush2.bf16.msra.mxu0 0
      %1679 = vmatprep.subr.bf16.mxu0 0
      %1680 = vmatpush2.bf16.msra.mxu0 0
      %1681 = vmatprep.subr.bf16.mxu0 0
      %1682 = vmatpush2.bf16.msra.mxu0 0
      %1683 = vmatprep.mubr.bf16.mxu0 0
      %1684 = vmatmul.mubr.bf16.gmra.mxu0 %v1443
      %v1685 = vpop.f32.mrf.mxu0
      %v1686 = vadd.f32 %v1525, %v1685
      %v1687 = vpop.f32.mrf.mxu0
      %v1688 = vpop.f32.mrf.mxu0
      %v1689 = vadd.f32 %v1528, %v1688
      %v1690 = vpop.f32.mrf.mxu0
      %1691 = vmatprep.mubr.bf16.mxu0 0
      %1692 = vmatmul.mubr.bf16.gmra.mxu0 %v1446
      %v1693 = vpop.f32.mrf.mxu0
      %v1694 = vadd.f32 %v1533, %v1693
      %v1695 = vpop.f32.mrf.mxu0
      %v1696 = vpop.f32.mrf.mxu0
      %v1697 = vadd.f32 %v1536, %v1696
      %v1698 = vpop.f32.mrf.mxu0
      %1699 = vmatprep.mubr.bf16.mxu0 0
      %1700 = vmatmul.mubr.bf16.gmra.mxu0 %v1449
      %v1701 = vpop.f32.mrf.mxu0
      %v1702 = vadd.f32 %v1541, %v1701
      %v1703 = vpop.f32.mrf.mxu0
      %v1704 = vpop.f32.mrf.mxu0
      %v1705 = vadd.f32 %v1544, %v1704
      %v1706 = vpop.f32.mrf.mxu0
      %1707 = vmatprep.mubr.bf16.mxu0 0
      %1708 = vmatmul.mubr.bf16.gmra.mxu0 %v1452
      %v1709 = vpop.f32.mrf.mxu0
      %v1710 = vadd.f32 %v1549, %v1709
      %v1711 = vpop.f32.mrf.mxu0
      %v1712 = vpop.f32.mrf.mxu0
      %v1713 = vadd.f32 %v1552, %v1712
      %v1714 = vpop.f32.mrf.mxu0
      %1715 = vmatprep.mubr.bf16.mxu0 0
      %1716 = vmatmul.mubr.bf16.gmra.mxu0 %v1455
      %v1717 = vpop.f32.mrf.mxu0
      %v1718 = vadd.f32 %v1557, %v1717
      %v1719 = vpop.f32.mrf.mxu0
      %v1720 = vpop.f32.mrf.mxu0
      %v1721 = vadd.f32 %v1560, %v1720
      %v1722 = vpop.f32.mrf.mxu0
      %1723 = vmatprep.mubr.bf16.mxu0 0
      %1724 = vmatmul.mubr.bf16.gmra.mxu0 %v1458
      %v1725 = vpop.f32.mrf.mxu0
      %v1726 = vadd.f32 %v1565, %v1725
      %v1727 = vpop.f32.mrf.mxu0
      %v1728 = vpop.f32.mrf.mxu0
      %v1729 = vadd.f32 %v1568, %v1728
      %v1730 = vpop.f32.mrf.mxu0
      %1731 = vmatprep.mubr.bf16.mxu0 0
      %1732 = vmatmul.mubr.bf16.gmra.mxu0 %v1461
      %v1733 = vpop.f32.mrf.mxu0
      %v1734 = vadd.f32 %v1573, %v1733
      %v1735 = vpop.f32.mrf.mxu0
      %v1736 = vpop.f32.mrf.mxu0
      %v1737 = vadd.f32 %v1576, %v1736
      %v1738 = vpop.f32.mrf.mxu0
      %1739 = vmatprep.mubr.bf16.mxu0 0
      %1740 = vmatmul.mubr.bf16.gmra.mxu0 %v1464
      %v1741 = vpop.f32.mrf.mxu0
      %v1742 = vadd.f32 %v1581, %v1741
      %v1743 = vpop.f32.mrf.mxu0
      %v1744 = vpop.f32.mrf.mxu0
      %v1745 = vadd.f32 %v1584, %v1744
      %v1746 = vpop.f32.mrf.mxu0
      %1747 = vmatprep.mubr.bf16.mxu0 0
      %1748 = vmatmul.mubr.bf16.gmra.mxu0 %v1467
      %v1749 = vpop.f32.mrf.mxu0
      %v1750 = vadd.f32 %v1589, %v1749
      %v1751 = vpop.f32.mrf.mxu0
      %v1752 = vpop.f32.mrf.mxu0
      %v1753 = vadd.f32 %v1592, %v1752
      %v1754 = vpop.f32.mrf.mxu0
      %1755 = vmatprep.mubr.bf16.mxu0 0
      %1756 = vmatmul.mubr.bf16.gmra.mxu0 %v1470
      %v1757 = vpop.f32.mrf.mxu0
      %v1758 = vadd.f32 %v1597, %v1757
      %v1759 = vpop.f32.mrf.mxu0
      %v1760 = vpop.f32.mrf.mxu0
      %v1761 = vadd.f32 %v1600, %v1760
      %v1762 = vpop.f32.mrf.mxu0
      %1763 = vmatprep.mubr.bf16.mxu0 0
      %1764 = vmatmul.mubr.bf16.gmra.mxu0 %v1473
      %v1765 = vpop.f32.mrf.mxu0
      %v1766 = vadd.f32 %v1605, %v1765
      %v1767 = vpop.f32.mrf.mxu0
      %v1768 = vpop.f32.mrf.mxu0
      %v1769 = vadd.f32 %v1608, %v1768
      %v1770 = vpop.f32.mrf.mxu0
      %1771 = vmatprep.mubr.bf16.mxu0 0
      %1772 = vmatmul.mubr.bf16.gmra.mxu0 %v1476
      %v1773 = vpop.f32.mrf.mxu0
      %v1774 = vadd.f32 %v1613, %v1773
      %v1775 = vpop.f32.mrf.mxu0
      %v1776 = vpop.f32.mrf.mxu0
      %v1777 = vadd.f32 %v1616, %v1776
      %v1778 = vpop.f32.mrf.mxu0
      %1779 = vmatprep.mubr.bf16.mxu0 0
      %1780 = vmatmul.mubr.bf16.gmra.mxu0 %v1479
      %v1781 = vpop.f32.mrf.mxu0
      %v1782 = vadd.f32 %v1621, %v1781
      %v1783 = vpop.f32.mrf.mxu0
      %v1784 = vpop.f32.mrf.mxu0
      %v1785 = vadd.f32 %v1624, %v1784
      %v1786 = vpop.f32.mrf.mxu0
      %1787 = vmatprep.mubr.bf16.mxu0 0
      %1788 = vmatmul.mubr.bf16.gmra.mxu0 %v1482
      %v1789 = vpop.f32.mrf.mxu0
      %v1790 = vadd.f32 %v1629, %v1789
      %v1791 = vpop.f32.mrf.mxu0
      %v1792 = vpop.f32.mrf.mxu0
      %v1793 = vadd.f32 %v1632, %v1792
      %v1794 = vpop.f32.mrf.mxu0
      %1795 = vmatprep.mubr.bf16.mxu0 0
      %1796 = vmatmul.mubr.bf16.gmra.mxu0 %v1485
      %v1797 = vpop.f32.mrf.mxu0
      %v1798 = vadd.f32 %v1637, %v1797
      %v1799 = vpop.f32.mrf.mxu0
      %v1800 = vpop.f32.mrf.mxu0
      %v1801 = vadd.f32 %v1640, %v1800
      %v1802 = vpop.f32.mrf.mxu0
      %1803 = vmatprep.mubr.bf16.mxu0 0
      %1804 = vmatmul.mubr.bf16.gmra.mxu0 %v1488
      %v1805 = vpop.f32.mrf.mxu0
      %v1806 = vadd.f32 %v1645, %v1805
      %v1807 = vpop.f32.mrf.mxu0
      %v1808 = vpop.f32.mrf.mxu0
      %v1809 = vadd.f32 %v1648, %v1808
      %v1810 = vpop.f32.mrf.mxu0
      %1811 = vdwg.mxu0
      %v1812 = vmax.f32 %v1686, 0.0
      %v1813 = vmax.f32 %v1689, 0.0
      %v1814 = vmax.f32 %v1694, 0.0
      %v1815 = vmax.f32 %v1697, 0.0
      %v1816 = vmax.f32 %v1702, 0.0
      %v1817 = vmax.f32 %v1705, 0.0
      %v1818 = vmax.f32 %v1710, 0.0
      %v1819 = vmax.f32 %v1713, 0.0
      %v1820 = vmax.f32 %v1718, 0.0
      %v1821 = vmax.f32 %v1721, 0.0
      %v1822 = vmax.f32 %v1726, 0.0
      %v1823 = vmax.f32 %v1729, 0.0
      %v1824 = vmax.f32 %v1734, 0.0
      %v1825 = vmax.f32 %v1737, 0.0
      %v1826 = vmax.f32 %v1742, 0.0
      %v1827 = vmax.f32 %v1745, 0.0
      %v1828 = vmax.f32 %v1750, 0.0
      %v1829 = vmax.f32 %v1753, 0.0
      %v1830 = vmax.f32 %v1758, 0.0
      %v1831 = vmax.f32 %v1761, 0.0
      %v1832 = vmax.f32 %v1766, 0.0
      %v1833 = vmax.f32 %v1769, 0.0
      %v1834 = vmax.f32 %v1774, 0.0
      %v1835 = vmax.f32 %v1777, 0.0
      %v1836 = vmax.f32 %v1782, 0.0
      %v1837 = vmax.f32 %v1785, 0.0
      %v1838 = vmax.f32 %v1790, 0.0
      %v1839 = vmax.f32 %v1793, 0.0
      %v1840 = vmax.f32 %v1798, 0.0
      %v1841 = vmax.f32 %v1801, 0.0
      %v1842 = vmax.f32 %v1806, 0.0
      %v1843 = vmax.f32 %v1809, 0.0
      %v1844 = vpack.c.bf16 %v1813, %v1812
      %v1845 = vpack.c.bf16 %v1815, %v1814
      %v1846 = vpack.c.bf16 %v1817, %v1816
      %v1847 = vpack.c.bf16 %v1819, %v1818
      %v1848 = vpack.c.bf16 %v1821, %v1820
      %v1849 = vpack.c.bf16 %v1823, %v1822
      %v1850 = vpack.c.bf16 %v1825, %v1824
      %v1851 = vpack.c.bf16 %v1827, %v1826
      %v1852 = vpack.c.bf16 %v1829, %v1828
      %v1853 = vpack.c.bf16 %v1831, %v1830
      %v1854 = vpack.c.bf16 %v1833, %v1832
      %v1855 = vpack.c.bf16 %v1835, %v1834
      %v1856 = vpack.c.bf16 %v1837, %v1836
      %v1857 = vpack.c.bf16 %v1839, %v1838
      %v1858 = vpack.c.bf16 %v1841, %v1840
      %v1859 = vpack.c.bf16 %v1843, %v1842
      %v1861 = vshrl.u32 %v1844, 16
      %v1863 = vrot.slane %v1861, 7
      %v1864 = vshll.u32 %v1844, 16
      %v1866 = vor.u32 %v1863, %v1864
      %v1868 = vshrl.u32 %v1845, 16
      %v1870 = vrot.slane %v1868, 7
      %v1871 = vshll.u32 %v1845, 16
      %v1873 = vor.u32 %v1870, %v1871
      %v1875 = vshrl.u32 %v1846, 16
      %v1877 = vrot.slane %v1875, 7
      %v1878 = vshll.u32 %v1846, 16
      %v1880 = vor.u32 %v1877, %v1878
      %v1882 = vshrl.u32 %v1847, 16
      %v1884 = vrot.slane %v1882, 7
      %v1885 = vshll.u32 %v1847, 16
      %v1887 = vor.u32 %v1884, %v1885
      %v1889 = vshrl.u32 %v1848, 16
      %v1891 = vrot.slane %v1889, 7
      %v1892 = vshll.u32 %v1848, 16
      %v1894 = vor.u32 %v1891, %v1892
      %v1896 = vshrl.u32 %v1849, 16
      %v1898 = vrot.slane %v1896, 7
      %v1899 = vshll.u32 %v1849, 16
      %v1901 = vor.u32 %v1898, %v1899
      %v1903 = vshrl.u32 %v1850, 16
      %v1905 = vrot.slane %v1903, 7
      %v1906 = vshll.u32 %v1850, 16
      %v1908 = vor.u32 %v1905, %v1906
      %v1910 = vshrl.u32 %v1851, 16
      %v1912 = vrot.slane %v1910, 7
      %v1913 = vshll.u32 %v1851, 16
      %v1915 = vor.u32 %v1912, %v1913
      %v1917 = vshrl.u32 %v1852, 16
      %v1919 = vrot.slane %v1917, 7
      %v1920 = vshll.u32 %v1852, 16
      %v1922 = vor.u32 %v1919, %v1920
      %v1924 = vshrl.u32 %v1853, 16
      %v1926 = vrot.slane %v1924, 7
      %v1927 = vshll.u32 %v1853, 16
      %v1929 = vor.u32 %v1926, %v1927
      %v1931 = vshrl.u32 %v1854, 16
      %v1933 = vrot.slane %v1931, 7
      %v1934 = vshll.u32 %v1854, 16
      %v1936 = vor.u32 %v1933, %v1934
      %v1938 = vshrl.u32 %v1855, 16
      %v1940 = vrot.slane %v1938, 7
      %v1941 = vshll.u32 %v1855, 16
      %v1943 = vor.u32 %v1940, %v1941
      %v1945 = vshrl.u32 %v1856, 16
      %v1947 = vrot.slane %v1945, 7
      %v1948 = vshll.u32 %v1856, 16
      %v1950 = vor.u32 %v1947, %v1948
      %v1952 = vshrl.u32 %v1857, 16
      %v1954 = vrot.slane %v1952, 7
      %v1955 = vshll.u32 %v1857, 16
      %v1957 = vor.u32 %v1954, %v1955
      %v1959 = vshrl.u32 %v1858, 16
      %v1961 = vrot.slane %v1959, 7
      %v1962 = vshll.u32 %v1858, 16
      %v1964 = vor.u32 %v1961, %v1962
      %v1966 = vshrl.u32 %v1859, 16
      %v1968 = vrot.slane %v1966, 7
      %v1969 = vshll.u32 %v1859, 16
      %v1971 = vor.u32 %v1968, %v1969
      %v2004 = vsel %vm538, 0, %v1866
      %v2005 = vsel %vm538, 0, %v1873
      %v2006 = vsel %vm538, 0, %v1880
      %v2007 = vsel %vm538, 0, %v1887
      %v2008 = vsel %vm538, 0, %v1894
      %v2009 = vsel %vm538, 0, %v1901
      %v2010 = vsel %vm538, 0, %v1908
      %v2011 = vsel %vm538, 0, %v1915
      %v2012 = vsel %vm538, 0, %v1922
      %v2013 = vsel %vm538, 0, %v1929
      %v2014 = vsel %vm538, 0, %v1936
      %v2015 = vsel %vm538, 0, %v1943
      %v2016 = vsel %vm538, 0, %v1950
      %v2017 = vsel %vm538, 0, %v1957
      %v2018 = vsel %vm538, 0, %v1964
      %v2019 = vsel %vm538, 0, %v1971
      %v2020 = vsel %vm538, %v1863, 0
      %v2021 = vsel %vm538, %v1870, 0
      %v2022 = vsel %vm538, %v1877, 0
      %v2023 = vsel %vm538, %v1884, 0
      %v2024 = vsel %vm538, %v1891, 0
      %v2025 = vsel %vm538, %v1898, 0
      %v2026 = vsel %vm538, %v1905, 0
      %v2027 = vsel %vm538, %v1912, 0
      %v2028 = vsel %vm538, %v1919, 0
      %v2029 = vsel %vm538, %v1926, 0
      %v2030 = vsel %vm538, %v1933, 0
      %v2031 = vsel %vm538, %v1940, 0
      %v2032 = vsel %vm538, %v1947, 0
      %v2033 = vsel %vm538, %v1954, 0
      %v2034 = vsel %vm538, %v1961, 0
      %v2035 = vsel %vm538, %v1968, 0
      %v2037 = vshrl.u32 %v2004, 16
      %v2039 = vshll.u32 %v2004, 16
      %v2041 = vrot.slane %v2039, 1
      %v2042 = vor.u32 %v2037, %v2041
      %v2044 = vshll.u32 %v2020, 16
      %v2046 = vrot.slane %v2044, 1
      %v2047 = vsel %vm571, %v2042, %v2046
      %v2049 = vshrl.u32 %v2005, 16
      %v2051 = vshll.u32 %v2005, 16
      %v2053 = vrot.slane %v2051, 1
      %v2054 = vor.u32 %v2049, %v2053
      %v2056 = vshll.u32 %v2021, 16
      %v2058 = vrot.slane %v2056, 1
      %v2059 = vsel %vm571, %v2054, %v2058
      %v2061 = vshrl.u32 %v2006, 16
      %v2063 = vshll.u32 %v2006, 16
      %v2065 = vrot.slane %v2063, 1
      %v2066 = vor.u32 %v2061, %v2065
      %v2068 = vshll.u32 %v2022, 16
      %v2070 = vrot.slane %v2068, 1
      %v2071 = vsel %vm571, %v2066, %v2070
      %v2073 = vshrl.u32 %v2007, 16
      %v2075 = vshll.u32 %v2007, 16
      %v2077 = vrot.slane %v2075, 1
      %v2078 = vor.u32 %v2073, %v2077
      %v2080 = vshll.u32 %v2023, 16
      %v2082 = vrot.slane %v2080, 1
      %v2083 = vsel %vm571, %v2078, %v2082
      %v2085 = vshrl.u32 %v2008, 16
      %v2087 = vshll.u32 %v2008, 16
      %v2089 = vrot.slane %v2087, 1
      %v2090 = vor.u32 %v2085, %v2089
      %v2092 = vshll.u32 %v2024, 16
      %v2094 = vrot.slane %v2092, 1
      %v2095 = vsel %vm571, %v2090, %v2094
      %v2097 = vshrl.u32 %v2009, 16
      %v2099 = vshll.u32 %v2009, 16
      %v2101 = vrot.slane %v2099, 1
      %v2102 = vor.u32 %v2097, %v2101
      %v2104 = vshll.u32 %v2025, 16
      %v2106 = vrot.slane %v2104, 1
      %v2107 = vsel %vm571, %v2102, %v2106
      %v2109 = vshrl.u32 %v2010, 16
      %v2111 = vshll.u32 %v2010, 16
      %v2113 = vrot.slane %v2111, 1
      %v2114 = vor.u32 %v2109, %v2113
      %v2116 = vshll.u32 %v2026, 16
      %v2118 = vrot.slane %v2116, 1
      %v2119 = vsel %vm571, %v2114, %v2118
      %v2121 = vshrl.u32 %v2011, 16
      %v2123 = vshll.u32 %v2011, 16
      %v2125 = vrot.slane %v2123, 1
      %v2126 = vor.u32 %v2121, %v2125
      %v2128 = vshll.u32 %v2027, 16
      %v2130 = vrot.slane %v2128, 1
      %v2131 = vsel %vm571, %v2126, %v2130
      %v2133 = vshrl.u32 %v2012, 16
      %v2135 = vshll.u32 %v2012, 16
      %v2137 = vrot.slane %v2135, 1
      %v2138 = vor.u32 %v2133, %v2137
      %v2140 = vshll.u32 %v2028, 16
      %v2142 = vrot.slane %v2140, 1
      %v2143 = vsel %vm571, %v2138, %v2142
      %v2145 = vshrl.u32 %v2013, 16
      %v2147 = vshll.u32 %v2013, 16
      %v2149 = vrot.slane %v2147, 1
      %v2150 = vor.u32 %v2145, %v2149
      %v2152 = vshll.u32 %v2029, 16
      %v2154 = vrot.slane %v2152, 1
      %v2155 = vsel %vm571, %v2150, %v2154
      %v2157 = vshrl.u32 %v2014, 16
      %v2159 = vshll.u32 %v2014, 16
      %v2161 = vrot.slane %v2159, 1
      %v2162 = vor.u32 %v2157, %v2161
      %v2164 = vshll.u32 %v2030, 16
      %v2166 = vrot.slane %v2164, 1
      %v2167 = vsel %vm571, %v2162, %v2166
      %v2169 = vshrl.u32 %v2015, 16
      %v2171 = vshll.u32 %v2015, 16
      %v2173 = vrot.slane %v2171, 1
      %v2174 = vor.u32 %v2169, %v2173
      %v2176 = vshll.u32 %v2031, 16
      %v2178 = vrot.slane %v2176, 1
      %v2179 = vsel %vm571, %v2174, %v2178
      %v2181 = vshrl.u32 %v2016, 16
      %v2183 = vshll.u32 %v2016, 16
      %v2185 = vrot.slane %v2183, 1
      %v2186 = vor.u32 %v2181, %v2185
      %v2188 = vshll.u32 %v2032, 16
      %v2190 = vrot.slane %v2188, 1
      %v2191 = vsel %vm571, %v2186, %v2190
      %v2193 = vshrl.u32 %v2017, 16
      %v2195 = vshll.u32 %v2017, 16
      %v2197 = vrot.slane %v2195, 1
      %v2198 = vor.u32 %v2193, %v2197
      %v2200 = vshll.u32 %v2033, 16
      %v2202 = vrot.slane %v2200, 1
      %v2203 = vsel %vm571, %v2198, %v2202
      %v2205 = vshrl.u32 %v2018, 16
      %v2207 = vshll.u32 %v2018, 16
      %v2209 = vrot.slane %v2207, 1
      %v2210 = vor.u32 %v2205, %v2209
      %v2212 = vshll.u32 %v2034, 16
      %v2214 = vrot.slane %v2212, 1
      %v2215 = vsel %vm571, %v2210, %v2214
      %2216 = vrot.lane.b32.xlu0 %v579, 64
      %v2217 = vpop.permute.xlu0 %2216
      %2218 = vrot.lane.b32.xlu0 %v2047, 64
      %v2219 = vpop.permute.xlu0 %2218
      %2220 = vrot.lane.b32.xlu0 %v2059, 64
      %v2221 = vpop.permute.xlu0 %2220
      %2222 = vrot.lane.b32.xlu0 %v2071, 64
      %v2223 = vpop.permute.xlu0 %2222
      %2224 = vrot.lane.b32.xlu0 %v2083, 64
      %v2225 = vpop.permute.xlu0 %2224
      %2226 = vrot.lane.b32.xlu0 %v2095, 64
      %v2227 = vpop.permute.xlu0 %2226
      %2228 = vrot.lane.b32.xlu0 %v2107, 64
      %v2229 = vpop.permute.xlu0 %2228
      %2230 = vrot.lane.b32.xlu0 %v2119, 64
      %v2231 = vpop.permute.xlu0 %2230
      %2232 = vrot.lane.b32.xlu0 %v2131, 64
      %v2233 = vpop.permute.xlu0 %2232
      %2234 = vrot.lane.b32.xlu0 %v2143, 64
      %v2235 = vpop.permute.xlu0 %2234
      %2236 = vrot.lane.b32.xlu0 %v2155, 64
      %v2237 = vpop.permute.xlu0 %2236
      %2238 = vrot.lane.b32.xlu0 %v2167, 64
      %v2239 = vpop.permute.xlu0 %2238
      %2240 = vrot.lane.b32.xlu0 %v2179, 64
      %v2241 = vpop.permute.xlu0 %2240
      %2242 = vrot.lane.b32.xlu0 %v2191, 64
      %v2243 = vpop.permute.xlu0 %2242
      %2244 = vrot.lane.b32.xlu0 %v2203, 64
      %v2245 = vpop.permute.xlu0 %2244
      %2246 = vrot.lane.b32.xlu0 %v2215, 64
      %v2247 = vpop.permute.xlu0 %2246
      %v2278 = vrot.slane %v2004, 1
      %v2279 = vrot.slane %v2020, 1
      %v2280 = vsel %vm823, %v2278, %v2279
      %v2281 = vrot.slane %v2005, 1
      %v2282 = vrot.slane %v2021, 1
      %v2283 = vsel %vm823, %v2281, %v2282
      %v2284 = vrot.slane %v2006, 1
      %v2285 = vrot.slane %v2022, 1
      %v2286 = vsel %vm823, %v2284, %v2285
      %v2287 = vrot.slane %v2007, 1
      %v2288 = vrot.slane %v2023, 1
      %v2289 = vsel %vm823, %v2287, %v2288
      %v2290 = vrot.slane %v2008, 1
      %v2291 = vrot.slane %v2024, 1
      %v2292 = vsel %vm823, %v2290, %v2291
      %v2293 = vrot.slane %v2009, 1
      %v2294 = vrot.slane %v2025, 1
      %v2295 = vsel %vm823, %v2293, %v2294
      %v2296 = vrot.slane %v2010, 1
      %v2297 = vrot.slane %v2026, 1
      %v2298 = vsel %vm823, %v2296, %v2297
      %v2299 = vrot.slane %v2011, 1
      %v2300 = vrot.slane %v2027, 1
      %v2301 = vsel %vm823, %v2299, %v2300
      %v2302 = vrot.slane %v2012, 1
      %v2303 = vrot.slane %v2028, 1
      %v2304 = vsel %vm823, %v2302, %v2303
      %v2305 = vrot.slane %v2013, 1
      %v2306 = vrot.slane %v2029, 1
      %v2307 = vsel %vm823, %v2305, %v2306
      %v2308 = vrot.slane %v2014, 1
      %v2309 = vrot.slane %v2030, 1
      %v2310 = vsel %vm823, %v2308, %v2309
      %v2311 = vrot.slane %v2015, 1
      %v2312 = vrot.slane %v2031, 1
      %v2313 = vsel %vm823, %v2311, %v2312
      %v2314 = vrot.slane %v2016, 1
      %v2315 = vrot.slane %v2032, 1
      %v2316 = vsel %vm823, %v2314, %v2315
      %v2317 = vrot.slane %v2017, 1
      %v2318 = vrot.slane %v2033, 1
      %v2319 = vsel %vm823, %v2317, %v2318
      %v2320 = vrot.slane %v2018, 1
      %v2321 = vrot.slane %v2034, 1
      %v2322 = vsel %vm823, %v2320, %v2321
      %2324 = vrot.lane.b32.xlu0 %v2004, 64
      %v2325 = vpop.permute.xlu0 %2324
      %2326 = vrot.lane.b32.xlu0 %v2005, 64
      %v2327 = vpop.permute.xlu0 %2326
      %2328 = vrot.lane.b32.xlu0 %v2006, 64
      %v2329 = vpop.permute.xlu0 %2328
      %2330 = vrot.lane.b32.xlu0 %v2007, 64
      %v2331 = vpop.permute.xlu0 %2330
      %2332 = vrot.lane.b32.xlu0 %v2008, 64
      %v2333 = vpop.permute.xlu0 %2332
      %2334 = vrot.lane.b32.xlu0 %v2009, 64
      %v2335 = vpop.permute.xlu0 %2334
      %2336 = vrot.lane.b32.xlu0 %v2010, 64
      %v2337 = vpop.permute.xlu0 %2336
      %2338 = vrot.lane.b32.xlu0 %v2011, 64
      %v2339 = vpop.permute.xlu0 %2338
      %2340 = vrot.lane.b32.xlu0 %v2012, 64
      %v2341 = vpop.permute.xlu0 %2340
      %2342 = vrot.lane.b32.xlu0 %v2013, 64
      %v2343 = vpop.permute.xlu0 %2342
      %2344 = vrot.lane.b32.xlu0 %v2014, 64
      %v2345 = vpop.permute.xlu0 %2344
      %2346 = vrot.lane.b32.xlu0 %v2015, 64
      %v2347 = vpop.permute.xlu0 %2346
      %2348 = vrot.lane.b32.xlu0 %v2016, 64
      %v2349 = vpop.permute.xlu0 %2348
      %2350 = vrot.lane.b32.xlu0 %v2017, 64
      %v2351 = vpop.permute.xlu0 %2350
      %2352 = vrot.lane.b32.xlu0 %v2018, 64
      %v2353 = vpop.permute.xlu0 %2352
      %2354 = vrot.lane.b32.xlu0 %v2019, 64
      %v2355 = vpop.permute.xlu0 %2354
      %v2357 = vshrl.u32 %v2019, 16
      %v2359 = vshll.u32 %v2019, 16
      %v2361 = vrot.slane %v2359, 1
      %v2362 = vor.u32 %v2357, %v2361
      %v2364 = vshll.u32 %v2035, 16
      %v2366 = vrot.slane %v2364, 1
      %v2367 = vsel %vm571, %v2362, %v2366
      %v2369 = vrot.slane %v2019, 1
      %v2370 = vrot.slane %v2035, 1
      %v2371 = vsel %vm823, %v2369, %v2370
      %2372 = vrot.lane.b32.xlu0 %v2280, 64
      %v2373 = vpop.permute.xlu0 %2372
      %2374 = vrot.lane.b32.xlu0 %v2283, 64
      %v2375 = vpop.permute.xlu0 %2374
      %2376 = vrot.lane.b32.xlu0 %v2286, 64
      %v2377 = vpop.permute.xlu0 %2376
      %2378 = vrot.lane.b32.xlu0 %v2289, 64
      %v2379 = vpop.permute.xlu0 %2378
      %2380 = vrot.lane.b32.xlu0 %v2292, 64
      %v2381 = vpop.permute.xlu0 %2380
      %2382 = vrot.lane.b32.xlu0 %v2295, 64
      %v2383 = vpop.permute.xlu0 %2382
      %2384 = vrot.lane.b32.xlu0 %v2298, 64
      %v2385 = vpop.permute.xlu0 %2384
      %2386 = vrot.lane.b32.xlu0 %v2301, 64
      %v2387 = vpop.permute.xlu0 %2386
      %2388 = vrot.lane.b32.xlu0 %v2304, 64
      %v2389 = vpop.permute.xlu0 %2388
      %2390 = vrot.lane.b32.xlu0 %v2307, 64
      %v2391 = vpop.permute.xlu0 %2390
      %2392 = vrot.lane.b32.xlu0 %v2310, 64
      %v2393 = vpop.permute.xlu0 %2392
      %2394 = vrot.lane.b32.xlu0 %v2313, 64
      %v2395 = vpop.permute.xlu0 %2394
      %2396 = vrot.lane.b32.xlu0 %v2316, 64
      %v2397 = vpop.permute.xlu0 %2396
      %2398 = vrot.lane.b32.xlu0 %v2319, 64
      %v2399 = vpop.permute.xlu0 %2398
      %2400 = vrot.lane.b32.xlu0 %v2322, 64
      %v2401 = vpop.permute.xlu0 %2400
      %2402 = vrot.lane.b32.xlu0 %v2371, 64
      %v2403 = vpop.permute.xlu0 %2402
      %2404 = vrot.lane.b32.xlu0 %v2367, 64
      %v2405 = vpop.permute.xlu0 %2404
      %v2407 = vsel %vm1081, 0, %v2217
      %v2410 = vsel %vm1081, %v2004, %v2219
      %v2413 = vsel %vm1081, %v2005, %v2221
      %v2416 = vsel %vm1081, %v2006, %v2223
      %v2419 = vsel %vm1081, %v2007, %v2225
      %v2422 = vsel %vm1081, %v2008, %v2227
      %v2425 = vsel %vm1081, %v2009, %v2229
      %v2428 = vsel %vm1081, %v2010, %v2231
      %v2431 = vsel %vm1081, %v2011, %v2233
      %v2434 = vsel %vm1081, %v2012, %v2235
      %v2437 = vsel %vm1081, %v2013, %v2237
      %v2440 = vsel %vm1081, %v2014, %v2239
      %v2443 = vsel %vm1081, %v2015, %v2241
      %v2446 = vsel %vm1081, %v2016, %v2243
      %v2449 = vsel %vm1081, %v2017, %v2245
      %v2452 = vsel %vm1081, %v2018, %v2247
      %v2455 = vsel %vm1081, %v825, %v2325
      %v2459 = vsel %vm1081, %v2280, %v2327
      %v2463 = vsel %vm1081, %v2283, %v2329
      %v2467 = vsel %vm1081, %v2286, %v2331
      %v2471 = vsel %vm1081, %v2289, %v2333
      %v2475 = vsel %vm1081, %v2292, %v2335
      %v2479 = vsel %vm1081, %v2295, %v2337
      %v2483 = vsel %vm1081, %v2298, %v2339
      %v2487 = vsel %vm1081, %v2301, %v2341
      %v2491 = vsel %vm1081, %v2304, %v2343
      %v2495 = vsel %vm1081, %v2307, %v2345
      %v2499 = vsel %vm1081, %v2310, %v2347
      %v2503 = vsel %vm1081, %v2313, %v2349
      %v2507 = vsel %vm1081, %v2316, %v2351
      %v2511 = vsel %vm1081, %v2319, %v2353
      %v2515 = vsel %vm1081, %v2322, %v2355
      %v2519 = vsel %vm1081, %v2047, %v2373
      %v2523 = vsel %vm1081, %v2059, %v2375
      %v2527 = vsel %vm1081, %v2071, %v2377
      %v2531 = vsel %vm1081, %v2083, %v2379
      %v2535 = vsel %vm1081, %v2095, %v2381
      %v2539 = vsel %vm1081, %v2107, %v2383
      %v2543 = vsel %vm1081, %v2119, %v2385
      %v2547 = vsel %vm1081, %v2131, %v2387
      %v2551 = vsel %vm1081, %v2143, %v2389
      %v2555 = vsel %vm1081, %v2155, %v2391
      %v2559 = vsel %vm1081, %v2167, %v2393
      %v2563 = vsel %vm1081, %v2179, %v2395
      %v2567 = vsel %vm1081, %v2191, %v2397
      %v2571 = vsel %vm1081, %v2203, %v2399
      %v2575 = vsel %vm1081, %v2215, %v2401
      %v2579 = vsel %vm1081, %v2367, %v2403
      %v2582 = vsel %vm1081, %v2019, %v2405
      %v2584 = vld [vmem:[%s3] sm:$0xf]
      %v2585 = vld [vmem:[%s3 + $0x4] sm:$0xf]
      %v2586 = vld [vmem:[%s3 + $0x8] sm:$0xf]
      %v2587 = vld [vmem:[%s3 + $0xc] sm:$0xf]
      %v2588 = vld [vmem:[%s3 + $0x10] sm:$0xf]
      %v2589 = vld [vmem:[%s3 + $0x14] sm:$0xf]
      %v2590 = vld [vmem:[%s3 + $0x18] sm:$0xf]
      %v2591 = vld [vmem:[%s3 + $0x1c] sm:$0xf]
      %v2592 = vld [vmem:[%s3 + $0x20] sm:$0xf]
      %v2593 = vld [vmem:[%s3 + $0x24] sm:$0xf]
      %v2594 = vld [vmem:[%s3 + $0x28] sm:$0xf]
      %v2595 = vld [vmem:[%s3 + $0x2c] sm:$0xf]
      %v2596 = vld [vmem:[%s3 + $0x30] sm:$0xf]
      %v2597 = vld [vmem:[%s3 + $0x34] sm:$0xf]
      %v2598 = vld [vmem:[%s3 + $0x38] sm:$0xf]
      %v2599 = vld [vmem:[%s3 + $0x3c] sm:$0xf]
      %v2600 = vld [vmem:[%s3 + $0x40] sm:$0xf]
      %v2601 = vld [vmem:[%s3 + $0x44] sm:$0xf]
      %v2602 = vld [vmem:[%s3 + $0x48] sm:$0xf]
      %v2603 = vld [vmem:[%s3 + $0x4c] sm:$0xf]
      %v2604 = vld [vmem:[%s3 + $0x50] sm:$0xf]
      %v2605 = vld [vmem:[%s3 + $0x54] sm:$0xf]
      %v2606 = vld [vmem:[%s3 + $0x58] sm:$0xf]
      %v2607 = vld [vmem:[%s3 + $0x5c] sm:$0xf]
      %v2608 = vld [vmem:[%s3 + $0x60] sm:$0xf]
      %v2609 = vld [vmem:[%s3 + $0x64] sm:$0xf]
      %v2610 = vld [vmem:[%s3 + $0x68] sm:$0xf]
      %v2611 = vld [vmem:[%s3 + $0x6c] sm:$0xf]
      %v2612 = vld [vmem:[%s3 + $0x70] sm:$0xf]
      %v2613 = vld [vmem:[%s3 + $0x74] sm:$0xf]
      %v2614 = vld [vmem:[%s3 + $0x78] sm:$0xf]
      %v2615 = vld [vmem:[%s3 + $0x7c] sm:$0xf]
      %v2616 = vld [vmem:[%s3 + $0x80] sm:$0xf]
      %v2617 = vld [vmem:[%s3 + $0x84] sm:$0xf]
      %v2618 = vld [vmem:[%s3 + $0x88] sm:$0xf]
      %v2619 = vld [vmem:[%s3 + $0x8c] sm:$0xf]
      %v2620 = vld [vmem:[%s3 + $0x90] sm:$0xf]
      %v2621 = vld [vmem:[%s3 + $0x94] sm:$0xf]
      %v2622 = vld [vmem:[%s3 + $0x98] sm:$0xf]
      %v2623 = vld [vmem:[%s3 + $0x9c] sm:$0xf]
      %v2624 = vld [vmem:[%s3 + $0xa0] sm:$0xf]
      %v2625 = vld [vmem:[%s3 + $0xa4] sm:$0xf]
      %v2626 = vld [vmem:[%s3 + $0xa8] sm:$0xf]
      %v2627 = vld [vmem:[%s3 + $0xac] sm:$0xf]
      %v2628 = vld [vmem:[%s3 + $0xb0] sm:$0xf]
      %v2629 = vld [vmem:[%s3 + $0xb4] sm:$0xf]
      %v2630 = vld [vmem:[%s3 + $0xb8] sm:$0xf]
      %v2631 = vld [vmem:[%s3 + $0xbc] sm:$0xf]
      %v2632 = vld [vmem:[%s3 + $0xc0] sm:$0xf]
      %v2633 = vld [vmem:[%s3 + $0xc4] sm:$0xf]
      %v2634 = vld [vmem:[%s3 + $0xc8] sm:$0xf]
      %v2635 = vld [vmem:[%s3 + $0xcc] sm:$0xf]
      %v2636 = vld [vmem:[%s3 + $0xd0] sm:$0xf]
      %v2637 = vld [vmem:[%s3 + $0xd4] sm:$0xf]
      %v2638 = vld [vmem:[%s3 + $0xd8] sm:$0xf]
      %v2639 = vld [vmem:[%s3 + $0xdc] sm:$0xf]
      %v2640 = vld [vmem:[%s3 + $0xe0] sm:$0xf]
      %v2641 = vld [vmem:[%s3 + $0xe4] sm:$0xf]
      %v2642 = vld [vmem:[%s3 + $0xe8] sm:$0xf]
      %v2643 = vld [vmem:[%s3 + $0xec] sm:$0xf]
      %v2644 = vld [vmem:[%s3 + $0xf0] sm:$0xf]
      %v2645 = vld [vmem:[%s3 + $0xf4] sm:$0xf]
      %v2646 = vld [vmem:[%s3 + $0xf8] sm:$0xf]
      %v2647 = vld [vmem:[%s3 + $0xfc] sm:$0xf]
      %v2648 = vld [vmem:[%s3 + $0x100] sm:$0xf]
      %v2649 = vld [vmem:[%s3 + $0x104] sm:$0xf]
      %v2650 = vld [vmem:[%s3 + $0x108] sm:$0xf]
      %v2651 = vld [vmem:[%s3 + $0x10c] sm:$0xf]
      %v2652 = vld [vmem:[%s3 + $0x110] sm:$0xf]
      %v2653 = vld [vmem:[%s3 + $0x114] sm:$0xf]
      %v2654 = vld [vmem:[%s3 + $0x118] sm:$0xf]
      %v2655 = vld [vmem:[%s3 + $0x11c] sm:$0xf]
      %v2656 = vld [vmem:[%s4] sm:$0x1]
      %v2658 = vlaneseq
      %v2659 = vshrl.u32 %v2658, 7
      %v2660 = vsub.s32 0, %v2659
      %v2661 = vrot.slane %v2656, %v2660
      %v2735 = vunpack.c.l.b16 %v2584
      %v2736 = vunpack.c.l.b16 %v2585
      %v2737 = vunpack.c.l.b16 %v2586
      %v2738 = vunpack.c.l.b16 %v2587
      %v2739 = vunpack.c.l.b16 %v2588
      %v2740 = vunpack.c.l.b16 %v2589
      %v2741 = vunpack.c.l.b16 %v2590
      %v2742 = vunpack.c.l.b16 %v2591
      %v2743 = vunpack.c.l.b16 %v2592
      %v2744 = vunpack.c.l.b16 %v2593
      %v2745 = vunpack.c.l.b16 %v2594
      %v2746 = vunpack.c.l.b16 %v2595
      %v2747 = vunpack.c.l.b16 %v2596
      %v2748 = vunpack.c.l.b16 %v2597
      %v2749 = vunpack.c.l.b16 %v2598
      %v2750 = vunpack.c.l.b16 %v2599
      %v2751 = vunpack.c.l.b16 %v2600
      %v2752 = vunpack.c.l.b16 %v2601
      %v2753 = vunpack.c.l.b16 %v2602
      %v2754 = vunpack.c.l.b16 %v2603
      %v2755 = vunpack.c.l.b16 %v2604
      %v2756 = vunpack.c.l.b16 %v2605
      %v2757 = vunpack.c.l.b16 %v2606
      %v2758 = vunpack.c.l.b16 %v2607
      %v2759 = vunpack.c.l.b16 %v2608
      %v2760 = vunpack.c.l.b16 %v2609
      %v2761 = vunpack.c.l.b16 %v2610
      %v2762 = vunpack.c.l.b16 %v2611
      %v2763 = vunpack.c.l.b16 %v2612
      %v2764 = vunpack.c.l.b16 %v2613
      %v2765 = vunpack.c.l.b16 %v2614
      %v2766 = vunpack.c.l.b16 %v2615
      %v2767 = vunpack.c.l.b16 %v2616
      %v2768 = vunpack.c.l.b16 %v2617
      %v2769 = vunpack.c.l.b16 %v2618
      %v2770 = vunpack.c.l.b16 %v2619
      %v2771 = vunpack.c.l.b16 %v2620
      %v2772 = vunpack.c.l.b16 %v2621
      %v2773 = vunpack.c.l.b16 %v2622
      %v2774 = vunpack.c.l.b16 %v2623
      %v2775 = vunpack.c.l.b16 %v2624
      %v2776 = vunpack.c.l.b16 %v2625
      %v2777 = vunpack.c.l.b16 %v2626
      %v2778 = vunpack.c.l.b16 %v2627
      %v2779 = vunpack.c.l.b16 %v2628
      %v2780 = vunpack.c.l.b16 %v2629
      %v2781 = vunpack.c.l.b16 %v2630
      %v2782 = vunpack.c.l.b16 %v2631
      %v2783 = vunpack.c.l.b16 %v2632
      %v2784 = vunpack.c.l.b16 %v2633
      %v2785 = vunpack.c.l.b16 %v2634
      %v2786 = vunpack.c.l.b16 %v2635
      %v2787 = vunpack.c.l.b16 %v2636
      %v2788 = vunpack.c.l.b16 %v2637
      %v2789 = vunpack.c.l.b16 %v2638
      %v2790 = vunpack.c.l.b16 %v2639
      %v2791 = vunpack.c.l.b16 %v2640
      %v2792 = vunpack.c.l.b16 %v2641
      %v2793 = vunpack.c.l.b16 %v2642
      %v2794 = vunpack.c.l.b16 %v2643
      %v2795 = vunpack.c.l.b16 %v2644
      %v2796 = vunpack.c.l.b16 %v2645
      %v2797 = vunpack.c.l.b16 %v2646
      %v2798 = vunpack.c.l.b16 %v2647
      %v2799 = vunpack.c.l.b16 %v2648
      %v2800 = vunpack.c.l.b16 %v2649
      %v2801 = vunpack.c.l.b16 %v2650
      %v2802 = vunpack.c.l.b16 %v2651
      %v2803 = vunpack.c.l.b16 %v2652
      %v2804 = vunpack.c.l.b16 %v2653
      %v2805 = vunpack.c.l.b16 %v2654
      %v2806 = vunpack.c.l.b16 %v2655
      %v2807 = vpack.c.b16 %v2736, %v2735
      %v2808 = vpack.c.b16 %v2738, %v2737
      %v2809 = vpack.c.b16 %v2740, %v2739
      %v2810 = vpack.c.b16 %v2742, %v2741
      %v2811 = vpack.c.b16 %v2744, %v2743
      %v2812 = vpack.c.b16 %v2746, %v2745
      %v2813 = vpack.c.b16 %v2748, %v2747
      %v2814 = vpack.c.b16 %v2750, %v2749
      %v2815 = vpack.c.b16 %v2752, %v2751
      %v2816 = vpack.c.b16 %v2754, %v2753
      %v2817 = vpack.c.b16 %v2756, %v2755
      %v2818 = vpack.c.b16 %v2758, %v2757
      %v2819 = vpack.c.b16 %v2760, %v2759
      %v2820 = vpack.c.b16 %v2762, %v2761
      %v2821 = vpack.c.b16 %v2764, %v2763
      %v2822 = vpack.c.b16 %v2766, %v2765
      %v2823 = vpack.c.b16 %v2768, %v2767
      %v2824 = vpack.c.b16 %v2770, %v2769
      %v2825 = vpack.c.b16 %v2772, %v2771
      %v2826 = vpack.c.b16 %v2774, %v2773
      %v2827 = vpack.c.b16 %v2776, %v2775
      %v2828 = vpack.c.b16 %v2778, %v2777
      %v2829 = vpack.c.b16 %v2780, %v2779
      %v2830 = vpack.c.b16 %v2782, %v2781
      %v2831 = vpack.c.b16 %v2784, %v2783
      %v2832 = vpack.c.b16 %v2786, %v2785
      %v2833 = vpack.c.b16 %v2788, %v2787
      %v2834 = vpack.c.b16 %v2790, %v2789
      %v2835 = vpack.c.b16 %v2792, %v2791
      %v2836 = vpack.c.b16 %v2794, %v2793
      %v2837 = vpack.c.b16 %v2796, %v2795
      %v2838 = vpack.c.b16 %v2798, %v2797
      %v2839 = vpack.c.b16 %v2800, %v2799
      %v2840 = vpack.c.b16 %v2802, %v2801
      %v2841 = vpack.c.b16 %v2804, %v2803
      %v2842 = vpack.c.b16 %v2806, %v2805
      %v2879 = vsel %vm1081, %v2283, 0
      %v2881 = vsel %vm1081, %v2286, 0
      %v2883 = vsel %vm1081, %v2289, 0
      %v2885 = vsel %vm1081, %v2292, 0
      %v2887 = vsel %vm1081, %v2295, 0
      %v2889 = vsel %vm1081, %v2298, 0
      %v2891 = vsel %vm1081, %v2301, 0
      %v2893 = vsel %vm1081, %v2304, 0
      %v2895 = vsel %vm1081, %v2307, 0
      %v2897 = vsel %vm1081, %v2310, 0
      %v2899 = vsel %vm1081, %v2313, 0
      %v2901 = vsel %vm1081, %v2316, 0
      %v2903 = vsel %vm1081, %v2319, 0
      %v2905 = vsel %vm1081, %v2322, 0
      %v2908 = vsel %vm1081, %v2371, 0
      %v2910 = vsel %vm1081, %v825, 0
      %2912 = vmatprep.subr.bf16.mxu0 0
      %2913 = vmatpush1.bf16.msra.mxu0 %v2814
      %2914 = vmatprep.subr.bf16.mxu0 0
      %2915 = vmatpush1.bf16.msra.mxu0 %v2813
      %2916 = vmatprep.subr.bf16.mxu0 0
      %2917 = vmatpush1.bf16.msra.mxu0 %v2812
      %2918 = vmatprep.subr.bf16.mxu0 0
      %2919 = vmatpush1.bf16.msra.mxu0 %v2811
      %2920 = vmatprep.subr.bf16.mxu0 0
      %2921 = vmatpush1.bf16.msra.mxu0 %v2810
      %2922 = vmatprep.subr.bf16.mxu0 0
      %2923 = vmatpush1.bf16.msra.mxu0 %v2809
      %2924 = vmatprep.subr.bf16.mxu0 0
      %2925 = vmatpush1.bf16.msra.mxu0 %v2808
      %2926 = vmatprep.subr.bf16.mxu0 0
      %2927 = vmatpush1.bf16.msra.mxu0 %v2807
      %2928 = vmatprep.subr.bf16.mxu0 0
      %2929 = vmatpush2.bf16.msra.mxu0 %v2822
      %2930 = vmatprep.subr.bf16.mxu0 0
      %2931 = vmatpush2.bf16.msra.mxu0 %v2821
      %2932 = vmatprep.subr.bf16.mxu0 0
      %2933 = vmatpush2.bf16.msra.mxu0 %v2820
      %2934 = vmatprep.subr.bf16.mxu0 0
      %2935 = vmatpush2.bf16.msra.mxu0 %v2819
      %2936 = vmatprep.subr.bf16.mxu0 0
      %2937 = vmatpush2.bf16.msra.mxu0 %v2818
      %2938 = vmatprep.subr.bf16.mxu0 0
      %2939 = vmatpush2.bf16.msra.mxu0 %v2817
      %2940 = vmatprep.subr.bf16.mxu0 0
      %2941 = vmatpush2.bf16.msra.mxu0 %v2816
      %2942 = vmatprep.subr.bf16.mxu0 0
      %2943 = vmatpush2.bf16.msra.mxu0 %v2815
      %2944 = vmatprep.mubr.bf16.mxu0 %v2455
      %2945 = vmatmul.mubr.bf16.gmra.mxu0 %v2407
      %v2946 = vpop.f32.mrf.mxu0
      %v2947 = vadd.f32 %v2661, %v2946
      %v2948 = vpop.f32.mrf.mxu0
      %v2949 = vpop.f32.mrf.mxu0
      %v2950 = vadd.f32 %v2661, %v2949
      %v2951 = vpop.f32.mrf.mxu0
      %2952 = vmatprep.mubr.bf16.mxu0 %v2459
      %2953 = vmatmul.mubr.bf16.gmra.mxu0 %v2410
      %v2954 = vpop.f32.mrf.mxu0
      %v2955 = vadd.f32 %v2661, %v2954
      %v2956 = vpop.f32.mrf.mxu0
      %v2957 = vpop.f32.mrf.mxu0
      %v2958 = vadd.f32 %v2661, %v2957
      %v2959 = vpop.f32.mrf.mxu0
      %2960 = vmatprep.mubr.bf16.mxu0 %v2463
      %2961 = vmatmul.mubr.bf16.gmra.mxu0 %v2413
      %v2962 = vpop.f32.mrf.mxu0
      %v2963 = vadd.f32 %v2661, %v2962
      %v2964 = vpop.f32.mrf.mxu0
      %v2965 = vpop.f32.mrf.mxu0
      %v2966 = vadd.f32 %v2661, %v2965
      %v2967 = vpop.f32.mrf.mxu0
      %2968 = vmatprep.mubr.bf16.mxu0 %v2467
      %2969 = vmatmul.mubr.bf16.gmra.mxu0 %v2416
      %v2970 = vpop.f32.mrf.mxu0
      %v2971 = vadd.f32 %v2661, %v2970
      %v2972 = vpop.f32.mrf.mxu0
      %v2973 = vpop.f32.mrf.mxu0
      %v2974 = vadd.f32 %v2661, %v2973
      %v2975 = vpop.f32.mrf.mxu0
      %2976 = vmatprep.mubr.bf16.mxu0 %v2471
      %2977 = vmatmul.mubr.bf16.gmra.mxu0 %v2419
      %v2978 = vpop.f32.mrf.mxu0
      %v2979 = vadd.f32 %v2661, %v2978
      %v2980 = vpop.f32.mrf.mxu0
      %v2981 = vpop.f32.mrf.mxu0
      %v2982 = vadd.f32 %v2661, %v2981
      %v2983 = vpop.f32.mrf.mxu0
      %2984 = vmatprep.mubr.bf16.mxu0 %v2475
      %2985 = vmatmul.mubr.bf16.gmra.mxu0 %v2422
      %v2986 = vpop.f32.mrf.mxu0
      %v2987 = vadd.f32 %v2661, %v2986
      %v2988 = vpop.f32.mrf.mxu0
      %v2989 = vpop.f32.mrf.mxu0
      %v2990 = vadd.f32 %v2661, %v2989
      %v2991 = vpop.f32.mrf.mxu0
      %2992 = vmatprep.mubr.bf16.mxu0 %v2479
      %2993 = vmatmul.mubr.bf16.gmra.mxu0 %v2425
      %v2994 = vpop.f32.mrf.mxu0
      %v2995 = vadd.f32 %v2661, %v2994
      %v2996 = vpop.f32.mrf.mxu0
      %v2997 = vpop.f32.mrf.mxu0
      %v2998 = vadd.f32 %v2661, %v2997
      %v2999 = vpop.f32.mrf.mxu0
      %3000 = vmatprep.mubr.bf16.mxu0 %v2483
      %3001 = vmatmul.mubr.bf16.gmra.mxu0 %v2428
      %v3002 = vpop.f32.mrf.mxu0
      %v3003 = vadd.f32 %v2661, %v3002
      %v3004 = vpop.f32.mrf.mxu0
      %v3005 = vpop.f32.mrf.mxu0
      %v3006 = vadd.f32 %v2661, %v3005
      %v3007 = vpop.f32.mrf.mxu0
      %3008 = vmatprep.mubr.bf16.mxu0 %v2487
      %3009 = vmatmul.mubr.bf16.gmra.mxu0 %v2431
      %v3010 = vpop.f32.mrf.mxu0
      %v3011 = vadd.f32 %v2661, %v3010
      %v3012 = vpop.f32.mrf.mxu0
      %v3013 = vpop.f32.mrf.mxu0
      %v3014 = vadd.f32 %v2661, %v3013
      %v3015 = vpop.f32.mrf.mxu0
      %3016 = vmatprep.mubr.bf16.mxu0 %v2491
      %3017 = vmatmul.mubr.bf16.gmra.mxu0 %v2434
      %v3018 = vpop.f32.mrf.mxu0
      %v3019 = vadd.f32 %v2661, %v3018
      %v3020 = vpop.f32.mrf.mxu0
      %v3021 = vpop.f32.mrf.mxu0
      %v3022 = vadd.f32 %v2661, %v3021
      %v3023 = vpop.f32.mrf.mxu0
      %3024 = vmatprep.mubr.bf16.mxu0 %v2495
      %3025 = vmatmul.mubr.bf16.gmra.mxu0 %v2437
      %v3026 = vpop.f32.mrf.mxu0
      %v3027 = vadd.f32 %v2661, %v3026
      %v3028 = vpop.f32.mrf.mxu0
      %v3029 = vpop.f32.mrf.mxu0
      %v3030 = vadd.f32 %v2661, %v3029
      %v3031 = vpop.f32.mrf.mxu0
      %3032 = vmatprep.mubr.bf16.mxu0 %v2499
      %3033 = vmatmul.mubr.bf16.gmra.mxu0 %v2440
      %v3034 = vpop.f32.mrf.mxu0
      %v3035 = vadd.f32 %v2661, %v3034
      %v3036 = vpop.f32.mrf.mxu0
      %v3037 = vpop.f32.mrf.mxu0
      %v3038 = vadd.f32 %v2661, %v3037
      %v3039 = vpop.f32.mrf.mxu0
      %3040 = vmatprep.mubr.bf16.mxu0 %v2503
      %3041 = vmatmul.mubr.bf16.gmra.mxu0 %v2443
      %v3042 = vpop.f32.mrf.mxu0
      %v3043 = vadd.f32 %v2661, %v3042
      %v3044 = vpop.f32.mrf.mxu0
      %v3045 = vpop.f32.mrf.mxu0
      %v3046 = vadd.f32 %v2661, %v3045
      %v3047 = vpop.f32.mrf.mxu0
      %3048 = vmatprep.mubr.bf16.mxu0 %v2507
      %3049 = vmatmul.mubr.bf16.gmra.mxu0 %v2446
      %v3050 = vpop.f32.mrf.mxu0
      %v3051 = vadd.f32 %v2661, %v3050
      %v3052 = vpop.f32.mrf.mxu0
      %v3053 = vpop.f32.mrf.mxu0
      %v3054 = vadd.f32 %v2661, %v3053
      %v3055 = vpop.f32.mrf.mxu0
      %3056 = vmatprep.mubr.bf16.mxu0 %v2511
      %3057 = vmatmul.mubr.bf16.gmra.mxu0 %v2449
      %v3058 = vpop.f32.mrf.mxu0
      %v3059 = vadd.f32 %v2661, %v3058
      %v3060 = vpop.f32.mrf.mxu0
      %v3061 = vpop.f32.mrf.mxu0
      %v3062 = vadd.f32 %v2661, %v3061
      %v3063 = vpop.f32.mrf.mxu0
      %3064 = vmatprep.mubr.bf16.mxu0 %v2515
      %3065 = vmatmul.mubr.bf16.gmra.mxu0 %v2452
      %v3066 = vpop.f32.mrf.mxu0
      %v3067 = vadd.f32 %v2661, %v3066
      %v3068 = vpop.f32.mrf.mxu0
      %v3069 = vpop.f32.mrf.mxu0
      %v3070 = vadd.f32 %v2661, %v3069
      %v3071 = vpop.f32.mrf.mxu0
      %3072 = vdwg.mxu0
      %3073 = vmatprep.subr.bf16.mxu0 0
      %3074 = vmatpush1.bf16.msra.mxu0 %v2830
      %3075 = vmatprep.subr.bf16.mxu0 0
      %3076 = vmatpush1.bf16.msra.mxu0 %v2829
      %3077 = vmatprep.subr.bf16.mxu0 0
      %3078 = vmatpush1.bf16.msra.mxu0 %v2828
      %3079 = vmatprep.subr.bf16.mxu0 0
      %3080 = vmatpush1.bf16.msra.mxu0 %v2827
      %3081 = vmatprep.subr.bf16.mxu0 0
      %3082 = vmatpush1.bf16.msra.mxu0 %v2826
      %3083 = vmatprep.subr.bf16.mxu0 0
      %3084 = vmatpush1.bf16.msra.mxu0 %v2825
      %3085 = vmatprep.subr.bf16.mxu0 0
      %3086 = vmatpush1.bf16.msra.mxu0 %v2824
      %3087 = vmatprep.subr.bf16.mxu0 0
      %3088 = vmatpush1.bf16.msra.mxu0 %v2823
      %3089 = vmatprep.subr.bf16.mxu0 0
      %3090 = vmatpush2.bf16.msra.mxu0 %v2838
      %3091 = vmatprep.subr.bf16.mxu0 0
      %3092 = vmatpush2.bf16.msra.mxu0 %v2837
      %3093 = vmatprep.subr.bf16.mxu0 0
      %3094 = vmatpush2.bf16.msra.mxu0 %v2836
      %3095 = vmatprep.subr.bf16.mxu0 0
      %3096 = vmatpush2.bf16.msra.mxu0 %v2835
      %3097 = vmatprep.subr.bf16.mxu0 0
      %3098 = vmatpush2.bf16.msra.mxu0 %v2834
      %3099 = vmatprep.subr.bf16.mxu0 0
      %3100 = vmatpush2.bf16.msra.mxu0 %v2833
      %3101 = vmatprep.subr.bf16.mxu0 0
      %3102 = vmatpush2.bf16.msra.mxu0 %v2832
      %3103 = vmatprep.subr.bf16.mxu0 0
      %3104 = vmatpush2.bf16.msra.mxu0 %v2831
      %3105 = vmatprep.mubr.bf16.mxu0 %v2413
      %3106 = vmatmul.mubr.bf16.gmra.mxu0 %v2519
      %v3107 = vpop.f32.mrf.mxu0
      %v3108 = vadd.f32 %v2947, %v3107
      %v3109 = vpop.f32.mrf.mxu0
      %v3110 = vpop.f32.mrf.mxu0
      %v3111 = vadd.f32 %v2950, %v3110
      %v3112 = vpop.f32.mrf.mxu0
      %3113 = vmatprep.mubr.bf16.mxu0 %v2416
      %3114 = vmatmul.mubr.bf16.gmra.mxu0 %v2523
      %v3115 = vpop.f32.mrf.mxu0
      %v3116 = vadd.f32 %v2955, %v3115
      %v3117 = vpop.f32.mrf.mxu0
      %v3118 = vpop.f32.mrf.mxu0
      %v3119 = vadd.f32 %v2958, %v3118
      %v3120 = vpop.f32.mrf.mxu0
      %3121 = vmatprep.mubr.bf16.mxu0 %v2419
      %3122 = vmatmul.mubr.bf16.gmra.mxu0 %v2527
      %v3123 = vpop.f32.mrf.mxu0
      %v3124 = vadd.f32 %v2963, %v3123
      %v3125 = vpop.f32.mrf.mxu0
      %v3126 = vpop.f32.mrf.mxu0
      %v3127 = vadd.f32 %v2966, %v3126
      %v3128 = vpop.f32.mrf.mxu0
      %3129 = vmatprep.mubr.bf16.mxu0 %v2422
      %3130 = vmatmul.mubr.bf16.gmra.mxu0 %v2531
      %v3131 = vpop.f32.mrf.mxu0
      %v3132 = vadd.f32 %v2971, %v3131
      %v3133 = vpop.f32.mrf.mxu0
      %v3134 = vpop.f32.mrf.mxu0
      %v3135 = vadd.f32 %v2974, %v3134
      %v3136 = vpop.f32.mrf.mxu0
      %3137 = vmatprep.mubr.bf16.mxu0 %v2425
      %3138 = vmatmul.mubr.bf16.gmra.mxu0 %v2535
      %v3139 = vpop.f32.mrf.mxu0
      %v3140 = vadd.f32 %v2979, %v3139
      %v3141 = vpop.f32.mrf.mxu0
      %v3142 = vpop.f32.mrf.mxu0
      %v3143 = vadd.f32 %v2982, %v3142
      %v3144 = vpop.f32.mrf.mxu0
      %3145 = vmatprep.mubr.bf16.mxu0 %v2428
      %3146 = vmatmul.mubr.bf16.gmra.mxu0 %v2539
      %v3147 = vpop.f32.mrf.mxu0
      %v3148 = vadd.f32 %v2987, %v3147
      %v3149 = vpop.f32.mrf.mxu0
      %v3150 = vpop.f32.mrf.mxu0
      %v3151 = vadd.f32 %v2990, %v3150
      %v3152 = vpop.f32.mrf.mxu0
      %3153 = vmatprep.mubr.bf16.mxu0 %v2431
      %3154 = vmatmul.mubr.bf16.gmra.mxu0 %v2543
      %v3155 = vpop.f32.mrf.mxu0
      %v3156 = vadd.f32 %v2995, %v3155
      %v3157 = vpop.f32.mrf.mxu0
      %v3158 = vpop.f32.mrf.mxu0
      %v3159 = vadd.f32 %v2998, %v3158
      %v3160 = vpop.f32.mrf.mxu0
      %3161 = vmatprep.mubr.bf16.mxu0 %v2434
      %3162 = vmatmul.mubr.bf16.gmra.mxu0 %v2547
      %v3163 = vpop.f32.mrf.mxu0
      %v3164 = vadd.f32 %v3003, %v3163
      %v3165 = vpop.f32.mrf.mxu0
      %v3166 = vpop.f32.mrf.mxu0
      %v3167 = vadd.f32 %v3006, %v3166
      %v3168 = vpop.f32.mrf.mxu0
      %3169 = vmatprep.mubr.bf16.mxu0 %v2437
      %3170 = vmatmul.mubr.bf16.gmra.mxu0 %v2551
      %v3171 = vpop.f32.mrf.mxu0
      %v3172 = vadd.f32 %v3011, %v3171
      %v3173 = vpop.f32.mrf.mxu0
      %v3174 = vpop.f32.mrf.mxu0
      %v3175 = vadd.f32 %v3014, %v3174
      %v3176 = vpop.f32.mrf.mxu0
      %3177 = vmatprep.mubr.bf16.mxu0 %v2440
      %3178 = vmatmul.mubr.bf16.gmra.mxu0 %v2555
      %v3179 = vpop.f32.mrf.mxu0
      %v3180 = vadd.f32 %v3019, %v3179
      %v3181 = vpop.f32.mrf.mxu0
      %v3182 = vpop.f32.mrf.mxu0
      %v3183 = vadd.f32 %v3022, %v3182
      %v3184 = vpop.f32.mrf.mxu0
      %3185 = vmatprep.mubr.bf16.mxu0 %v2443
      %3186 = vmatmul.mubr.bf16.gmra.mxu0 %v2559
      %v3187 = vpop.f32.mrf.mxu0
      %v3188 = vadd.f32 %v3027, %v3187
      %v3189 = vpop.f32.mrf.mxu0
      %v3190 = vpop.f32.mrf.mxu0
      %v3191 = vadd.f32 %v3030, %v3190
      %v3192 = vpop.f32.mrf.mxu0
      %3193 = vmatprep.mubr.bf16.mxu0 %v2446
      %3194 = vmatmul.mubr.bf16.gmra.mxu0 %v2563
      %v3195 = vpop.f32.mrf.mxu0
      %v3196 = vadd.f32 %v3035, %v3195
      %v3197 = vpop.f32.mrf.mxu0
      %v3198 = vpop.f32.mrf.mxu0
      %v3199 = vadd.f32 %v3038, %v3198
      %v3200 = vpop.f32.mrf.mxu0
      %3201 = vmatprep.mubr.bf16.mxu0 %v2449
      %3202 = vmatmul.mubr.bf16.gmra.mxu0 %v2567
      %v3203 = vpop.f32.mrf.mxu0
      %v3204 = vadd.f32 %v3043, %v3203
      %v3205 = vpop.f32.mrf.mxu0
      %v3206 = vpop.f32.mrf.mxu0
      %v3207 = vadd.f32 %v3046, %v3206
      %v3208 = vpop.f32.mrf.mxu0
      %3209 = vmatprep.mubr.bf16.mxu0 %v2452
      %3210 = vmatmul.mubr.bf16.gmra.mxu0 %v2571
      %v3211 = vpop.f32.mrf.mxu0
      %v3212 = vadd.f32 %v3051, %v3211
      %v3213 = vpop.f32.mrf.mxu0
      %v3214 = vpop.f32.mrf.mxu0
      %v3215 = vadd.f32 %v3054, %v3214
      %v3216 = vpop.f32.mrf.mxu0
      %3217 = vmatprep.mubr.bf16.mxu0 %v2582
      %3218 = vmatmul.mubr.bf16.gmra.mxu0 %v2575
      %v3219 = vpop.f32.mrf.mxu0
      %v3220 = vadd.f32 %v3059, %v3219
      %v3221 = vpop.f32.mrf.mxu0
      %v3222 = vpop.f32.mrf.mxu0
      %v3223 = vadd.f32 %v3062, %v3222
      %v3224 = vpop.f32.mrf.mxu0
      %3225 = vmatprep.mubr.bf16.mxu0 %v2407
      %3226 = vmatmul.mubr.bf16.gmra.mxu0 %v2579
      %v3227 = vpop.f32.mrf.mxu0
      %v3228 = vadd.f32 %v3067, %v3227
      %v3229 = vpop.f32.mrf.mxu0
      %v3230 = vpop.f32.mrf.mxu0
      %v3231 = vadd.f32 %v3070, %v3230
      %v3232 = vpop.f32.mrf.mxu0
      %3233 = vdwg.mxu0
      %3234 = vmatprep.subr.bf16.mxu0 0
      %3235 = vmatpush1.bf16.msra.mxu0 0
      %3236 = vmatprep.subr.bf16.mxu0 0
      %3237 = vmatpush1.bf16.msra.mxu0 0
      %3238 = vmatprep.subr.bf16.mxu0 0
      %3239 = vmatpush1.bf16.msra.mxu0 0
      %3240 = vmatprep.subr.bf16.mxu0 0
      %3241 = vmatpush1.bf16.msra.mxu0 0
      %3242 = vmatprep.subr.bf16.mxu0 0
      %3243 = vmatpush1.bf16.msra.mxu0 %v2842
      %3244 = vmatprep.subr.bf16.mxu0 0
      %3245 = vmatpush1.bf16.msra.mxu0 %v2841
      %3246 = vmatprep.subr.bf16.mxu0 0
      %3247 = vmatpush1.bf16.msra.mxu0 %v2840
      %3248 = vmatprep.subr.bf16.mxu0 0
      %3249 = vmatpush1.bf16.msra.mxu0 %v2839
      %3250 = vmatprep.subr.bf16.mxu0 0
      %3251 = vmatpush2.bf16.msra.mxu0 0
      %3252 = vmatprep.subr.bf16.mxu0 0
      %3253 = vmatpush2.bf16.msra.mxu0 0
      %3254 = vmatprep.subr.bf16.mxu0 0
      %3255 = vmatpush2.bf16.msra.mxu0 0
      %3256 = vmatprep.subr.bf16.mxu0 0
      %3257 = vmatpush2.bf16.msra.mxu0 0
      %3258 = vmatprep.subr.bf16.mxu0 0
      %3259 = vmatpush2.bf16.msra.mxu0 0
      %3260 = vmatprep.subr.bf16.mxu0 0
      %3261 = vmatpush2.bf16.msra.mxu0 0
      %3262 = vmatprep.subr.bf16.mxu0 0
      %3263 = vmatpush2.bf16.msra.mxu0 0
      %3264 = vmatprep.subr.bf16.mxu0 0
      %3265 = vmatpush2.bf16.msra.mxu0 0
      %3266 = vmatprep.mubr.bf16.mxu0 0
      %3267 = vmatmul.mubr.bf16.gmra.mxu0 %v2879
      %v3268 = vpop.f32.mrf.mxu0
      %v3269 = vadd.f32 %v3108, %v3268
      %v3270 = vpop.f32.mrf.mxu0
      %v3271 = vpop.f32.mrf.mxu0
      %v3272 = vadd.f32 %v3111, %v3271
      %v3273 = vpop.f32.mrf.mxu0
      %3274 = vmatprep.mubr.bf16.mxu0 0
      %3275 = vmatmul.mubr.bf16.gmra.mxu0 %v2881
      %v3276 = vpop.f32.mrf.mxu0
      %v3277 = vadd.f32 %v3116, %v3276
      %v3278 = vpop.f32.mrf.mxu0
      %v3279 = vpop.f32.mrf.mxu0
      %v3280 = vadd.f32 %v3119, %v3279
      %v3281 = vpop.f32.mrf.mxu0
      %3282 = vmatprep.mubr.bf16.mxu0 0
      %3283 = vmatmul.mubr.bf16.gmra.mxu0 %v2883
      %v3284 = vpop.f32.mrf.mxu0
      %v3285 = vadd.f32 %v3124, %v3284
      %v3286 = vpop.f32.mrf.mxu0
      %v3287 = vpop.f32.mrf.mxu0
      %v3288 = vadd.f32 %v3127, %v3287
      %v3289 = vpop.f32.mrf.mxu0
      %3290 = vmatprep.mubr.bf16.mxu0 0
      %3291 = vmatmul.mubr.bf16.gmra.mxu0 %v2885
      %v3292 = vpop.f32.mrf.mxu0
      %v3293 = vadd.f32 %v3132, %v3292
      %v3294 = vpop.f32.mrf.mxu0
      %v3295 = vpop.f32.mrf.mxu0
      %v3296 = vadd.f32 %v3135, %v3295
      %v3297 = vpop.f32.mrf.mxu0
      %3298 = vmatprep.mubr.bf16.mxu0 0
      %3299 = vmatmul.mubr.bf16.gmra.mxu0 %v2887
      %v3300 = vpop.f32.mrf.mxu0
      %v3301 = vadd.f32 %v3140, %v3300
      %v3302 = vpop.f32.mrf.mxu0
      %v3303 = vpop.f32.mrf.mxu0
      %v3304 = vadd.f32 %v3143, %v3303
      %v3305 = vpop.f32.mrf.mxu0
      %3306 = vmatprep.mubr.bf16.mxu0 0
      %3307 = vmatmul.mubr.bf16.gmra.mxu0 %v2889
      %v3308 = vpop.f32.mrf.mxu0
      %v3309 = vadd.f32 %v3148, %v3308
      %v3310 = vpop.f32.mrf.mxu0
      %v3311 = vpop.f32.mrf.mxu0
      %v3312 = vadd.f32 %v3151, %v3311
      %v3313 = vpop.f32.mrf.mxu0
      %3314 = vmatprep.mubr.bf16.mxu0 0
      %3315 = vmatmul.mubr.bf16.gmra.mxu0 %v2891
      %v3316 = vpop.f32.mrf.mxu0
      %v3317 = vadd.f32 %v3156, %v3316
      %v3318 = vpop.f32.mrf.mxu0
      %v3319 = vpop.f32.mrf.mxu0
      %v3320 = vadd.f32 %v3159, %v3319
      %v3321 = vpop.f32.mrf.mxu0
      %3322 = vmatprep.mubr.bf16.mxu0 0
      %3323 = vmatmul.mubr.bf16.gmra.mxu0 %v2893
      %v3324 = vpop.f32.mrf.mxu0
      %v3325 = vadd.f32 %v3164, %v3324
      %v3326 = vpop.f32.mrf.mxu0
      %v3327 = vpop.f32.mrf.mxu0
      %v3328 = vadd.f32 %v3167, %v3327
      %v3329 = vpop.f32.mrf.mxu0
      %3330 = vmatprep.mubr.bf16.mxu0 0
      %3331 = vmatmul.mubr.bf16.gmra.mxu0 %v2895
      %v3332 = vpop.f32.mrf.mxu0
      %v3333 = vadd.f32 %v3172, %v3332
      %v3334 = vpop.f32.mrf.mxu0
      %v3335 = vpop.f32.mrf.mxu0
      %v3336 = vadd.f32 %v3175, %v3335
      %v3337 = vpop.f32.mrf.mxu0
      %3338 = vmatprep.mubr.bf16.mxu0 0
      %3339 = vmatmul.mubr.bf16.gmra.mxu0 %v2897
      %v3340 = vpop.f32.mrf.mxu0
      %v3341 = vadd.f32 %v3180, %v3340
      %v3342 = vpop.f32.mrf.mxu0
      %v3343 = vpop.f32.mrf.mxu0
      %v3344 = vadd.f32 %v3183, %v3343
      %v3345 = vpop.f32.mrf.mxu0
      %3346 = vmatprep.mubr.bf16.mxu0 0
      %3347 = vmatmul.mubr.bf16.gmra.mxu0 %v2899
      %v3348 = vpop.f32.mrf.mxu0
      %v3349 = vadd.f32 %v3188, %v3348
      %v3350 = vpop.f32.mrf.mxu0
      %v3351 = vpop.f32.mrf.mxu0
      %v3352 = vadd.f32 %v3191, %v3351
      %v3353 = vpop.f32.mrf.mxu0
      %3354 = vmatprep.mubr.bf16.mxu0 0
      %3355 = vmatmul.mubr.bf16.gmra.mxu0 %v2901
      %v3356 = vpop.f32.mrf.mxu0
      %v3357 = vadd.f32 %v3196, %v3356
      %v3358 = vpop.f32.mrf.mxu0
      %v3359 = vpop.f32.mrf.mxu0
      %v3360 = vadd.f32 %v3199, %v3359
      %v3361 = vpop.f32.mrf.mxu0
      %3362 = vmatprep.mubr.bf16.mxu0 0
      %3363 = vmatmul.mubr.bf16.gmra.mxu0 %v2903
      %v3364 = vpop.f32.mrf.mxu0
      %v3365 = vadd.f32 %v3204, %v3364
      %v3366 = vpop.f32.mrf.mxu0
      %v3367 = vpop.f32.mrf.mxu0
      %v3368 = vadd.f32 %v3207, %v3367
      %v3369 = vpop.f32.mrf.mxu0
      %3370 = vmatprep.mubr.bf16.mxu0 0
      %3371 = vmatmul.mubr.bf16.gmra.mxu0 %v2905
      %v3372 = vpop.f32.mrf.mxu0
      %v3373 = vadd.f32 %v3212, %v3372
      %v3374 = vpop.f32.mrf.mxu0
      %v3375 = vpop.f32.mrf.mxu0
      %v3376 = vadd.f32 %v3215, %v3375
      %v3377 = vpop.f32.mrf.mxu0
      %3378 = vmatprep.mubr.bf16.mxu0 0
      %3379 = vmatmul.mubr.bf16.gmra.mxu0 %v2908
      %v3380 = vpop.f32.mrf.mxu0
      %v3381 = vadd.f32 %v3220, %v3380
      %v3382 = vpop.f32.mrf.mxu0
      %v3383 = vpop.f32.mrf.mxu0
      %v3384 = vadd.f32 %v3223, %v3383
      %v3385 = vpop.f32.mrf.mxu0
      %3386 = vmatprep.mubr.bf16.mxu0 0
      %3387 = vmatmul.mubr.bf16.gmra.mxu0 %v2910
      %v3388 = vpop.f32.mrf.mxu0
      %v3389 = vadd.f32 %v3228, %v3388
      %v3390 = vpop.f32.mrf.mxu0
      %v3391 = vpop.f32.mrf.mxu0
      %v3392 = vadd.f32 %v3231, %v3391
      %v3393 = vpop.f32.mrf.mxu0
      %3394 = vdwg.mxu0
      %v3395 = vld [vmem:[%s5] sm:$0xf]
      %v3396 = vld [vmem:[%s5 + $0x4] sm:$0xf]
      %v3397 = vld [vmem:[%s5 + $0x8] sm:$0xf]
      %v3398 = vld [vmem:[%s5 + $0xc] sm:$0xf]
      %v3399 = vld [vmem:[%s6] sm:$0x1]
      %v3401 = vlaneseq
      %v3402 = vshrl.u32 %v3401, 7
      %v3403 = vsub.s32 0, %v3402
      %v3404 = vrot.slane %v3399, %v3403
      %v3410 = vunpack.c.l.b16 %v3395
      %v3411 = vunpack.c.l.b16 %v3396
      %v3412 = vunpack.c.l.b16 %v3397
      %v3413 = vunpack.c.l.b16 %v3398
      %v3414 = vpack.c.b16 %v3411, %v3410
      %v3415 = vpack.c.b16 %v3413, %v3412
      %v3418 = vsel %vm1048, %v376, 0
      %v3420 = vsel %vm1048, %v377, 0
      %v3422 = vsel %vm1048, %v378, 0
      %v3424 = vsel %vm1048, %v379, 0
      %v3426 = vsel %vm1048, %v380, 0
      %v3428 = vsel %vm1048, %v381, 0
      %v3430 = vsel %vm1048, %v382, 0
      %v3432 = vsel %vm1048, %v383, 0
      %v3434 = vsel %vm1048, %v384, 0
      %v3436 = vsel %vm1048, %v385, 0
      %v3438 = vsel %vm1048, %v386, 0
      %v3440 = vsel %vm1048, %v387, 0
      %v3442 = vsel %vm1048, %v388, 0
      %v3444 = vsel %vm1048, %v389, 0
      %v3446 = vsel %vm1048, %v390, 0
      %v3448 = vsel %vm1048, %v391, 0
      %3450 = vmatprep.subr.bf16.mxu0 0
      %3451 = vmatpush1.bf16.msra.mxu0 0
      %3452 = vmatprep.subr.bf16.mxu0 0
      %3453 = vmatpush1.bf16.msra.mxu0 0
      %3454 = vmatprep.subr.bf16.mxu0 0
      %3455 = vmatpush1.bf16.msra.mxu0 0
      %3456 = vmatprep.subr.bf16.mxu0 0
      %3457 = vmatpush1.bf16.msra.mxu0 0
      %3458 = vmatprep.subr.bf16.mxu0 0
      %3459 = vmatpush1.bf16.msra.mxu0 0
      %3460 = vmatprep.subr.bf16.mxu0 0
      %3461 = vmatpush1.bf16.msra.mxu0 0
      %3462 = vmatprep.subr.bf16.mxu0 0
      %3463 = vmatpush1.bf16.msra.mxu0 %v3415
      %3464 = vmatprep.subr.bf16.mxu0 0
      %3465 = vmatpush1.bf16.msra.mxu0 %v3414
      %3466 = vmatprep.subr.bf16.mxu0 0
      %3467 = vmatpush2.bf16.msra.mxu0 0
      %3468 = vmatprep.subr.bf16.mxu0 0
      %3469 = vmatpush2.bf16.msra.mxu0 0
      %3470 = vmatprep.subr.bf16.mxu0 0
      %3471 = vmatpush2.bf16.msra.mxu0 0
      %3472 = vmatprep.subr.bf16.mxu0 0
      %3473 = vmatpush2.bf16.msra.mxu0 0
      %3474 = vmatprep.subr.bf16.mxu0 0
      %3475 = vmatpush2.bf16.msra.mxu0 0
      %3476 = vmatprep.subr.bf16.mxu0 0
      %3477 = vmatpush2.bf16.msra.mxu0 0
      %3478 = vmatprep.subr.bf16.mxu0 0
      %3479 = vmatpush2.bf16.msra.mxu0 0
      %3480 = vmatprep.subr.bf16.mxu0 0
      %3481 = vmatpush2.bf16.msra.mxu0 0
      %3482 = vmatprep.mubr.bf16.mxu0 0
      %3483 = vmatmul.mubr.bf16.gmra.mxu0 %v3418
      %v3484 = vpop.f32.mrf.mxu0
      %v3485 = vadd.f32 %v3404, %v3484
      %v3486 = vpop.f32.mrf.mxu0
      %v3487 = vpop.f32.mrf.mxu0
      %v3488 = vadd.f32 %v3404, %v3487
      %v3489 = vpop.f32.mrf.mxu0
      %3490 = vmatprep.mubr.bf16.mxu0 0
      %3491 = vmatmul.mubr.bf16.gmra.mxu0 %v3420
      %v3492 = vpop.f32.mrf.mxu0
      %v3493 = vadd.f32 %v3404, %v3492
      %v3494 = vpop.f32.mrf.mxu0
      %v3495 = vpop.f32.mrf.mxu0
      %v3496 = vadd.f32 %v3404, %v3495
      %v3497 = vpop.f32.mrf.mxu0
      %3498 = vmatprep.mubr.bf16.mxu0 0
      %3499 = vmatmul.mubr.bf16.gmra.mxu0 %v3422
      %v3500 = vpop.f32.mrf.mxu0
      %v3501 = vadd.f32 %v3404, %v3500
      %v3502 = vpop.f32.mrf.mxu0
      %v3503 = vpop.f32.mrf.mxu0
      %v3504 = vadd.f32 %v3404, %v3503
      %v3505 = vpop.f32.mrf.mxu0
      %3506 = vmatprep.mubr.bf16.mxu0 0
      %3507 = vmatmul.mubr.bf16.gmra.mxu0 %v3424
      %v3508 = vpop.f32.mrf.mxu0
      %v3509 = vadd.f32 %v3404, %v3508
      %v3510 = vpop.f32.mrf.mxu0
      %v3511 = vpop.f32.mrf.mxu0
      %v3512 = vadd.f32 %v3404, %v3511
      %v3513 = vpop.f32.mrf.mxu0
      %3514 = vmatprep.mubr.bf16.mxu0 0
      %3515 = vmatmul.mubr.bf16.gmra.mxu0 %v3426
      %v3516 = vpop.f32.mrf.mxu0
      %v3517 = vadd.f32 %v3404, %v3516
      %v3518 = vpop.f32.mrf.mxu0
      %v3519 = vpop.f32.mrf.mxu0
      %v3520 = vadd.f32 %v3404, %v3519
      %v3521 = vpop.f32.mrf.mxu0
      %3522 = vmatprep.mubr.bf16.mxu0 0
      %3523 = vmatmul.mubr.bf16.gmra.mxu0 %v3428
      %v3524 = vpop.f32.mrf.mxu0
      %v3525 = vadd.f32 %v3404, %v3524
      %v3526 = vpop.f32.mrf.mxu0
      %v3527 = vpop.f32.mrf.mxu0
      %v3528 = vadd.f32 %v3404, %v3527
      %v3529 = vpop.f32.mrf.mxu0
      %3530 = vmatprep.mubr.bf16.mxu0 0
      %3531 = vmatmul.mubr.bf16.gmra.mxu0 %v3430
      %v3532 = vpop.f32.mrf.mxu0
      %v3533 = vadd.f32 %v3404, %v3532
      %v3534 = vpop.f32.mrf.mxu0
      %v3535 = vpop.f32.mrf.mxu0
      %v3536 = vadd.f32 %v3404, %v3535
      %v3537 = vpop.f32.mrf.mxu0
      %3538 = vmatprep.mubr.bf16.mxu0 0
      %3539 = vmatmul.mubr.bf16.gmra.mxu0 %v3432
      %v3540 = vpop.f32.mrf.mxu0
      %v3541 = vadd.f32 %v3404, %v3540
      %v3542 = vpop.f32.mrf.mxu0
      %v3543 = vpop.f32.mrf.mxu0
      %v3544 = vadd.f32 %v3404, %v3543
      %v3545 = vpop.f32.mrf.mxu0
      %3546 = vmatprep.mubr.bf16.mxu0 0
      %3547 = vmatmul.mubr.bf16.gmra.mxu0 %v3434
      %v3548 = vpop.f32.mrf.mxu0
      %v3549 = vadd.f32 %v3404, %v3548
      %v3550 = vpop.f32.mrf.mxu0
      %v3551 = vpop.f32.mrf.mxu0
      %v3552 = vadd.f32 %v3404, %v3551
      %v3553 = vpop.f32.mrf.mxu0
      %3554 = vmatprep.mubr.bf16.mxu0 0
      %3555 = vmatmul.mubr.bf16.gmra.mxu0 %v3436
      %v3556 = vpop.f32.mrf.mxu0
      %v3557 = vadd.f32 %v3404, %v3556
      %v3558 = vpop.f32.mrf.mxu0
      %v3559 = vpop.f32.mrf.mxu0
      %v3560 = vadd.f32 %v3404, %v3559
      %v3561 = vpop.f32.mrf.mxu0
      %3562 = vmatprep.mubr.bf16.mxu0 0
      %3563 = vmatmul.mubr.bf16.gmra.mxu0 %v3438
      %v3564 = vpop.f32.mrf.mxu0
      %v3565 = vadd.f32 %v3404, %v3564
      %v3566 = vpop.f32.mrf.mxu0
      %v3567 = vpop.f32.mrf.mxu0
      %v3568 = vadd.f32 %v3404, %v3567
      %v3569 = vpop.f32.mrf.mxu0
      %3570 = vmatprep.mubr.bf16.mxu0 0
      %3571 = vmatmul.mubr.bf16.gmra.mxu0 %v3440
      %v3572 = vpop.f32.mrf.mxu0
      %v3573 = vadd.f32 %v3404, %v3572
      %v3574 = vpop.f32.mrf.mxu0
      %v3575 = vpop.f32.mrf.mxu0
      %v3576 = vadd.f32 %v3404, %v3575
      %v3577 = vpop.f32.mrf.mxu0
      %3578 = vmatprep.mubr.bf16.mxu0 0
      %3579 = vmatmul.mubr.bf16.gmra.mxu0 %v3442
      %v3580 = vpop.f32.mrf.mxu0
      %v3581 = vadd.f32 %v3404, %v3580
      %v3582 = vpop.f32.mrf.mxu0
      %v3583 = vpop.f32.mrf.mxu0
      %v3584 = vadd.f32 %v3404, %v3583
      %v3585 = vpop.f32.mrf.mxu0
      %3586 = vmatprep.mubr.bf16.mxu0 0
      %3587 = vmatmul.mubr.bf16.gmra.mxu0 %v3444
      %v3588 = vpop.f32.mrf.mxu0
      %v3589 = vadd.f32 %v3404, %v3588
      %v3590 = vpop.f32.mrf.mxu0
      %v3591 = vpop.f32.mrf.mxu0
      %v3592 = vadd.f32 %v3404, %v3591
      %v3593 = vpop.f32.mrf.mxu0
      %3594 = vmatprep.mubr.bf16.mxu0 0
      %3595 = vmatmul.mubr.bf16.gmra.mxu0 %v3446
      %v3596 = vpop.f32.mrf.mxu0
      %v3597 = vadd.f32 %v3404, %v3596
      %v3598 = vpop.f32.mrf.mxu0
      %v3599 = vpop.f32.mrf.mxu0
      %v3600 = vadd.f32 %v3404, %v3599
      %v3601 = vpop.f32.mrf.mxu0
      %3602 = vmatprep.mubr.bf16.mxu0 0
      %3603 = vmatmul.mubr.bf16.gmra.mxu0 %v3448
      %v3604 = vpop.f32.mrf.mxu0
      %v3605 = vadd.f32 %v3404, %v3604
      %v3606 = vpop.f32.mrf.mxu0
      %v3607 = vpop.f32.mrf.mxu0
      %v3608 = vadd.f32 %v3404, %v3607
      %v3609 = vpop.f32.mrf.mxu0
      %3610 = vdwg.mxu0
      %v3611 = vadd.f32 %v3269, %v3485
      %v3612 = vadd.f32 %v3272, %v3488
      %v3613 = vadd.f32 %v3277, %v3493
      %v3614 = vadd.f32 %v3280, %v3496
      %v3615 = vadd.f32 %v3285, %v3501
      %v3616 = vadd.f32 %v3288, %v3504
      %v3617 = vadd.f32 %v3293, %v3509
      %v3618 = vadd.f32 %v3296, %v3512
      %v3619 = vadd.f32 %v3301, %v3517
      %v3620 = vadd.f32 %v3304, %v3520
      %v3621 = vadd.f32 %v3309, %v3525
      %v3622 = vadd.f32 %v3312, %v3528
      %v3623 = vadd.f32 %v3317, %v3533
      %v3624 = vadd.f32 %v3320, %v3536
      %v3625 = vadd.f32 %v3325, %v3541
      %v3626 = vadd.f32 %v3328, %v3544
      %v3627 = vadd.f32 %v3333, %v3549
      %v3628 = vadd.f32 %v3336, %v3552
      %v3629 = vadd.f32 %v3341, %v3557
      %v3630 = vadd.f32 %v3344, %v3560
      %v3631 = vadd.f32 %v3349, %v3565
      %v3632 = vadd.f32 %v3352, %v3568
      %v3633 = vadd.f32 %v3357, %v3573
      %v3634 = vadd.f32 %v3360, %v3576
      %v3635 = vadd.f32 %v3365, %v3581
      %v3636 = vadd.f32 %v3368, %v3584
      %v3637 = vadd.f32 %v3373, %v3589
      %v3638 = vadd.f32 %v3376, %v3592
      %v3639 = vadd.f32 %v3381, %v3597
      %v3640 = vadd.f32 %v3384, %v3600
      %v3641 = vadd.f32 %v3389, %v3605
      %v3642 = vadd.f32 %v3392, %v3608
      %v3643 = vmax.f32 %v3611, 0.0
      %v3644 = vmax.f32 %v3612, 0.0
      %v3645 = vmax.f32 %v3613, 0.0
      %v3646 = vmax.f32 %v3614, 0.0
      %v3647 = vmax.f32 %v3615, 0.0
      %v3648 = vmax.f32 %v3616, 0.0
      %v3649 = vmax.f32 %v3617, 0.0
      %v3650 = vmax.f32 %v3618, 0.0
      %v3651 = vmax.f32 %v3619, 0.0
      %v3652 = vmax.f32 %v3620, 0.0
      %v3653 = vmax.f32 %v3621, 0.0
      %v3654 = vmax.f32 %v3622, 0.0
      %v3655 = vmax.f32 %v3623, 0.0
      %v3656 = vmax.f32 %v3624, 0.0
      %v3657 = vmax.f32 %v3625, 0.0
      %v3658 = vmax.f32 %v3626, 0.0
      %v3659 = vmax.f32 %v3627, 0.0
      %v3660 = vmax.f32 %v3628, 0.0
      %v3661 = vmax.f32 %v3629, 0.0
      %v3662 = vmax.f32 %v3630, 0.0
      %v3663 = vmax.f32 %v3631, 0.0
      %v3664 = vmax.f32 %v3632, 0.0
      %v3665 = vmax.f32 %v3633, 0.0
      %v3666 = vmax.f32 %v3634, 0.0
      %v3667 = vmax.f32 %v3635, 0.0
      %v3668 = vmax.f32 %v3636, 0.0
      %v3669 = vmax.f32 %v3637, 0.0
      %v3670 = vmax.f32 %v3638, 0.0
      %v3671 = vmax.f32 %v3639, 0.0
      %v3672 = vmax.f32 %v3640, 0.0
      %v3673 = vmax.f32 %v3641, 0.0
      %v3674 = vmax.f32 %v3642, 0.0
      %v3675 = vpack.c.bf16 %v3644, %v3643
      %v3676 = vpack.c.bf16 %v3646, %v3645
      %v3677 = vpack.c.bf16 %v3648, %v3647
      %v3678 = vpack.c.bf16 %v3650, %v3649
      %v3679 = vpack.c.bf16 %v3652, %v3651
      %v3680 = vpack.c.bf16 %v3654, %v3653
      %v3681 = vpack.c.bf16 %v3656, %v3655
      %v3682 = vpack.c.bf16 %v3658, %v3657
      %v3683 = vpack.c.bf16 %v3660, %v3659
      %v3684 = vpack.c.bf16 %v3662, %v3661
      %v3685 = vpack.c.bf16 %v3664, %v3663
      %v3686 = vpack.c.bf16 %v3666, %v3665
      %v3687 = vpack.c.bf16 %v3668, %v3667
      %v3688 = vpack.c.bf16 %v3670, %v3669
      %v3689 = vpack.c.bf16 %v3672, %v3671
      %v3690 = vpack.c.bf16 %v3674, %v3673
      %v3707 = vunpack.c.l.b16 %v3675
      %v3708 = vunpack.c.h.b16 %v3675
      %v3709 = vunpack.c.l.b16 %v3676
      %v3710 = vunpack.c.h.b16 %v3676
      %v3711 = vunpack.c.l.b16 %v3677
      %v3712 = vunpack.c.h.b16 %v3677
      %v3713 = vunpack.c.l.b16 %v3678
      %v3714 = vunpack.c.h.b16 %v3678
      %v3715 = vunpack.c.l.b16 %v3679
      %v3716 = vunpack.c.h.b16 %v3679
      %v3717 = vunpack.c.l.b16 %v3680
      %v3718 = vunpack.c.h.b16 %v3680
      %v3719 = vunpack.c.l.b16 %v3681
      %v3720 = vunpack.c.h.b16 %v3681
      %v3721 = vunpack.c.l.b16 %v3682
      %v3722 = vunpack.c.h.b16 %v3682
      %v3723 = vunpack.c.l.b16 %v3683
      %v3724 = vunpack.c.h.b16 %v3683
      %v3725 = vunpack.c.l.b16 %v3684
      %v3726 = vunpack.c.h.b16 %v3684
      %v3727 = vunpack.c.l.b16 %v3685
      %v3728 = vunpack.c.h.b16 %v3685
      %v3729 = vunpack.c.l.b16 %v3686
      %v3730 = vunpack.c.h.b16 %v3686
      %v3731 = vunpack.c.l.b16 %v3687
      %v3732 = vunpack.c.h.b16 %v3687
      %v3733 = vunpack.c.l.b16 %v3688
      %v3734 = vunpack.c.h.b16 %v3688
      %v3735 = vunpack.c.l.b16 %v3689
      %v3736 = vunpack.c.h.b16 %v3689
      %v3737 = vunpack.c.l.b16 %v3690
      %v3738 = vunpack.c.h.b16 %v3690
      %v3739 = vpack.c.b16 %v3707, %v3707
      %v3740 = vpack.c.b16 %v3708, %v3708
      %v3741 = vpack.c.b16 %v3709, %v3709
      %v3742 = vpack.c.b16 %v3710, %v3710
      %v3743 = vpack.c.b16 %v3711, %v3711
      %v3744 = vpack.c.b16 %v3712, %v3712
      %v3745 = vpack.c.b16 %v3713, %v3713
      %v3746 = vpack.c.b16 %v3714, %v3714
      %v3747 = vpack.c.b16 %v3715, %v3715
      %v3748 = vpack.c.b16 %v3716, %v3716
      %v3749 = vpack.c.b16 %v3717, %v3717
      %v3750 = vpack.c.b16 %v3718, %v3718
      %v3751 = vpack.c.b16 %v3719, %v3719
      %v3752 = vpack.c.b16 %v3720, %v3720
      %v3753 = vpack.c.b16 %v3721, %v3721
      %v3754 = vpack.c.b16 %v3722, %v3722
      %v3755 = vpack.c.b16 %v3723, %v3723
      %v3756 = vpack.c.b16 %v3724, %v3724
      %v3757 = vpack.c.b16 %v3725, %v3725
      %v3758 = vpack.c.b16 %v3726, %v3726
      %v3759 = vpack.c.b16 %v3727, %v3727
      %v3760 = vpack.c.b16 %v3728, %v3728
      %v3761 = vpack.c.b16 %v3729, %v3729
      %v3762 = vpack.c.b16 %v3730, %v3730
      %v3763 = vpack.c.b16 %v3731, %v3731
      %v3764 = vpack.c.b16 %v3732, %v3732
      %v3765 = vpack.c.b16 %v3733, %v3733
      %v3766 = vpack.c.b16 %v3734, %v3734
      %v3767 = vpack.c.b16 %v3735, %v3735
      %v3768 = vpack.c.b16 %v3736, %v3736
      %v3769 = vpack.c.b16 %v3737, %v3737
      %v3770 = vpack.c.b16 %v3738, %v3738
      %vm3803 = vcmask 519168
      %3804 = vst.msk [vmem:[%s278] sm:$0xf] %vm3803, %v3739
      %3805 = vst.msk [vmem:[%s278 + $0x4] sm:$0xf] %vm3803, %v3740
      %3806 = vst.msk [vmem:[%s278 + $0x8] sm:$0xf] %vm3803, %v3741
      %3807 = vst.msk [vmem:[%s278 + $0xc] sm:$0xf] %vm3803, %v3742
      %3808 = vst.msk [vmem:[%s278 + $0x10] sm:$0xf] %vm3803, %v3743
      %3809 = vst.msk [vmem:[%s278 + $0x14] sm:$0xf] %vm3803, %v3744
      %3810 = vst.msk [vmem:[%s278 + $0x18] sm:$0xf] %vm3803, %v3745
      %3811 = vst.msk [vmem:[%s278 + $0x1c] sm:$0xf] %vm3803, %v3746
      %3812 = vst.msk [vmem:[%s278 + $0x20] sm:$0xf] %vm3803, %v3747
      %3813 = vst.msk [vmem:[%s278 + $0x24] sm:$0xf] %vm3803, %v3748
      %3814 = vst.msk [vmem:[%s278 + $0x28] sm:$0xf] %vm3803, %v3749
      %3815 = vst.msk [vmem:[%s278 + $0x2c] sm:$0xf] %vm3803, %v3750
      %3816 = vst.msk [vmem:[%s278 + $0x30] sm:$0xf] %vm3803, %v3751
      %3817 = vst.msk [vmem:[%s278 + $0x34] sm:$0xf] %vm3803, %v3752
      %3818 = vst.msk [vmem:[%s278 + $0x38] sm:$0xf] %vm3803, %v3753
      %3819 = vst.msk [vmem:[%s278 + $0x3c] sm:$0xf] %vm3803, %v3754
      %3820 = vst.msk [vmem:[%s278 + $0x40] sm:$0xf] %vm3803, %v3755
      %3821 = vst.msk [vmem:[%s278 + $0x44] sm:$0xf] %vm3803, %v3756
      %3822 = vst.msk [vmem:[%s278 + $0x48] sm:$0xf] %vm3803, %v3757
      %3823 = vst.msk [vmem:[%s278 + $0x4c] sm:$0xf] %vm3803, %v3758
      %3824 = vst.msk [vmem:[%s278 + $0x50] sm:$0xf] %vm3803, %v3759
      %3825 = vst.msk [vmem:[%s278 + $0x54] sm:$0xf] %vm3803, %v3760
      %3826 = vst.msk [vmem:[%s278 + $0x58] sm:$0xf] %vm3803, %v3761
      %3827 = vst.msk [vmem:[%s278 + $0x5c] sm:$0xf] %vm3803, %v3762
      %3828 = vst.msk [vmem:[%s278 + $0x60] sm:$0xf] %vm3803, %v3763
      %3829 = vst.msk [vmem:[%s278 + $0x64] sm:$0xf] %vm3803, %v3764
      %3830 = vst.msk [vmem:[%s278 + $0x68] sm:$0xf] %vm3803, %v3765
      %3831 = vst.msk [vmem:[%s278 + $0x6c] sm:$0xf] %vm3803, %v3766
      %3832 = vst.msk [vmem:[%s278 + $0x70] sm:$0xf] %vm3803, %v3767
      %3833 = vst.msk [vmem:[%s278 + $0x74] sm:$0xf] %vm3803, %v3768
      %3834 = vst.msk [vmem:[%s278 + $0x78] sm:$0xf] %vm3803, %v3769
      %3835 = vst.msk [vmem:[%s278 + $0x7c] sm:$0xf] %vm3803, %v3770
      %p3836 = scmp.lt.s32.totalorder %s18, 1
      %s3837 = scalar_select %p3836, %s18, 1
      %s3838 = smul.addr %s3837, 32
      %s3839 = smul.addr %s3838, 4
      %s3840 = scalar_lea.vmem %s7, %s3839
      // Predicated region
      $region49: #{_lambda_.2} parent=47 // pred_check
        %p3841 = pneg %p188
      $region50: #{_lambda_.2} parent=47 // pred_check_branch
        %3843 = sbr.rel (%p3841) target = $region52
      $region51: #{_lambda_.2} parent=47 // pred_region
        _
      $region52: #{_lambda_.2} parent=47 // pred_fallthru
        _
    $region48: #{_lambda_.2} parent=5 // pred_fallthru
      _
    %p3844 = scmp.le.s32.totalorder 2, %s13
    // Predicated region
    $region53: #{_lambda_.2} parent=5 // pred_check
      %p3845 = pneg %p3844
    $region54: #{_lambda_.2} parent=5 // pred_check_branch
      %3847 = sbr.rel (%p3845) target = $region56
    $region55: #{_lambda_.2} parent=5 // pred_region
      %s3848 = ssub.s32 %s13, 2
      // Predicated region
      $region57: #{_lambda_.2} parent=55 // pred_check
        %p3849 = pneg %p194
      $region58: #{_lambda_.2} parent=55 // pred_check_branch
        %3851 = sbr.rel (%p3849) target = $region60
      $region59: #{_lambda_.2} parent=55 // pred_region
        %p3852 = scmp.lt.s32.totalorder %s19, 1
        %s3853 = scalar_select %p3852, %s19, 1
        %s3854 = smul.addr %s3853, 32
        %s3855 = smul.addr %s3854, 4
        %s3856 = scalar_lea.vmem %s7, %s3855
      $region60: #{_lambda_.2} parent=55 // pred_fallthru
        _
    $region56: #{_lambda_.2} parent=5 // pred_fallthru
      _
  $region6: #{_lambda_.2} parent=0 // loop_footer
    %s17 = sadd.s32 1, %s13
  $region7: #{_lambda_.2} parent=0 // loop_footer_branch
    %12 = sbr.rel target = $region3
  $region8: #{_lambda_.2} parent=0 // loop_exit
    _

</llo_original>
